<compile_context>
chip_gen: v5e
topology: v5e:2x2
jax: 0.10.0
libtpu: 0.0.40
codegen_flags: <defaults>
</compile_context>

<pallas_src>
import math
import functools

import jax
import jax.numpy as jnp
from jax.experimental import pallas as pl
from jax.experimental.pallas import tpu as pltpu

EPS = 1e-5  # torch.nn.LayerNorm default


# ----------------------------- tiling helper -------------------------------

def _tile(dim, pref, align):
    """Largest block size <= pref that is a multiple of `align` and divides `dim`.
    Falls back to the full dim (always legal for a BlockSpec)."""
    if dim <= pref:
        return dim
    t = (pref // align) * align
    while t >= align:
        if dim % t == 0:
            return t
        t -= align
    return dim


# ------------------------ embedding + positional encoding ------------------

def _embed_pe_kernel(x_ref, w_ref, b_ref, pe_ref, o_ref):
    y = jnp.dot(x_ref[0], w_ref[...], preferred_element_type=jnp.float32)
    o_ref[0] = (y + b_ref[...] + pe_ref[0]).astype(o_ref.dtype)


def embed_with_pe(x, w, b, pe_slice):
    """x: (B, S, Din) -> x @ w + b + PE[:S]."""
    # TODO(synk): PositionalEncoding applies Dropout(p=0.1) in training mode; identity here (eval).
    B, S, Din = x.shape
    E = w.shape[1]
    return pl.pallas_call(
        _embed_pe_kernel,
        out_shape=jax.ShapeDtypeStruct((B, S, E), x.dtype),
        grid=(B,),
        in_specs=[pl.BlockSpec((1, S, Din), lambda i: (i, 0, 0)),
                  pl.BlockSpec((Din, E), lambda i: (0, 0)),
                  pl.BlockSpec((1, E), lambda i: (0, 0)),
                  pl.BlockSpec((1, S, E), lambda i: (0, 0, 0))],
        out_specs=pl.BlockSpec((1, S, E), lambda i: (i, 0, 0)),
        compiler_params=pltpu.CompilerParams(dimension_semantics=("parallel",)),
    )(x, w, b.reshape(1, E), pe_slice)


# ----------------------- fused attention helpers ---------------------------

def _attn_heads(q, k, v, num_heads, scale, causal):
    """q: (Sq, E), k/v: (Sk, E) -> (Sq, E) attention output (f32). All heads in one block."""
    Sq, E = q.shape
    Sk = k.shape[0]
    Dh = E // num_heads
    if causal:
        row = jax.lax.broadcasted_iota(jnp.int32, (Sq, Sk), 0)
        col = jax.lax.broadcasted_iota(jnp.int32, (Sq, Sk), 1)
        # large-finite instead of -inf: robust softmax, no inf arithmetic on the VPU
        bias = jnp.where(col > row, -1e30, 0.0).astype(jnp.float32)
    heads = []
    for h in range(num_heads):  # static unrolled loop (num_heads is small)
        sl = slice(h * Dh, (h + 1) * Dh)
        s = jax.lax.dot_general(q[:, sl], k[:, sl], (((1,), (1,)), ((), ())),
                                preferred_element_type=jnp.float32) * scale
        if causal:
            s = s + bias
        s = s - jnp.max(s, axis=-1, keepdims=True)
        p = jnp.exp(s)
        p = p * pl.reciprocal(jnp.sum(p, axis=-1, keepdims=True), approx=True)
        heads.append(jnp.dot(p, v[:, sl], preferred_element_type=jnp.float32))
    # TODO(synk): for long sequences this should become a flash-style online-softmax over Sk
    # tiles; at these shapes the full (Sq, Sk) scores fit comfortably in vregs.
    return jnp.concatenate(heads, axis=-1)


def _out_proj_add_ln(attn, resid, wo, bo, g, b):
    y = jnp.dot(attn, wo, preferred_element_type=jnp.float32) + bo + resid
    mu = jnp.mean(y, axis=-1, keepdims=True)
    var = jnp.mean(jnp.square(y - mu), axis=-1, keepdims=True)
    return (y - mu) * jax.lax.rsqrt(var + EPS) * g + b


# --------------- fused QKV-proj + attention + out-proj + add + LN -----------

def _self_attn_kernel(x_ref, wqkv_ref, bqkv_ref, wo_ref, bo_ref, g_ref, b_ref, o_ref,
                      *, num_heads, causal, scale):
    x = x_ref[0].astype(jnp.float32)                     # (S, E) — also the residual
    E = x.shape[-1]
    qkv = jnp.dot(x, wqkv_ref[...], preferred_element_type=jnp.float32) + bqkv_ref[...]
    attn = _attn_heads(qkv[:, :E], qkv[:, E:2 * E], qkv[:, 2 * E:],
                       num_heads, scale, causal)
    o_ref[0] = _out_proj_add_ln(attn, x, wo_ref[...], bo_ref[...],
                                g_ref[...], b_ref[...]).astype(o_ref.dtype)


def self_attn_block(x, p, g, b, *, num_heads, causal):
    """LayerNorm(x + OutProj(MHA(QKV(x)))) — post-norm, fully fused per batch block."""
    B, S, E = x.shape
    scale = 1.0 / math.sqrt(E // num_heads)
    return pl.pallas_call(
        functools.partial(_self_attn_kernel, num_heads=num_heads, causal=causal, scale=scale),
        out_shape=jax.ShapeDtypeStruct((B, S, E), x.dtype),
        grid=(B,),
        in_specs=[pl.BlockSpec((1, S, E), lambda i: (i, 0, 0)),
                  pl.BlockSpec((E, 3 * E), lambda i: (0, 0)),
                  pl.BlockSpec((1, 3 * E), lambda i: (0, 0)),
                  pl.BlockSpec((E, E), lambda i: (0, 0)),
                  pl.BlockSpec((1, E), lambda i: (0, 0)),
                  pl.BlockSpec((1, E), lambda i: (0, 0)),
                  pl.BlockSpec((1, E), lambda i: (0, 0))],
        out_specs=pl.BlockSpec((1, S, E), lambda i: (i, 0, 0)),
        compiler_params=pltpu.CompilerParams(dimension_semantics=("parallel",)),
    )(x, p["w_qkv"], p["b_qkv"].reshape(1, 3 * E), p["wo"], p["bo"].reshape(1, E),
      g.reshape(1, E), b.reshape(1, E))


def _cross_attn_kernel(x_ref, mem_ref, wq_ref, bq_ref, wkv_ref, bkv_ref,
                       wo_ref, bo_ref, g_ref, b_ref, o_ref, *, num_heads, scale):
    x = x_ref[0].astype(jnp.float32)                     # (Sq, E) — also the residual
    mem = mem_ref[0].astype(jnp.float32)                 # (Sk, E)
    E = x.shape[-1]
    q = jnp.dot(x, wq_ref[...], preferred_element_type=jnp.float32) + bq_ref[...]
    kv = jnp.dot(mem, wkv_ref[...], preferred_element_type=jnp.float32) + bkv_ref[...]
    attn = _attn_heads(q, kv[:, :E], kv[:, E:], num_heads, scale, False)
    o_ref[0] = _out_proj_add_ln(attn, x, wo_ref[...], bo_ref[...],
                                g_ref[...], b_ref[...]).astype(o_ref.dtype)


def cross_attn_block(x, mem, p, g, b, *, num_heads):
    """LayerNorm(x + OutProj(MHA(Q(x), KV(mem)))) — post-norm, fully fused per batch block."""
    B, Sq, E = x.shape
    Sk = mem.shape[1]
    scale = 1.0 / math.sqrt(E // num_heads)
    return pl.pallas_call(
        functools.partial(_cross_attn_kernel, num_heads=num_heads, scale=scale),
        out_shape=jax.ShapeDtypeStruct((B, Sq, E), x.dtype),
        grid=(B,),
        in_specs=[pl.BlockSpec((1, Sq, E), lambda i: (i, 0, 0)),
                  pl.BlockSpec((1, Sk, E), lambda i: (i, 0, 0)),
                  pl.BlockSpec((E, E), lambda i: (0, 0)),
                  pl.BlockSpec((1, E), lambda i: (0, 0)),
                  pl.BlockSpec((E, 2 * E), lambda i: (0, 0)),
                  pl.BlockSpec((1, 2 * E), lambda i: (0, 0)),
                  pl.BlockSpec((E, E), lambda i: (0, 0)),
                  pl.BlockSpec((1, E), lambda i: (0, 0)),
                  pl.BlockSpec((1, E), lambda i: (0, 0)),
                  pl.BlockSpec((1, E), lambda i: (0, 0))],
        out_specs=pl.BlockSpec((1, Sq, E), lambda i: (i, 0, 0)),
        compiler_params=pltpu.CompilerParams(dimension_semantics=("parallel",)),
    )(x, mem, p["wq"], p["bq"].reshape(1, E), p["w_kv"], p["b_kv"].reshape(1, 2 * E),
      p["wo"], p["bo"].reshape(1, E), g.reshape(1, E), b.reshape(1, E))


# --------------------- fused FFN + residual + LayerNorm ---------------------

def _ffn_kernel(x_ref, w1_ref, b1_ref, w2_ref, b2_ref, g_ref, b_ref, o_ref, acc_ref):
    j = pl.program_id(1)  # ff_dim chunk (reduction axis, last in grid)

    @pl.when(j == 0)
    def _():
        acc_ref[...] = jnp.zeros_like(acc_ref)

    h = jnp.dot(x_ref[...], w1_ref[...], preferred_element_type=jnp.float32) + b1_ref[...]
    h = jnp.maximum(h, 0.0)
    acc_ref[...] += jnp.dot(h, w2_ref[...], preferred_element_type=jnp.float32)

    @pl.when(j == pl.num_programs(1) - 1)
    def _():
        y = acc_ref[...] + b2_ref[...] + x_ref[...].astype(jnp.float32)   # residual
        mu = jnp.mean(y, axis=-1, keepdims=True)
        var = jnp.mean(jnp.square(y - mu), axis=-1, keepdims=True)
        o_ref[...] = ((y - mu) * jax.lax.rsqrt(var + EPS) * g_ref[...]
                      + b_ref[...]).astype(o_ref.dtype)


def ffn_block(x, p, g, b, tm=256, tf=512):
    """LayerNorm(x + W2 @ relu(W1 @ x + b1) + b2) — the (N, ff_dim) intermediate never hits HBM."""
    B, S, E = x.shape
    N = B * S
    F = p["w1"].shape[1]
    x2 = x.reshape(N, E)
    tm_ = _tile(N, tm, 8)
    tf_ = _tile(F, tf, 128)
    grid = (N // tm_, F // tf_)
    out = pl.pallas_call(
        _ffn_kernel,
        out_shape=jax.ShapeDtypeStruct((N, E), x.dtype),
        grid=grid,
        in_specs=[pl.BlockSpec((tm_, E), lambda i, j: (i, 0)),
                  pl.BlockSpec((E, tf_), lambda i, j: (0, j)),
                  pl.BlockSpec((1, tf_), lambda i, j: (0, j)),
                  pl.BlockSpec((tf_, E), lambda i, j: (j, 0)),
                  pl.BlockSpec((1, E), lambda i, j: (0, 0)),
                  pl.BlockSpec((1, E), lambda i, j: (0, 0)),
                  pl.BlockSpec((1, E), lambda i, j: (0, 0))],
        out_specs=pl.BlockSpec((tm_, E), lambda i, j: (i, 0)),
        scratch_shapes=[pltpu.VMEM((tm_, E), jnp.float32)],
        compiler_params=pltpu.CompilerParams(
            dimension_semantics=("parallel", "arbitrary")),
    )(x2, p["w1"], p["b1"].reshape(1, F), p["w2"], p["b2"].reshape(1, E),
      g.reshape(1, E), b.reshape(1, E))
    return out.reshape(B, S, E)


# ------------------------- plain LayerNorm (no residual) --------------------

def _ln_kernel(x_ref, g_ref, b_ref, o_ref):
    y = x_ref[...].astype(jnp.float32)
    mu = jnp.mean(y, axis=-1, keepdims=True)
    var = jnp.mean(jnp.square(y - mu), axis=-1, keepdims=True)
    o_ref[...] = ((y - mu) * jax.lax.rsqrt(var + EPS) * g_ref[...]
                  + b_ref[...]).astype(o_ref.dtype)


def layernorm(x2d, g, b, tm=512):
    N, E = x2d.shape
    tm_ = _tile(N, tm, 8)
    return pl.pallas_call(
        _ln_kernel,
        out_shape=jax.ShapeDtypeStruct((N, E), x2d.dtype),
        grid=(N // tm_,),
        in_specs=[pl.BlockSpec((tm_, E), lambda i: (i, 0)),
                  pl.BlockSpec((1, E), lambda i: (0, 0)),
                  pl.BlockSpec((1, E), lambda i: (0, 0))],
        out_specs=pl.BlockSpec((tm_, E), lambda i: (i, 0)),
        compiler_params=pltpu.CompilerParams(dimension_semantics=("parallel",)),
    )(x2d, g.reshape(1, E), b.reshape(1, E))


# ------------------- fused final LayerNorm + output projection --------------

def _ln_proj_kernel(x_ref, g_ref, b_ref, w_ref, bias_ref, o_ref):
    y = x_ref[...].astype(jnp.float32)
    mu = jnp.mean(y, axis=-1, keepdims=True)
    var = jnp.mean(jnp.square(y - mu), axis=-1, keepdims=True)
    y = (y - mu) * jax.lax.rsqrt(var + EPS) * g_ref[...] + b_ref[...]
    o_ref[...] = (jnp.dot(y, w_ref[...], preferred_element_type=jnp.float32)
                  + bias_ref[...]).astype(o_ref.dtype)


def layernorm_proj(x2d, g, b, w, bias, tm=512):
    """(LayerNorm(x)) @ w + bias, fused — saves one HBM round-trip of the normed activations."""
    N, E = x2d.shape
    Dout = w.shape[1]
    tm_ = _tile(N, tm, 8)
    return pl.pallas_call(
        _ln_proj_kernel,
        out_shape=jax.ShapeDtypeStruct((N, Dout), x2d.dtype),
        grid=(N // tm_,),
        in_specs=[pl.BlockSpec((tm_, E), lambda i: (i, 0)),
                  pl.BlockSpec((1, E), lambda i: (0, 0)),
                  pl.BlockSpec((1, E), lambda i: (0, 0)),
                  pl.BlockSpec((E, Dout), lambda i: (0, 0)),
                  pl.BlockSpec((1, Dout), lambda i: (0, 0))],
        out_specs=pl.BlockSpec((tm_, Dout), lambda i: (i, 0)),
        compiler_params=pltpu.CompilerParams(dimension_semantics=("parallel",)),
    )(x2d, g.reshape(1, E), b.reshape(1, E), w, bias.reshape(1, Dout))


# ------------------------------- model glue ---------------------------------

def encoder_layer(x, p, num_heads):
    # post-norm (torch default norm_first=False); dropout identity (eval).
    x = self_attn_block(x, p["self_attn"], p["ln1_g"], p["ln1_b"],
                        num_heads=num_heads, causal=False)
    x = ffn_block(x, p["ffn"], p["ln2_g"], p["ln2_b"])
    return x


def decoder_layer(x, mem, p, num_heads):
    x = self_attn_block(x, p["self_attn"], p["ln1_g"], p["ln1_b"],
                        num_heads=num_heads, causal=True)
    x = cross_attn_block(x, mem, p["cross_attn"], p["ln2_g"], p["ln2_b"],
                         num_heads=num_heads)
    x = ffn_block(x, p["ffn"], p["ln3_g"], p["ln3_b"])
    return x


def make_positional_encoding(max_len, d_model):
    position = jnp.arange(max_len, dtype=jnp.float32)[:, None]
    div_term = jnp.exp(jnp.arange(0, d_model, 2, dtype=jnp.float32)
                       * (-math.log(10000.0) / d_model))
    pe = jnp.zeros((max_len, d_model), jnp.float32)
    pe = pe.at[:, 0::2].set(jnp.sin(position * div_term))
    pe = pe.at[:, 1::2].set(jnp.cos(position * div_term))
    return pe[None]  # (1, max_len, d_model)


def transformer_with_pe_forward(params, src, tgt, *, num_heads):
    """src: (B, Ss, in_dim), tgt: (B, St, out_dim) -> (B, St, out_dim)."""
    E = params["enc_emb_w"].shape[1]
    B, Ss, _ = src.shape
    St = tgt.shape[1]
    pe = params["pe"]

    src_e = embed_with_pe(src, params["enc_emb_w"], params["enc_emb_b"], pe[:, :Ss])
    tgt_e = embed_with_pe(tgt, params["dec_emb_w"], params["dec_emb_b"], pe[:, :St])

    mem = src_e
    for lp in params["encoder_layers"]:
        mem = encoder_layer(mem, lp, num_heads)
    mem = layernorm(mem.reshape(-1, E),
                    params["enc_norm_g"], params["enc_norm_b"]).reshape(B, Ss, E)

    x = tgt_e
    for lp in params["decoder_layers"]:
        x = decoder_layer(x, mem, lp, num_heads)

    out = layernorm_proj(x.reshape(-1, E), params["dec_norm_g"], params["dec_norm_b"],
                         params["out_w"], params["out_b"])
    return out.reshape(B, St, -1)


# ----------------------------- parameter init ------------------------------

def init_params(key, in_dim, out_dim, embed_dim, num_layers, ff_dim, max_len=64):
    keys = iter(jax.random.split(key, 256))

    def w(shape):
        return 0.02 * jax.random.normal(next(keys), shape, jnp.float32)

    def zeros(n):
        return jnp.zeros((n,), jnp.float32)

    def ones(n):
        return jnp.ones((n,), jnp.float32)

    def attn_self():  # fused QKV projection weight
        return dict(w_qkv=w((embed_dim, 3 * embed_dim)), b_qkv=zeros(3 * embed_dim),
                    wo=w((embed_dim, embed_dim)), bo=zeros(embed_dim))

    def attn_cross():  # separate Q, fused KV projection
        return dict(wq=w((embed_dim, embed_dim)), bq=zeros(embed_dim),
                    w_kv=w((embed_dim, 2 * embed_dim)), b_kv=zeros(2 * embed_dim),
                    wo=w((embed_dim, embed_dim)), bo=zeros(embed_dim))

    def ffn_params():
        return dict(w1=w((embed_dim, ff_dim)), b1=zeros(ff_dim),
                    w2=w((ff_dim, embed_dim)), b2=zeros(embed_dim))

    def enc_layer():
        return dict(self_attn=attn_self(), ffn=ffn_params(),
                    ln1_g=ones(embed_dim), ln1_b=zeros(embed_dim),
                    ln2_g=ones(embed_dim), ln2_b=zeros(embed_dim))

    def dec_layer():
        return dict(self_attn=attn_self(), cross_attn=attn_cross(), ffn=ffn_params(),
                    ln1_g=ones(embed_dim), ln1_b=zeros(embed_dim),
                    ln2_g=ones(embed_dim), ln2_b=zeros(embed_dim),
                    ln3_g=ones(embed_dim), ln3_b=zeros(embed_dim))

    return dict(
        enc_emb_w=w((in_dim, embed_dim)), enc_emb_b=zeros(embed_dim),
        dec_emb_w=w((out_dim, embed_dim)), dec_emb_b=zeros(embed_dim),
        out_w=w((embed_dim, out_dim)), out_b=zeros(out_dim),
        encoder_layers=[enc_layer() for _ in range(num_layers)],
        decoder_layers=[dec_layer() for _ in range(num_layers)],
        enc_norm_g=ones(embed_dim), enc_norm_b=zeros(embed_dim),
        dec_norm_g=ones(embed_dim), dec_norm_b=zeros(embed_dim),
        pe=make_positional_encoding(max_len, embed_dim),
    )


# ---------------------------------- main -----------------------------------

if __name__ == "__main__":
    IN_DIM, OUT_DIM = 4, 4
    EMBED_DIM, NUM_HEADS, NUM_LAYERS = 32, 4, 2
    FF_DIM = 2048  # torch.nn.Transformer default dim_feedforward
    B, SRC_LEN, TGT_LEN = 2, 8, 8

    key = jax.random.PRNGKey(0)
    k_params, k_src, k_tgt = jax.random.split(key, 3)

    params = init_params(k_params, IN_DIM, OUT_DIM, EMBED_DIM, NUM_LAYERS, FF_DIM)
    src = jax.random.normal(k_src, (B, SRC_LEN, IN_DIM), jnp.float32)
    tgt = jax.random.normal(k_tgt, (B, TGT_LEN, OUT_DIM), jnp.float32)

    fwd = jax.jit(functools.partial(transformer_with_pe_forward, num_heads=NUM_HEADS))
    pred = fwd(params, src, tgt)
    jax.block_until_ready(pred)
    assert pred.shape == (B, TGT_LEN, OUT_DIM), pred.shape
    assert bool(jnp.isfinite(pred).all()), "non-finite output"
    print("KERNEL_OK")
</pallas_src>

<mosaic_0001>
module attributes {stable_mosaic.version = 11 : i64} {
  func.func @_embed_pe_kernel(%arg0: i32, %arg1: memref<1x8x4xf32, #tpu.memory_space<vmem>>, %arg2: memref<4x32xf32, #tpu.memory_space<vmem>>, %arg3: memref<1x32xf32, #tpu.memory_space<vmem>>, %arg4: memref<1x8x32xf32, #tpu.memory_space<vmem>>, %arg5: memref<1x8x32xf32, #tpu.memory_space<vmem>>) attributes {dimension_semantics = [#tpu.dimension_semantics<parallel>], iteration_bounds = array<i64: 2>, scalar_prefetch = 0 : i64, scratch_operands = 0 : i64, tpu.core_type = #tpu.core_type<tc>, window_params = [{transform_indices = @transform_0, window_bounds = array<i64: 1, 8, 4>}, {pipeline_mode = #tpu.pipeline_mode<synchronous>, transform_indices = @transform_1, window_bounds = array<i64: 4, 32>}, {pipeline_mode = #tpu.pipeline_mode<synchronous>, transform_indices = @transform_2, window_bounds = array<i64: 1, 32>}, {pipeline_mode = #tpu.pipeline_mode<synchronous>, transform_indices = @transform_3, window_bounds = array<i64: 1, 8, 32>}, {transform_indices = @transform_4, window_bounds = array<i64: 1, 8, 32>}]} {
    %c0 = arith.constant 0 : index
    %c0_0 = arith.constant 0 : index
    %c0_1 = arith.constant 0 : index
    %0 = vector.load %arg1[%c0, %c0_0, %c0_1] : memref<1x8x4xf32, #tpu.memory_space<vmem>>, vector<1x8x4xf32>
    %1 = vector.shape_cast %0 : vector<1x8x4xf32> to vector<8x4xf32>
    %c0_2 = arith.constant 0 : index
    %c0_3 = arith.constant 0 : index
    %2 = vector.load %arg2[%c0_2, %c0_3] : memref<4x32xf32, #tpu.memory_space<vmem>>, vector<4x32xf32>
    %cst = arith.constant dense<0.000000e+00> : vector<8x32xf32>
    %3 = tpu.matmul %1, %2, %cst {dimension_numbers = #tpu.dot_dimension_numbers<[1], [0], [0], [1], [0, 0, 1, 1], [], []>} : vector<8x4xf32>, vector<4x32xf32>, vector<8x32xf32> -> vector<8x32xf32>
    %c0_4 = arith.constant 0 : index
    %c0_5 = arith.constant 0 : index
    %4 = vector.load %arg3[%c0_4, %c0_5] : memref<1x32xf32, #tpu.memory_space<vmem>>, vector<1x32xf32>
    %5 = vector.broadcast %4 : vector<1x32xf32> to vector<8x32xf32>
    %6 = arith.addf %3, %5 : vector<8x32xf32>
    %c0_6 = arith.constant 0 : index
    %c0_7 = arith.constant 0 : index
    %c0_8 = arith.constant 0 : index
    %7 = vector.load %arg4[%c0_6, %c0_7, %c0_8] : memref<1x8x32xf32, #tpu.memory_space<vmem>>, vector<1x8x32xf32>
    %8 = vector.shape_cast %7 : vector<1x8x32xf32> to vector<8x32xf32>
    %9 = arith.addf %6, %8 : vector<8x32xf32>
    %c0_9 = arith.constant 0 : index
    %c0_10 = arith.constant 0 : index
    %c0_11 = arith.constant 0 : index
    %10 = vector.load %arg5[%c0_9, %c0_10, %c0_11] : memref<1x8x32xf32, #tpu.memory_space<vmem>>, vector<1x8x32xf32>
    %11 = vector.shape_cast %10 : vector<1x8x32xf32> to vector<8x32xf32>
    %12 = vector.shape_cast %9 : vector<8x32xf32> to vector<1x8x32xf32>
    tpu.vector_store %arg5[%c0_9, %c0_10, %c0_11], %12 {strides = array<i32>} : memref<1x8x32xf32, #tpu.memory_space<vmem>>, vector<1x8x32xf32>,
    return
  }
  func.func @transform_0(%arg0: i32) -> (i32, i32, i32) {
    %c0_i32 = arith.constant 0 : i32
    %c0_i32_0 = arith.constant 0 : i32
    %c0_i32_1 = arith.constant 0 : i32
    return %arg0, %c0_i32, %c0_i32_0 : i32, i32, i32
  }
  func.func @transform_1(%arg0: i32) -> (i32, i32) {
    %c0_i32 = arith.constant 0 : i32
    %c0_i32_0 = arith.constant 0 : i32
    %c0_i32_1 = arith.constant 0 : i32
    return %c0_i32, %c0_i32_0 : i32, i32
  }
  func.func @transform_2(%arg0: i32) -> (i32, i32) {
    %c0_i32 = arith.constant 0 : i32
    %c0_i32_0 = arith.constant 0 : i32
    %c0_i32_1 = arith.constant 0 : i32
    return %c0_i32, %c0_i32_0 : i32, i32
  }
  func.func @transform_3(%arg0: i32) -> (i32, i32, i32) {
    %c0_i32 = arith.constant 0 : i32
    %c0_i32_0 = arith.constant 0 : i32
    %c0_i32_1 = arith.constant 0 : i32
    %c0_i32_2 = arith.constant 0 : i32
    return %c0_i32, %c0_i32_0, %c0_i32_1 : i32, i32, i32
  }
  func.func @transform_4(%arg0: i32) -> (i32, i32, i32) {
    %c0_i32 = arith.constant 0 : i32
    %c0_i32_0 = arith.constant 0 : i32
    %c0_i32_1 = arith.constant 0 : i32
    return %arg0, %c0_i32, %c0_i32_0 : i32, i32, i32
  }
}

module attributes {stable_mosaic.version = 11 : i64} {
  func.func @_self_attn_kernel(%arg0: i32, %arg1: memref<1x8x32xf32, #tpu.memory_space<vmem>>, %arg2: memref<32x96xf32, #tpu.memory_space<vmem>>, %arg3: memref<1x96xf32, #tpu.memory_space<vmem>>, %arg4: memref<32x32xf32, #tpu.memory_space<vmem>>, %arg5: memref<1x32xf32, #tpu.memory_space<vmem>>, %arg6: memref<1x32xf32, #tpu.memory_space<vmem>>, %arg7: memref<1x32xf32, #tpu.memory_space<vmem>>, %arg8: memref<1x8x32xf32, #tpu.memory_space<vmem>>) attributes {dimension_semantics = [#tpu.dimension_semantics<parallel>], iteration_bounds = array<i64: 2>, scalar_prefetch = 0 : i64, scratch_operands = 0 : i64, tpu.core_type = #tpu.core_type<tc>, window_params = [{transform_indices = @transform_0, window_bounds = array<i64: 1, 8, 32>}, {pipeline_mode = #tpu.pipeline_mode<synchronous>, transform_indices = @transform_1, window_bounds = array<i64: 32, 96>}, {pipeline_mode = #tpu.pipeline_mode<synchronous>, transform_indices = @transform_2, window_bounds = array<i64: 1, 96>}, {pipeline_mode = #tpu.pipeline_mode<synchronous>, transform_indices = @transform_3, window_bounds = array<i64: 32, 32>}, {pipeline_mode = #tpu.pipeline_mode<synchronous>, transform_indices = @transform_4, window_bounds = array<i64: 1, 32>}, {pipeline_mode = #tpu.pipeline_mode<synchronous>, transform_indices = @transform_5, window_bounds = array<i64: 1, 32>}, {pipeline_mode = #tpu.pipeline_mode<synchronous>, transform_indices = @transform_6, window_bounds = array<i64: 1, 32>}, {transform_indices = @transform_7, window_bounds = array<i64: 1, 8, 32>}]} {
    %c0 = arith.constant 0 : index
    %c0_0 = arith.constant 0 : index
    %c0_1 = arith.constant 0 : index
    %0 = vector.load %arg1[%c0, %c0_0, %c0_1] : memref<1x8x32xf32, #tpu.memory_space<vmem>>, vector<1x8x32xf32>
    %1 = vector.shape_cast %0 : vector<1x8x32xf32> to vector<8x32xf32>
    %c0_2 = arith.constant 0 : index
    %c0_3 = arith.constant 0 : index
    %2 = vector.load %arg2[%c0_2, %c0_3] : memref<32x96xf32, #tpu.memory_space<vmem>>, vector<32x96xf32>
    %cst = arith.constant dense<0.000000e+00> : vector<8x96xf32>
    %3 = tpu.matmul %1, %2, %cst {dimension_numbers = #tpu.dot_dimension_numbers<[1], [0], [0], [1], [0, 0, 1, 1], [], []>} : vector<8x32xf32>, vector<32x96xf32>, vector<8x96xf32> -> vector<8x96xf32>
    %c0_4 = arith.constant 0 : index
    %c0_5 = arith.constant 0 : index
    %4 = vector.load %arg3[%c0_4, %c0_5] : memref<1x96xf32, #tpu.memory_space<vmem>>, vector<1x96xf32>
    %5 = vector.broadcast %4 : vector<1x96xf32> to vector<8x96xf32>
    %6 = arith.addf %3, %5 : vector<8x96xf32>
    %7 = vector.extract_strided_slice %6 {offsets = [0, 0], sizes = [8, 32], strides = [1, 1]} : vector<8x96xf32> to vector<8x32xf32>
    %8 = vector.extract_strided_slice %6 {offsets = [0, 32], sizes = [8, 32], strides = [1, 1]} : vector<8x96xf32> to vector<8x32xf32>
    %9 = vector.extract_strided_slice %6 {offsets = [0, 64], sizes = [8, 32], strides = [1, 1]} : vector<8x96xf32> to vector<8x32xf32>
    %10 = vector.extract_strided_slice %7 {offsets = [0, 0], sizes = [8, 8], strides = [1, 1]} : vector<8x32xf32> to vector<8x8xf32>
    %11 = vector.extract_strided_slice %8 {offsets = [0, 0], sizes = [8, 8], strides = [1, 1]} : vector<8x32xf32> to vector<8x8xf32>
    %cst_6 = arith.constant dense<0.000000e+00> : vector<8x8xf32>
    %12 = tpu.matmul %10, %11, %cst_6 {dimension_numbers = #tpu.dot_dimension_numbers<[1], [1], [0], [0], [0, 0, 1, 0], [], []>} : vector<8x8xf32>, vector<8x8xf32>, vector<8x8xf32> -> vector<8x8xf32>
    %cst_7 = arith.constant 0.353553385 : f32
    %13 = vector.broadcast %cst_7 : f32 to vector<8x8xf32>
    %14 = arith.mulf %12, %13 : vector<8x8xf32>
    %cst_8 = arith.constant dense<0xFF800000> : vector<8xf32>
    %15 = vector.multi_reduction <maximumf>, %14, %cst_8 [1] : vector<8x8xf32> to vector<8xf32>
    %16 = vector.shape_cast %15 : vector<8xf32> to vector<8x1xf32>
    %17 = vector.broadcast %16 : vector<8x1xf32> to vector<8x8xf32>
    %18 = arith.subf %14, %17 : vector<8x8xf32>
    %19 = math.exp %18 : vector<8x8xf32>
    %cst_9 = arith.constant dense<0.000000e+00> : vector<8xf32>
    %20 = vector.multi_reduction <add>, %19, %cst_9 [1] : vector<8x8xf32> to vector<8xf32>
    %21 = vector.shape_cast %20 : vector<8xf32> to vector<8x1xf32>
    %22 = tpu.reciprocal %21 {approx = true} : vector<8x1xf32> -> vector<8x1xf32>
    %23 = vector.broadcast %22 : vector<8x1xf32> to vector<8x8xf32>
    %24 = arith.mulf %19, %23 : vector<8x8xf32>
    %25 = vector.extract_strided_slice %9 {offsets = [0, 0], sizes = [8, 8], strides = [1, 1]} : vector<8x32xf32> to vector<8x8xf32>
    %cst_10 = arith.constant dense<0.000000e+00> : vector<8x8xf32>
    %26 = tpu.matmul %24, %25, %cst_10 {dimension_numbers = #tpu.dot_dimension_numbers<[1], [0], [0], [1], [0, 0, 1, 1], [], []>} : vector<8x8xf32>, vector<8x8xf32>, vector<8x8xf32> -> vector<8x8xf32>
    %27 = vector.extract_strided_slice %7 {offsets = [0, 8], sizes = [8, 8], strides = [1, 1]} : vector<8x32xf32> to vector<8x8xf32>
    %28 = vector.extract_strided_slice %8 {offsets = [0, 8], sizes = [8, 8], strides = [1, 1]} : vector<8x32xf32> to vector<8x8xf32>
    %cst_11 = arith.constant dense<0.000000e+00> : vector<8x8xf32>
    %29 = tpu.matmul %27, %28, %cst_11 {dimension_numbers = #tpu.dot_dimension_numbers<[1], [1], [0], [0], [0, 0, 1, 0], [], []>} : vector<8x8xf32>, vector<8x8xf32>, vector<8x8xf32> -> vector<8x8xf32>
    %cst_12 = arith.constant 0.353553385 : f32
    %30 = vector.broadcast %cst_12 : f32 to vector<8x8xf32>
    %31 = arith.mulf %29, %30 : vector<8x8xf32>
    %cst_13 = arith.constant dense<0xFF800000> : vector<8xf32>
    %32 = vector.multi_reduction <maximumf>, %31, %cst_13 [1] : vector<8x8xf32> to vector<8xf32>
    %33 = vector.shape_cast %32 : vector<8xf32> to vector<8x1xf32>
    %34 = vector.broadcast %33 : vector<8x1xf32> to vector<8x8xf32>
    %35 = arith.subf %31, %34 : vector<8x8xf32>
    %36 = math.exp %35 : vector<8x8xf32>
    %cst_14 = arith.constant dense<0.000000e+00> : vector<8xf32>
    %37 = vector.multi_reduction <add>, %36, %cst_14 [1] : vector<8x8xf32> to vector<8xf32>
    %38 = vector.shape_cast %37 : vector<8xf32> to vector<8x1xf32>
    %39 = tpu.reciprocal %38 {approx = true} : vector<8x1xf32> -> vector<8x1xf32>
    %40 = vector.broadcast %39 : vector<8x1xf32> to vector<8x8xf32>
    %41 = arith.mulf %36, %40 : vector<8x8xf32>
    %42 = vector.extract_strided_slice %9 {offsets = [0, 8], sizes = [8, 8], strides = [1, 1]} : vector<8x32xf32> to vector<8x8xf32>
    %cst_15 = arith.constant dense<0.000000e+00> : vector<8x8xf32>
    %43 = tpu.matmul %41, %42, %cst_15 {dimension_numbers = #tpu.dot_dimension_numbers<[1], [0], [0], [1], [0, 0, 1, 1], [], []>} : vector<8x8xf32>, vector<8x8xf32>, vector<8x8xf32> -> vector<8x8xf32>
    %44 = vector.extract_strided_slice %7 {offsets = [0, 16], sizes = [8, 8], strides = [1, 1]} : vector<8x32xf32> to vector<8x8xf32>
    %45 = vector.extract_strided_slice %8 {offsets = [0, 16], sizes = [8, 8], strides = [1, 1]} : vector<8x32xf32> to vector<8x8xf32>
    %cst_16 = arith.constant dense<0.000000e+00> : vector<8x8xf32>
    %46 = tpu.matmul %44, %45, %cst_16 {dimension_numbers = #tpu.dot_dimension_numbers<[1], [1], [0], [0], [0, 0, 1, 0], [], []>} : vector<8x8xf32>, vector<8x8xf32>, vector<8x8xf32> -> vector<8x8xf32>
    %cst_17 = arith.constant 0.353553385 : f32
    %47 = vector.broadcast %cst_17 : f32 to vector<8x8xf32>
    %48 = arith.mulf %46, %47 : vector<8x8xf32>
    %cst_18 = arith.constant dense<0xFF800000> : vector<8xf32>
    %49 = vector.multi_reduction <maximumf>, %48, %cst_18 [1] : vector<8x8xf32> to vector<8xf32>
    %50 = vector.shape_cast %49 : vector<8xf32> to vector<8x1xf32>
    %51 = vector.broadcast %50 : vector<8x1xf32> to vector<8x8xf32>
    %52 = arith.subf %48, %51 : vector<8x8xf32>
    %53 = math.exp %52 : vector<8x8xf32>
    %cst_19 = arith.constant dense<0.000000e+00> : vector<8xf32>
    %54 = vector.multi_reduction <add>, %53, %cst_19 [1] : vector<8x8xf32> to vector<8xf32>
    %55 = vector.shape_cast %54 : vector<8xf32> to vector<8x1xf32>
    %56 = tpu.reciprocal %55 {approx = true} : vector<8x1xf32> -> vector<8x1xf32>
    %57 = vector.broadcast %56 : vector<8x1xf32> to vector<8x8xf32>
    %58 = arith.mulf %53, %57 : vector<8x8xf32>
    %59 = vector.extract_strided_slice %9 {offsets = [0, 16], sizes = [8, 8], strides = [1, 1]} : vector<8x32xf32> to vector<8x8xf32>
    %cst_20 = arith.constant dense<0.000000e+00> : vector<8x8xf32>
    %60 = tpu.matmul %58, %59, %cst_20 {dimension_numbers = #tpu.dot_dimension_numbers<[1], [0], [0], [1], [0, 0, 1, 1], [], []>} : vector<8x8xf32>, vector<8x8xf32>, vector<8x8xf32> -> vector<8x8xf32>
    %61 = vector.extract_strided_slice %7 {offsets = [0, 24], sizes = [8, 8], strides = [1, 1]} : vector<8x32xf32> to vector<8x8xf32>
    %62 = vector.extract_strided_slice %8 {offsets = [0, 24], sizes = [8, 8], strides = [1, 1]} : vector<8x32xf32> to vector<8x8xf32>
    %cst_21 = arith.constant dense<0.000000e+00> : vector<8x8xf32>
    %63 = tpu.matmul %61, %62, %cst_21 {dimension_numbers = #tpu.dot_dimension_numbers<[1], [1], [0], [0], [0, 0, 1, 0], [], []>} : vector<8x8xf32>, vector<8x8xf32>, vector<8x8xf32> -> vector<8x8xf32>
    %cst_22 = arith.constant 0.353553385 : f32
    %64 = vector.broadcast %cst_22 : f32 to vector<8x8xf32>
    %65 = arith.mulf %63, %64 : vector<8x8xf32>
    %cst_23 = arith.constant dense<0xFF800000> : vector<8xf32>
    %66 = vector.multi_reduction <maximumf>, %65, %cst_23 [1] : vector<8x8xf32> to vector<8xf32>
    %67 = vector.shape_cast %66 : vector<8xf32> to vector<8x1xf32>
    %68 = vector.broadcast %67 : vector<8x1xf32> to vector<8x8xf32>
    %69 = arith.subf %65, %68 : vector<8x8xf32>
    %70 = math.exp %69 : vector<8x8xf32>
    %cst_24 = arith.constant dense<0.000000e+00> : vector<8xf32>
    %71 = vector.multi_reduction <add>, %70, %cst_24 [1] : vector<8x8xf32> to vector<8xf32>
    %72 = vector.shape_cast %71 : vector<8xf32> to vector<8x1xf32>
    %73 = tpu.reciprocal %72 {approx = true} : vector<8x1xf32> -> vector<8x1xf32>
    %74 = vector.broadcast %73 : vector<8x1xf32> to vector<8x8xf32>
    %75 = arith.mulf %70, %74 : vector<8x8xf32>
    %76 = vector.extract_strided_slice %9 {offsets = [0, 24], sizes = [8, 8], strides = [1, 1]} : vector<8x32xf32> to vector<8x8xf32>
    %cst_25 = arith.constant dense<0.000000e+00> : vector<8x8xf32>
    %77 = tpu.matmul %75, %76, %cst_25 {dimension_numbers = #tpu.dot_dimension_numbers<[1], [0], [0], [1], [0, 0, 1, 1], [], []>} : vector<8x8xf32>, vector<8x8xf32>, vector<8x8xf32> -> vector<8x8xf32>
    %78 = tpu.concatenate %26, %43, %60, %77 in 1 : vector<8x8xf32>, vector<8x8xf32>, vector<8x8xf32>, vector<8x8xf32> -> vector<8x32xf32>
    %c0_26 = arith.constant 0 : index
    %c0_27 = arith.constant 0 : index
    %79 = vector.load %arg4[%c0_26, %c0_27] : memref<32x32xf32, #tpu.memory_space<vmem>>, vector<32x32xf32>
    %c0_28 = arith.constant 0 : index
    %c0_29 = arith.constant 0 : index
    %80 = vector.load %arg5[%c0_28, %c0_29] : memref<1x32xf32, #tpu.memory_space<vmem>>, vector<1x32xf32>
    %c0_30 = arith.constant 0 : index
    %c0_31 = arith.constant 0 : index
    %81 = vector.load %arg6[%c0_30, %c0_31] : memref<1x32xf32, #tpu.memory_space<vmem>>, vector<1x32xf32>
    %c0_32 = arith.constant 0 : index
    %c0_33 = arith.constant 0 : index
    %82 = vector.load %arg7[%c0_32, %c0_33] : memref<1x32xf32, #tpu.memory_space<vmem>>, vector<1x32xf32>
    %cst_34 = arith.constant dense<0.000000e+00> : vector<8x32xf32>
    %83 = tpu.matmul %78, %79, %cst_34 {dimension_numbers = #tpu.dot_dimension_numbers<[1], [0], [0], [1], [0, 0, 1, 1], [], []>} : vector<8x32xf32>, vector<32x32xf32>, vector<8x32xf32> -> vector<8x32xf32>
    %84 = vector.broadcast %80 : vector<1x32xf32> to vector<8x32xf32>
    %85 = arith.addf %83, %84 : vector<8x32xf32>
    %86 = arith.addf %85, %1 : vector<8x32xf32>
    %cst_35 = arith.constant dense<0.000000e+00> : vector<8xf32>
    %87 = vector.multi_reduction <add>, %86, %cst_35 [1] : vector<8x32xf32> to vector<8xf32>
    %88 = vector.shape_cast %87 : vector<8xf32> to vector<8x1xf32>
    %cst_36 = arith.constant 3.200000e+01 : f32
    %89 = vector.broadcast %cst_36 : f32 to vector<8x1xf32>
    %90 = arith.divf %88, %89 : vector<8x1xf32>
    %91 = vector.broadcast %90 : vector<8x1xf32> to vector<8x32xf32>
    %92 = arith.subf %86, %91 : vector<8x32xf32>
    %93 = arith.mulf %92, %92 : vector<8x32xf32>
    %cst_37 = arith.constant dense<0.000000e+00> : vector<8xf32>
    %94 = vector.multi_reduction <add>, %93, %cst_37 [1] : vector<8x32xf32> to vector<8xf32>
    %95 = vector.shape_cast %94 : vector<8xf32> to vector<8x1xf32>
    %cst_38 = arith.constant 3.200000e+01 : f32
    %96 = vector.broadcast %cst_38 : f32 to vector<8x1xf32>
    %97 = arith.divf %95, %96 : vector<8x1xf32>
    %98 = vector.broadcast %90 : vector<8x1xf32> to vector<8x32xf32>
    %99 = arith.subf %86, %98 : vector<8x32xf32>
    %cst_39 = arith.constant 9.99999974E-6 : f32
    %100 = vector.broadcast %cst_39 : f32 to vector<8x1xf32>
    %101 = arith.addf %97, %100 : vector<8x1xf32>
    %102 = math.rsqrt %101 : vector<8x1xf32>
    %103 = vector.broadcast %102 : vector<8x1xf32> to vector<8x32xf32>
    %104 = arith.mulf %99, %103 : vector<8x32xf32>
    %105 = vector.broadcast %81 : vector<1x32xf32> to vector<8x32xf32>
    %106 = arith.mulf %104, %105 : vector<8x32xf32>
    %107 = vector.broadcast %82 : vector<1x32xf32> to vector<8x32xf32>
    %108 = arith.addf %106, %107 : vector<8x32xf32>
    %c0_40 = arith.constant 0 : index
    %c0_41 = arith.constant 0 : index
    %c0_42 = arith.constant 0 : index
    %109 = vector.load %arg8[%c0_40, %c0_41, %c0_42] : memref<1x8x32xf32, #tpu.memory_space<vmem>>, vector<1x8x32xf32>
    %110 = vector.shape_cast %109 : vector<1x8x32xf32> to vector<8x32xf32>
    %111 = vector.shape_cast %108 : vector<8x32xf32> to vector<1x8x32xf32>
    tpu.vector_store %arg8[%c0_40, %c0_41, %c0_42], %111 {strides = array<i32>} : memref<1x8x32xf32, #tpu.memory_space<vmem>>, vector<1x8x32xf32>,
    return
  }
  func.func @transform_0(%arg0: i32) -> (i32, i32, i32) {
    %c0_i32 = arith.constant 0 : i32
    %c0_i32_0 = arith.constant 0 : i32
    %c0_i32_1 = arith.constant 0 : i32
    return %arg0, %c0_i32, %c0_i32_0 : i32, i32, i32
  }
  func.func @transform_1(%arg0: i32) -> (i32, i32) {
    %c0_i32 = arith.constant 0 : i32
    %c0_i32_0 = arith.constant 0 : i32
    %c0_i32_1 = arith.constant 0 : i32
    return %c0_i32, %c0_i32_0 : i32, i32
  }
  func.func @transform_2(%arg0: i32) -> (i32, i32) {
    %c0_i32 = arith.constant 0 : i32
    %c0_i32_0 = arith.constant 0 : i32
    %c0_i32_1 = arith.constant 0 : i32
    return %c0_i32, %c0_i32_0 : i32, i32
  }
  func.func @transform_3(%arg0: i32) -> (i32, i32) {
    %c0_i32 = arith.constant 0 : i32
    %c0_i32_0 = arith.constant 0 : i32
    %c0_i32_1 = arith.constant 0 : i32
    return %c0_i32, %c0_i32_0 : i32, i32
  }
  func.func @transform_4(%arg0: i32) -> (i32, i32) {
    %c0_i32 = arith.constant 0 : i32
    %c0_i32_0 = arith.constant 0 : i32
    %c0_i32_1 = arith.constant 0 : i32
    return %c0_i32, %c0_i32_0 : i32, i32
  }
  func.func @transform_5(%arg0: i32) -> (i32, i32) {
    %c0_i32 = arith.constant 0 : i32
    %c0_i32_0 = arith.constant 0 : i32
    %c0_i32_1 = arith.constant 0 : i32
    return %c0_i32, %c0_i32_0 : i32, i32
  }
  func.func @transform_6(%arg0: i32) -> (i32, i32) {
    %c0_i32 = arith.constant 0 : i32
    %c0_i32_0 = arith.constant 0 : i32
    %c0_i32_1 = arith.constant 0 : i32
    return %c0_i32, %c0_i32_0 : i32, i32
  }
  func.func @transform_7(%arg0: i32) -> (i32, i32, i32) {
    %c0_i32 = arith.constant 0 : i32
    %c0_i32_0 = arith.constant 0 : i32
    %c0_i32_1 = arith.constant 0 : i32
    return %arg0, %c0_i32, %c0_i32_0 : i32, i32, i32
  }
}

module attributes {stable_mosaic.version = 11 : i64} {
  func.func @_ffn_kernel(%arg0: i32, %arg1: i32, %arg2: memref<16x32xf32, #tpu.memory_space<vmem>>, %arg3: memref<32x512xf32, #tpu.memory_space<vmem>>, %arg4: memref<1x512xf32, #tpu.memory_space<vmem>>, %arg5: memref<512x32xf32, #tpu.memory_space<vmem>>, %arg6: memref<1x32xf32, #tpu.memory_space<vmem>>, %arg7: memref<1x32xf32, #tpu.memory_space<vmem>>, %arg8: memref<1x32xf32, #tpu.memory_space<vmem>>, %arg9: memref<16x32xf32, #tpu.memory_space<vmem>>, %arg10: memref<16x32xf32, #tpu.memory_space<vmem>>) attributes {dimension_semantics = [#tpu.dimension_semantics<parallel>, #tpu.dimension_semantics<arbitrary>], iteration_bounds = array<i64: 1, 4>, scalar_prefetch = 0 : i64, scratch_operands = 1 : i64, tpu.core_type = #tpu.core_type<tc>, window_params = [{transform_indices = @transform_0, window_bounds = array<i64: 16, 32>}, {transform_indices = @transform_1, window_bounds = array<i64: 32, 512>}, {transform_indices = @transform_2, window_bounds = array<i64: 1, 512>}, {transform_indices = @transform_3, window_bounds = array<i64: 512, 32>}, {pipeline_mode = #tpu.pipeline_mode<synchronous>, transform_indices = @transform_4, window_bounds = array<i64: 1, 32>}, {pipeline_mode = #tpu.pipeline_mode<synchronous>, transform_indices = @transform_5, window_bounds = array<i64: 1, 32>}, {pipeline_mode = #tpu.pipeline_mode<synchronous>, transform_indices = @transform_6, window_bounds = array<i64: 1, 32>}, {transform_indices = @transform_7, window_bounds = array<i64: 16, 32>}]} {
    %c0_i32 = arith.constant 0 : i32
    %0 = arith.cmpi eq, %arg1, %c0_i32 : i32
    %1 = arith.extui %0 : i1 to i32
    %c0_i32_0 = arith.constant 0 : i32
    %2 = arith.cmpi ne, %1, %c0_i32_0 : i32
    scf.if %2 {
      %cst_15 = arith.constant 0.000000e+00 : f32
      %19 = vector.broadcast %cst_15 : f32 to vector<16x32xf32>
      %c0_16 = arith.constant 0 : index
      %c0_17 = arith.constant 0 : index
      %20 = vector.load %arg10[%c0_16, %c0_17] : memref<16x32xf32, #tpu.memory_space<vmem>>, vector<16x32xf32>
      tpu.vector_store %arg10[%c0_16, %c0_17], %19 {strides = array<i32>} : memref<16x32xf32, #tpu.memory_space<vmem>>, vector<16x32xf32>,
    } else {
    }
    %c0 = arith.constant 0 : index
    %c0_1 = arith.constant 0 : index
    %3 = vector.load %arg2[%c0, %c0_1] : memref<16x32xf32, #tpu.memory_space<vmem>>, vector<16x32xf32>
    %c0_2 = arith.constant 0 : index
    %c0_3 = arith.constant 0 : index
    %4 = vector.load %arg3[%c0_2, %c0_3] : memref<32x512xf32, #tpu.memory_space<vmem>>, vector<32x512xf32>
    %cst = arith.constant dense<0.000000e+00> : vector<16x512xf32>
    %5 = tpu.matmul %3, %4, %cst {dimension_numbers = #tpu.dot_dimension_numbers<[1], [0], [0], [1], [0, 0, 1, 1], [], []>} : vector<16x32xf32>, vector<32x512xf32>, vector<16x512xf32> -> vector<16x512xf32>
    %c0_4 = arith.constant 0 : index
    %c0_5 = arith.constant 0 : index
    %6 = vector.load %arg4[%c0_4, %c0_5] : memref<1x512xf32, #tpu.memory_space<vmem>>, vector<1x512xf32>
    %7 = vector.broadcast %6 : vector<1x512xf32> to vector<16x512xf32>
    %8 = arith.addf %5, %7 : vector<16x512xf32>
    %cst_6 = arith.constant 0.000000e+00 : f32
    %9 = vector.broadcast %cst_6 : f32 to vector<16x512xf32>
    %10 = arith.maximumf %8, %9 : vector<16x512xf32>
    %c0_7 = arith.constant 0 : index
    %c0_8 = arith.constant 0 : index
    %11 = vector.load %arg10[%c0_7, %c0_8] : memref<16x32xf32, #tpu.memory_space<vmem>>, vector<16x32xf32>
    %c0_9 = arith.constant 0 : index
    %c0_10 = arith.constant 0 : index
    %12 = vector.load %arg5[%c0_9, %c0_10] : memref<512x32xf32, #tpu.memory_space<vmem>>, vector<512x32xf32>
    %cst_11 = arith.constant dense<0.000000e+00> : vector<16x32xf32>
    %13 = tpu.matmul %10, %12, %cst_11 {dimension_numbers = #tpu.dot_dimension_numbers<[1], [0], [0], [1], [0, 0, 1, 1], [], []>} : vector<16x512xf32>, vector<512x32xf32>, vector<16x32xf32> -> vector<16x32xf32>
    %14 = arith.addf %11, %13 : vector<16x32xf32>
    %c0_12 = arith.constant 0 : index
    %c0_13 = arith.constant 0 : index
    %15 = vector.load %arg10[%c0_12, %c0_13] : memref<16x32xf32, #tpu.memory_space<vmem>>, vector<16x32xf32>
    tpu.vector_store %arg10[%c0_12, %c0_13], %14 {strides = array<i32>} : memref<16x32xf32, #tpu.memory_space<vmem>>, vector<16x32xf32>,
    %c3_i32 = arith.constant 3 : i32
    %16 = arith.cmpi eq, %arg1, %c3_i32 : i32
    %17 = arith.extui %16 : i1 to i32
    %c0_i32_14 = arith.constant 0 : i32
    %18 = arith.cmpi ne, %17, %c0_i32_14 : i32
    scf.if %18 {
      %c0_15 = arith.constant 0 : index
      %c0_16 = arith.constant 0 : index
      %19 = vector.load %arg10[%c0_15, %c0_16] : memref<16x32xf32, #tpu.memory_space<vmem>>, vector<16x32xf32>
      %c0_17 = arith.constant 0 : index
      %c0_18 = arith.constant 0 : index
      %20 = vector.load %arg6[%c0_17, %c0_18] : memref<1x32xf32, #tpu.memory_space<vmem>>, vector<1x32xf32>
      %21 = vector.broadcast %20 : vector<1x32xf32> to vector<16x32xf32>
      %22 = arith.addf %19, %21 : vector<16x32xf32>
      %c0_19 = arith.constant 0 : index
      %c0_20 = arith.constant 0 : index
      %23 = vector.load %arg2[%c0_19, %c0_20] : memref<16x32xf32, #tpu.memory_space<vmem>>, vector<16x32xf32>
      %24 = arith.addf %22, %23 : vector<16x32xf32>
      %cst_21 = arith.constant dense<0.000000e+00> : vector<16xf32>
      %25 = vector.multi_reduction <add>, %24, %cst_21 [1] : vector<16x32xf32> to vector<16xf32>
      %26 = vector.shape_cast %25 : vector<16xf32> to vector<16x1xf32>
      %cst_22 = arith.constant 3.200000e+01 : f32
      %27 = vector.broadcast %cst_22 : f32 to vector<16x1xf32>
      %28 = arith.divf %26, %27 : vector<16x1xf32>
      %29 = vector.broadcast %28 : vector<16x1xf32> to vector<16x32xf32>
      %30 = arith.subf %24, %29 : vector<16x32xf32>
      %31 = arith.mulf %30, %30 : vector<16x32xf32>
      %cst_23 = arith.constant dense<0.000000e+00> : vector<16xf32>
      %32 = vector.multi_reduction <add>, %31, %cst_23 [1] : vector<16x32xf32> to vector<16xf32>
      %33 = vector.shape_cast %32 : vector<16xf32> to vector<16x1xf32>
      %cst_24 = arith.constant 3.200000e+01 : f32
      %34 = vector.broadcast %cst_24 : f32 to vector<16x1xf32>
      %35 = arith.divf %33, %34 : vector<16x1xf32>
      %36 = vector.broadcast %28 : vector<16x1xf32> to vector<16x32xf32>
      %37 = arith.subf %24, %36 : vector<16x32xf32>
      %cst_25 = arith.constant 9.99999974E-6 : f32
      %38 = vector.broadcast %cst_25 : f32 to vector<16x1xf32>
      %39 = arith.addf %35, %38 : vector<16x1xf32>
      %40 = math.rsqrt %39 : vector<16x1xf32>
      %41 = vector.broadcast %40 : vector<16x1xf32> to vector<16x32xf32>
      %42 = arith.mulf %37, %41 : vector<16x32xf32>
      %c0_26 = arith.constant 0 : index
      %c0_27 = arith.constant 0 : index
      %43 = vector.load %arg7[%c0_26, %c0_27] : memref<1x32xf32, #tpu.memory_space<vmem>>, vector<1x32xf32>
      %44 = vector.broadcast %43 : vector<1x32xf32> to vector<16x32xf32>
      %45 = arith.mulf %42, %44 : vector<16x32xf32>
      %c0_28 = arith.constant 0 : index
      %c0_29 = arith.constant 0 : index
      %46 = vector.load %arg8[%c0_28, %c0_29] : memref<1x32xf32, #tpu.memory_space<vmem>>, vector<1x32xf32>
      %47 = vector.broadcast %46 : vector<1x32xf32> to vector<16x32xf32>
      %48 = arith.addf %45, %47 : vector<16x32xf32>
      %c0_30 = arith.constant 0 : index
      %c0_31 = arith.constant 0 : index
      %49 = vector.load %arg9[%c0_30, %c0_31] : memref<16x32xf32, #tpu.memory_space<vmem>>, vector<16x32xf32>
      tpu.vector_store %arg9[%c0_30, %c0_31], %48 {strides = array<i32>} : memref<16x32xf32, #tpu.memory_space<vmem>>, vector<16x32xf32>,
    } else {
    }
    return
  }
  func.func @transform_0(%arg0: i32, %arg1: i32) -> (i32, i32) {
    %c0_i32 = arith.constant 0 : i32
    %c0_i32_0 = arith.constant 0 : i32
    return %arg0, %c0_i32 : i32, i32
  }
  func.func @transform_1(%arg0: i32, %arg1: i32) -> (i32, i32) {
    %c0_i32 = arith.constant 0 : i32
    %c0_i32_0 = arith.constant 0 : i32
    return %c0_i32, %arg1 : i32, i32
  }
  func.func @transform_2(%arg0: i32, %arg1: i32) -> (i32, i32) {
    %c0_i32 = arith.constant 0 : i32
    %c0_i32_0 = arith.constant 0 : i32
    return %c0_i32, %arg1 : i32, i32
  }
  func.func @transform_3(%arg0: i32, %arg1: i32) -> (i32, i32) {
    %c0_i32 = arith.constant 0 : i32
    %c0_i32_0 = arith.constant 0 : i32
    return %arg1, %c0_i32 : i32, i32
  }
  func.func @transform_4(%arg0: i32, %arg1: i32) -> (i32, i32) {
    %c0_i32 = arith.constant 0 : i32
    %c0_i32_0 = arith.constant 0 : i32
    %c0_i32_1 = arith.constant 0 : i32
    return %c0_i32, %c0_i32_0 : i32, i32
  }
  func.func @transform_5(%arg0: i32, %arg1: i32) -> (i32, i32) {
    %c0_i32 = arith.constant 0 : i32
    %c0_i32_0 = arith.constant 0 : i32
    %c0_i32_1 = arith.constant 0 : i32
    return %c0_i32, %c0_i32_0 : i32, i32
  }
  func.func @transform_6(%arg0: i32, %arg1: i32) -> (i32, i32) {
    %c0_i32 = arith.constant 0 : i32
    %c0_i32_0 = arith.constant 0 : i32
    %c0_i32_1 = arith.constant 0 : i32
    return %c0_i32, %c0_i32_0 : i32, i32
  }
  func.func @transform_7(%arg0: i32, %arg1: i32) -> (i32, i32) {
    %c0_i32 = arith.constant 0 : i32
    %c0_i32_0 = arith.constant 0 : i32
    return %arg0, %c0_i32 : i32, i32
  }
}

module attributes {stable_mosaic.version = 11 : i64} {
  func.func @_ln_kernel(%arg0: i32, %arg1: memref<16x32xf32, #tpu.memory_space<vmem>>, %arg2: memref<1x32xf32, #tpu.memory_space<vmem>>, %arg3: memref<1x32xf32, #tpu.memory_space<vmem>>, %arg4: memref<16x32xf32, #tpu.memory_space<vmem>>) attributes {dimension_semantics = [#tpu.dimension_semantics<parallel>], iteration_bounds = array<i64: 1>, scalar_prefetch = 0 : i64, scratch_operands = 0 : i64, tpu.core_type = #tpu.core_type<tc>, window_params = [{transform_indices = @transform_0, window_bounds = array<i64: 16, 32>}, {pipeline_mode = #tpu.pipeline_mode<synchronous>, transform_indices = @transform_1, window_bounds = array<i64: 1, 32>}, {pipeline_mode = #tpu.pipeline_mode<synchronous>, transform_indices = @transform_2, window_bounds = array<i64: 1, 32>}, {transform_indices = @transform_3, window_bounds = array<i64: 16, 32>}]} {
    %c0 = arith.constant 0 : index
    %c0_0 = arith.constant 0 : index
    %0 = vector.load %arg1[%c0, %c0_0] : memref<16x32xf32, #tpu.memory_space<vmem>>, vector<16x32xf32>
    %cst = arith.constant dense<0.000000e+00> : vector<16xf32>
    %1 = vector.multi_reduction <add>, %0, %cst [1] : vector<16x32xf32> to vector<16xf32>
    %2 = vector.shape_cast %1 : vector<16xf32> to vector<16x1xf32>
    %cst_1 = arith.constant 3.200000e+01 : f32
    %3 = vector.broadcast %cst_1 : f32 to vector<16x1xf32>
    %4 = arith.divf %2, %3 : vector<16x1xf32>
    %5 = vector.broadcast %4 : vector<16x1xf32> to vector<16x32xf32>
    %6 = arith.subf %0, %5 : vector<16x32xf32>
    %7 = arith.mulf %6, %6 : vector<16x32xf32>
    %cst_2 = arith.constant dense<0.000000e+00> : vector<16xf32>
    %8 = vector.multi_reduction <add>, %7, %cst_2 [1] : vector<16x32xf32> to vector<16xf32>
    %9 = vector.shape_cast %8 : vector<16xf32> to vector<16x1xf32>
    %cst_3 = arith.constant 3.200000e+01 : f32
    %10 = vector.broadcast %cst_3 : f32 to vector<16x1xf32>
    %11 = arith.divf %9, %10 : vector<16x1xf32>
    %12 = vector.broadcast %4 : vector<16x1xf32> to vector<16x32xf32>
    %13 = arith.subf %0, %12 : vector<16x32xf32>
    %cst_4 = arith.constant 9.99999974E-6 : f32
    %14 = vector.broadcast %cst_4 : f32 to vector<16x1xf32>
    %15 = arith.addf %11, %14 : vector<16x1xf32>
    %16 = math.rsqrt %15 : vector<16x1xf32>
    %17 = vector.broadcast %16 : vector<16x1xf32> to vector<16x32xf32>
    %18 = arith.mulf %13, %17 : vector<16x32xf32>
    %c0_5 = arith.constant 0 : index
    %c0_6 = arith.constant 0 : index
    %19 = vector.load %arg2[%c0_5, %c0_6] : memref<1x32xf32, #tpu.memory_space<vmem>>, vector<1x32xf32>
    %20 = vector.broadcast %19 : vector<1x32xf32> to vector<16x32xf32>
    %21 = arith.mulf %18, %20 : vector<16x32xf32>
    %c0_7 = arith.constant 0 : index
    %c0_8 = arith.constant 0 : index
    %22 = vector.load %arg3[%c0_7, %c0_8] : memref<1x32xf32, #tpu.memory_space<vmem>>, vector<1x32xf32>
    %23 = vector.broadcast %22 : vector<1x32xf32> to vector<16x32xf32>
    %24 = arith.addf %21, %23 : vector<16x32xf32>
    %c0_9 = arith.constant 0 : index
    %c0_10 = arith.constant 0 : index
    %25 = vector.load %arg4[%c0_9, %c0_10] : memref<16x32xf32, #tpu.memory_space<vmem>>, vector<16x32xf32>
    tpu.vector_store %arg4[%c0_9, %c0_10], %24 {strides = array<i32>} : memref<16x32xf32, #tpu.memory_space<vmem>>, vector<16x32xf32>,
    return
  }
  func.func @transform_0(%arg0: i32) -> (i32, i32) {
    %c0_i32 = arith.constant 0 : i32
    %c0_i32_0 = arith.constant 0 : i32
    return %arg0, %c0_i32 : i32, i32
  }
  func.func @transform_1(%arg0: i32) -> (i32, i32) {
    %c0_i32 = arith.constant 0 : i32
    %c0_i32_0 = arith.constant 0 : i32
    %c0_i32_1 = arith.constant 0 : i32
    return %c0_i32, %c0_i32_0 : i32, i32
  }
  func.func @transform_2(%arg0: i32) -> (i32, i32) {
    %c0_i32 = arith.constant 0 : i32
    %c0_i32_0 = arith.constant 0 : i32
    %c0_i32_1 = arith.constant 0 : i32
    return %c0_i32, %c0_i32_0 : i32, i32
  }
  func.func @transform_3(%arg0: i32) -> (i32, i32) {
    %c0_i32 = arith.constant 0 : i32
    %c0_i32_0 = arith.constant 0 : i32
    return %arg0, %c0_i32 : i32, i32
  }
}

module attributes {stable_mosaic.version = 11 : i64} {
  func.func @_self_attn_kernel(%arg0: i32, %arg1: memref<1x8x32xf32, #tpu.memory_space<vmem>>, %arg2: memref<32x96xf32, #tpu.memory_space<vmem>>, %arg3: memref<1x96xf32, #tpu.memory_space<vmem>>, %arg4: memref<32x32xf32, #tpu.memory_space<vmem>>, %arg5: memref<1x32xf32, #tpu.memory_space<vmem>>, %arg6: memref<1x32xf32, #tpu.memory_space<vmem>>, %arg7: memref<1x32xf32, #tpu.memory_space<vmem>>, %arg8: memref<1x8x32xf32, #tpu.memory_space<vmem>>) attributes {dimension_semantics = [#tpu.dimension_semantics<parallel>], iteration_bounds = array<i64: 2>, scalar_prefetch = 0 : i64, scratch_operands = 0 : i64, tpu.core_type = #tpu.core_type<tc>, window_params = [{transform_indices = @transform_0, window_bounds = array<i64: 1, 8, 32>}, {pipeline_mode = #tpu.pipeline_mode<synchronous>, transform_indices = @transform_1, window_bounds = array<i64: 32, 96>}, {pipeline_mode = #tpu.pipeline_mode<synchronous>, transform_indices = @transform_2, window_bounds = array<i64: 1, 96>}, {pipeline_mode = #tpu.pipeline_mode<synchronous>, transform_indices = @transform_3, window_bounds = array<i64: 32, 32>}, {pipeline_mode = #tpu.pipeline_mode<synchronous>, transform_indices = @transform_4, window_bounds = array<i64: 1, 32>}, {pipeline_mode = #tpu.pipeline_mode<synchronous>, transform_indices = @transform_5, window_bounds = array<i64: 1, 32>}, {pipeline_mode = #tpu.pipeline_mode<synchronous>, transform_indices = @transform_6, window_bounds = array<i64: 1, 32>}, {transform_indices = @transform_7, window_bounds = array<i64: 1, 8, 32>}]} {
    %c0 = arith.constant 0 : index
    %c0_0 = arith.constant 0 : index
    %c0_1 = arith.constant 0 : index
    %0 = vector.load %arg1[%c0, %c0_0, %c0_1] : memref<1x8x32xf32, #tpu.memory_space<vmem>>, vector<1x8x32xf32>
    %1 = vector.shape_cast %0 : vector<1x8x32xf32> to vector<8x32xf32>
    %c0_2 = arith.constant 0 : index
    %c0_3 = arith.constant 0 : index
    %2 = vector.load %arg2[%c0_2, %c0_3] : memref<32x96xf32, #tpu.memory_space<vmem>>, vector<32x96xf32>
    %cst = arith.constant dense<0.000000e+00> : vector<8x96xf32>
    %3 = tpu.matmul %1, %2, %cst {dimension_numbers = #tpu.dot_dimension_numbers<[1], [0], [0], [1], [0, 0, 1, 1], [], []>} : vector<8x32xf32>, vector<32x96xf32>, vector<8x96xf32> -> vector<8x96xf32>
    %c0_4 = arith.constant 0 : index
    %c0_5 = arith.constant 0 : index
    %4 = vector.load %arg3[%c0_4, %c0_5] : memref<1x96xf32, #tpu.memory_space<vmem>>, vector<1x96xf32>
    %5 = vector.broadcast %4 : vector<1x96xf32> to vector<8x96xf32>
    %6 = arith.addf %3, %5 : vector<8x96xf32>
    %7 = vector.extract_strided_slice %6 {offsets = [0, 0], sizes = [8, 32], strides = [1, 1]} : vector<8x96xf32> to vector<8x32xf32>
    %8 = vector.extract_strided_slice %6 {offsets = [0, 32], sizes = [8, 32], strides = [1, 1]} : vector<8x96xf32> to vector<8x32xf32>
    %9 = vector.extract_strided_slice %6 {offsets = [0, 64], sizes = [8, 32], strides = [1, 1]} : vector<8x96xf32> to vector<8x32xf32>
    %10 = tpu.iota {dimensions = array<i32: 0>} : vector<8x8xi32>
    %11 = tpu.iota {dimensions = array<i32: 1>} : vector<8x8xi32>
    %12 = arith.cmpi sgt, %11, %10 : vector<8x8xi32>
    %cst_6 = arith.constant -1.000000e+30 : f32
    %cst_7 = arith.constant 0.000000e+00 : f32
    %13 = vector.broadcast %cst_6 : f32 to vector<8x8xf32>
    %14 = vector.broadcast %cst_7 : f32 to vector<8x8xf32>
    %15 = arith.select %12, %13, %14 : vector<8x8xi1>, vector<8x8xf32>
    %16 = vector.extract_strided_slice %7 {offsets = [0, 0], sizes = [8, 8], strides = [1, 1]} : vector<8x32xf32> to vector<8x8xf32>
    %17 = vector.extract_strided_slice %8 {offsets = [0, 0], sizes = [8, 8], strides = [1, 1]} : vector<8x32xf32> to vector<8x8xf32>
    %cst_8 = arith.constant dense<0.000000e+00> : vector<8x8xf32>
    %18 = tpu.matmul %16, %17, %cst_8 {dimension_numbers = #tpu.dot_dimension_numbers<[1], [1], [0], [0], [0, 0, 1, 0], [], []>} : vector<8x8xf32>, vector<8x8xf32>, vector<8x8xf32> -> vector<8x8xf32>
    %cst_9 = arith.constant 0.353553385 : f32
    %19 = vector.broadcast %cst_9 : f32 to vector<8x8xf32>
    %20 = arith.mulf %18, %19 : vector<8x8xf32>
    %21 = arith.addf %20, %15 : vector<8x8xf32>
    %cst_10 = arith.constant dense<0xFF800000> : vector<8xf32>
    %22 = vector.multi_reduction <maximumf>, %21, %cst_10 [1] : vector<8x8xf32> to vector<8xf32>
    %23 = vector.shape_cast %22 : vector<8xf32> to vector<8x1xf32>
    %24 = vector.broadcast %23 : vector<8x1xf32> to vector<8x8xf32>
    %25 = arith.subf %21, %24 : vector<8x8xf32>
    %26 = math.exp %25 : vector<8x8xf32>
    %cst_11 = arith.constant dense<0.000000e+00> : vector<8xf32>
    %27 = vector.multi_reduction <add>, %26, %cst_11 [1] : vector<8x8xf32> to vector<8xf32>
    %28 = vector.shape_cast %27 : vector<8xf32> to vector<8x1xf32>
    %29 = tpu.reciprocal %28 {approx = true} : vector<8x1xf32> -> vector<8x1xf32>
    %30 = vector.broadcast %29 : vector<8x1xf32> to vector<8x8xf32>
    %31 = arith.mulf %26, %30 : vector<8x8xf32>
    %32 = vector.extract_strided_slice %9 {offsets = [0, 0], sizes = [8, 8], strides = [1, 1]} : vector<8x32xf32> to vector<8x8xf32>
    %cst_12 = arith.constant dense<0.000000e+00> : vector<8x8xf32>
    %33 = tpu.matmul %31, %32, %cst_12 {dimension_numbers = #tpu.dot_dimension_numbers<[1], [0], [0], [1], [0, 0, 1, 1], [], []>} : vector<8x8xf32>, vector<8x8xf32>, vector<8x8xf32> -> vector<8x8xf32>
    %34 = vector.extract_strided_slice %7 {offsets = [0, 8], sizes = [8, 8], strides = [1, 1]} : vector<8x32xf32> to vector<8x8xf32>
    %35 = vector.extract_strided_slice %8 {offsets = [0, 8], sizes = [8, 8], strides = [1, 1]} : vector<8x32xf32> to vector<8x8xf32>
    %cst_13 = arith.constant dense<0.000000e+00> : vector<8x8xf32>
    %36 = tpu.matmul %34, %35, %cst_13 {dimension_numbers = #tpu.dot_dimension_numbers<[1], [1], [0], [0], [0, 0, 1, 0], [], []>} : vector<8x8xf32>, vector<8x8xf32>, vector<8x8xf32> -> vector<8x8xf32>
    %cst_14 = arith.constant 0.353553385 : f32
    %37 = vector.broadcast %cst_14 : f32 to vector<8x8xf32>
    %38 = arith.mulf %36, %37 : vector<8x8xf32>
    %39 = arith.addf %38, %15 : vector<8x8xf32>
    %cst_15 = arith.constant dense<0xFF800000> : vector<8xf32>
    %40 = vector.multi_reduction <maximumf>, %39, %cst_15 [1] : vector<8x8xf32> to vector<8xf32>
    %41 = vector.shape_cast %40 : vector<8xf32> to vector<8x1xf32>
    %42 = vector.broadcast %41 : vector<8x1xf32> to vector<8x8xf32>
    %43 = arith.subf %39, %42 : vector<8x8xf32>
    %44 = math.exp %43 : vector<8x8xf32>
    %cst_16 = arith.constant dense<0.000000e+00> : vector<8xf32>
    %45 = vector.multi_reduction <add>, %44, %cst_16 [1] : vector<8x8xf32> to vector<8xf32>
    %46 = vector.shape_cast %45 : vector<8xf32> to vector<8x1xf32>
    %47 = tpu.reciprocal %46 {approx = true} : vector<8x1xf32> -> vector<8x1xf32>
    %48 = vector.broadcast %47 : vector<8x1xf32> to vector<8x8xf32>
    %49 = arith.mulf %44, %48 : vector<8x8xf32>
    %50 = vector.extract_strided_slice %9 {offsets = [0, 8], sizes = [8, 8], strides = [1, 1]} : vector<8x32xf32> to vector<8x8xf32>
    %cst_17 = arith.constant dense<0.000000e+00> : vector<8x8xf32>
    %51 = tpu.matmul %49, %50, %cst_17 {dimension_numbers = #tpu.dot_dimension_numbers<[1], [0], [0], [1], [0, 0, 1, 1], [], []>} : vector<8x8xf32>, vector<8x8xf32>, vector<8x8xf32> -> vector<8x8xf32>
    %52 = vector.extract_strided_slice %7 {offsets = [0, 16], sizes = [8, 8], strides = [1, 1]} : vector<8x32xf32> to vector<8x8xf32>
    %53 = vector.extract_strided_slice %8 {offsets = [0, 16], sizes = [8, 8], strides = [1, 1]} : vector<8x32xf32> to vector<8x8xf32>
    %cst_18 = arith.constant dense<0.000000e+00> : vector<8x8xf32>
    %54 = tpu.matmul %52, %53, %cst_18 {dimension_numbers = #tpu.dot_dimension_numbers<[1], [1], [0], [0], [0, 0, 1, 0], [], []>} : vector<8x8xf32>, vector<8x8xf32>, vector<8x8xf32> -> vector<8x8xf32>
    %cst_19 = arith.constant 0.353553385 : f32
    %55 = vector.broadcast %cst_19 : f32 to vector<8x8xf32>
    %56 = arith.mulf %54, %55 : vector<8x8xf32>
    %57 = arith.addf %56, %15 : vector<8x8xf32>
    %cst_20 = arith.constant dense<0xFF800000> : vector<8xf32>
    %58 = vector.multi_reduction <maximumf>, %57, %cst_20 [1] : vector<8x8xf32> to vector<8xf32>
    %59 = vector.shape_cast %58 : vector<8xf32> to vector<8x1xf32>
    %60 = vector.broadcast %59 : vector<8x1xf32> to vector<8x8xf32>
    %61 = arith.subf %57, %60 : vector<8x8xf32>
    %62 = math.exp %61 : vector<8x8xf32>
    %cst_21 = arith.constant dense<0.000000e+00> : vector<8xf32>
    %63 = vector.multi_reduction <add>, %62, %cst_21 [1] : vector<8x8xf32> to vector<8xf32>
    %64 = vector.shape_cast %63 : vector<8xf32> to vector<8x1xf32>
    %65 = tpu.reciprocal %64 {approx = true} : vector<8x1xf32> -> vector<8x1xf32>
    %66 = vector.broadcast %65 : vector<8x1xf32> to vector<8x8xf32>
    %67 = arith.mulf %62, %66 : vector<8x8xf32>
    %68 = vector.extract_strided_slice %9 {offsets = [0, 16], sizes = [8, 8], strides = [1, 1]} : vector<8x32xf32> to vector<8x8xf32>
    %cst_22 = arith.constant dense<0.000000e+00> : vector<8x8xf32>
    %69 = tpu.matmul %67, %68, %cst_22 {dimension_numbers = #tpu.dot_dimension_numbers<[1], [0], [0], [1], [0, 0, 1, 1], [], []>} : vector<8x8xf32>, vector<8x8xf32>, vector<8x8xf32> -> vector<8x8xf32>
    %70 = vector.extract_strided_slice %7 {offsets = [0, 24], sizes = [8, 8], strides = [1, 1]} : vector<8x32xf32> to vector<8x8xf32>
    %71 = vector.extract_strided_slice %8 {offsets = [0, 24], sizes = [8, 8], strides = [1, 1]} : vector<8x32xf32> to vector<8x8xf32>
    %cst_23 = arith.constant dense<0.000000e+00> : vector<8x8xf32>
    %72 = tpu.matmul %70, %71, %cst_23 {dimension_numbers = #tpu.dot_dimension_numbers<[1], [1], [0], [0], [0, 0, 1, 0], [], []>} : vector<8x8xf32>, vector<8x8xf32>, vector<8x8xf32> -> vector<8x8xf32>
    %cst_24 = arith.constant 0.353553385 : f32
    %73 = vector.broadcast %cst_24 : f32 to vector<8x8xf32>
    %74 = arith.mulf %72, %73 : vector<8x8xf32>
    %75 = arith.addf %74, %15 : vector<8x8xf32>
    %cst_25 = arith.constant dense<0xFF800000> : vector<8xf32>
    %76 = vector.multi_reduction <maximumf>, %75, %cst_25 [1] : vector<8x8xf32> to vector<8xf32>
    %77 = vector.shape_cast %76 : vector<8xf32> to vector<8x1xf32>
    %78 = vector.broadcast %77 : vector<8x1xf32> to vector<8x8xf32>
    %79 = arith.subf %75, %78 : vector<8x8xf32>
    %80 = math.exp %79 : vector<8x8xf32>
    %cst_26 = arith.constant dense<0.000000e+00> : vector<8xf32>
    %81 = vector.multi_reduction <add>, %80, %cst_26 [1] : vector<8x8xf32> to vector<8xf32>
    %82 = vector.shape_cast %81 : vector<8xf32> to vector<8x1xf32>
    %83 = tpu.reciprocal %82 {approx = true} : vector<8x1xf32> -> vector<8x1xf32>
    %84 = vector.broadcast %83 : vector<8x1xf32> to vector<8x8xf32>
    %85 = arith.mulf %80, %84 : vector<8x8xf32>
    %86 = vector.extract_strided_slice %9 {offsets = [0, 24], sizes = [8, 8], strides = [1, 1]} : vector<8x32xf32> to vector<8x8xf32>
    %cst_27 = arith.constant dense<0.000000e+00> : vector<8x8xf32>
    %87 = tpu.matmul %85, %86, %cst_27 {dimension_numbers = #tpu.dot_dimension_numbers<[1], [0], [0], [1], [0, 0, 1, 1], [], []>} : vector<8x8xf32>, vector<8x8xf32>, vector<8x8xf32> -> vector<8x8xf32>
    %88 = tpu.concatenate %33, %51, %69, %87 in 1 : vector<8x8xf32>, vector<8x8xf32>, vector<8x8xf32>, vector<8x8xf32> -> vector<8x32xf32>
    %c0_28 = arith.constant 0 : index
    %c0_29 = arith.constant 0 : index
    %89 = vector.load %arg4[%c0_28, %c0_29] : memref<32x32xf32, #tpu.memory_space<vmem>>, vector<32x32xf32>
    %c0_30 = arith.constant 0 : index
    %c0_31 = arith.constant 0 : index
    %90 = vector.load %arg5[%c0_30, %c0_31] : memref<1x32xf32, #tpu.memory_space<vmem>>, vector<1x32xf32>
    %c0_32 = arith.constant 0 : index
    %c0_33 = arith.constant 0 : index
    %91 = vector.load %arg6[%c0_32, %c0_33] : memref<1x32xf32, #tpu.memory_space<vmem>>, vector<1x32xf32>
    %c0_34 = arith.constant 0 : index
    %c0_35 = arith.constant 0 : index
    %92 = vector.load %arg7[%c0_34, %c0_35] : memref<1x32xf32, #tpu.memory_space<vmem>>, vector<1x32xf32>
    %cst_36 = arith.constant dense<0.000000e+00> : vector<8x32xf32>
    %93 = tpu.matmul %88, %89, %cst_36 {dimension_numbers = #tpu.dot_dimension_numbers<[1], [0], [0], [1], [0, 0, 1, 1], [], []>} : vector<8x32xf32>, vector<32x32xf32>, vector<8x32xf32> -> vector<8x32xf32>
    %94 = vector.broadcast %90 : vector<1x32xf32> to vector<8x32xf32>
    %95 = arith.addf %93, %94 : vector<8x32xf32>
    %96 = arith.addf %95, %1 : vector<8x32xf32>
    %cst_37 = arith.constant dense<0.000000e+00> : vector<8xf32>
    %97 = vector.multi_reduction <add>, %96, %cst_37 [1] : vector<8x32xf32> to vector<8xf32>
    %98 = vector.shape_cast %97 : vector<8xf32> to vector<8x1xf32>
    %cst_38 = arith.constant 3.200000e+01 : f32
    %99 = vector.broadcast %cst_38 : f32 to vector<8x1xf32>
    %100 = arith.divf %98, %99 : vector<8x1xf32>
    %101 = vector.broadcast %100 : vector<8x1xf32> to vector<8x32xf32>
    %102 = arith.subf %96, %101 : vector<8x32xf32>
    %103 = arith.mulf %102, %102 : vector<8x32xf32>
    %cst_39 = arith.constant dense<0.000000e+00> : vector<8xf32>
    %104 = vector.multi_reduction <add>, %103, %cst_39 [1] : vector<8x32xf32> to vector<8xf32>
    %105 = vector.shape_cast %104 : vector<8xf32> to vector<8x1xf32>
    %cst_40 = arith.constant 3.200000e+01 : f32
    %106 = vector.broadcast %cst_40 : f32 to vector<8x1xf32>
    %107 = arith.divf %105, %106 : vector<8x1xf32>
    %108 = vector.broadcast %100 : vector<8x1xf32> to vector<8x32xf32>
    %109 = arith.subf %96, %108 : vector<8x32xf32>
    %cst_41 = arith.constant 9.99999974E-6 : f32
    %110 = vector.broadcast %cst_41 : f32 to vector<8x1xf32>
    %111 = arith.addf %107, %110 : vector<8x1xf32>
    %112 = math.rsqrt %111 : vector<8x1xf32>
    %113 = vector.broadcast %112 : vector<8x1xf32> to vector<8x32xf32>
    %114 = arith.mulf %109, %113 : vector<8x32xf32>
    %115 = vector.broadcast %91 : vector<1x32xf32> to vector<8x32xf32>
    %116 = arith.mulf %114, %115 : vector<8x32xf32>
    %117 = vector.broadcast %92 : vector<1x32xf32> to vector<8x32xf32>
    %118 = arith.addf %116, %117 : vector<8x32xf32>
    %c0_42 = arith.constant 0 : index
    %c0_43 = arith.constant 0 : index
    %c0_44 = arith.constant 0 : index
    %119 = vector.load %arg8[%c0_42, %c0_43, %c0_44] : memref<1x8x32xf32, #tpu.memory_space<vmem>>, vector<1x8x32xf32>
    %120 = vector.shape_cast %119 : vector<1x8x32xf32> to vector<8x32xf32>
    %121 = vector.shape_cast %118 : vector<8x32xf32> to vector<1x8x32xf32>
    tpu.vector_store %arg8[%c0_42, %c0_43, %c0_44], %121 {strides = array<i32>} : memref<1x8x32xf32, #tpu.memory_space<vmem>>, vector<1x8x32xf32>,
    return
  }
  func.func @transform_0(%arg0: i32) -> (i32, i32, i32) {
    %c0_i32 = arith.constant 0 : i32
    %c0_i32_0 = arith.constant 0 : i32
    %c0_i32_1 = arith.constant 0 : i32
    return %arg0, %c0_i32, %c0_i32_0 : i32, i32, i32
  }
  func.func @transform_1(%arg0: i32) -> (i32, i32) {
    %c0_i32 = arith.constant 0 : i32
    %c0_i32_0 = arith.constant 0 : i32
    %c0_i32_1 = arith.constant 0 : i32
    return %c0_i32, %c0_i32_0 : i32, i32
  }
  func.func @transform_2(%arg0: i32) -> (i32, i32) {
    %c0_i32 = arith.constant 0 : i32
    %c0_i32_0 = arith.constant 0 : i32
    %c0_i32_1 = arith.constant 0 : i32
    return %c0_i32, %c0_i32_0 : i32, i32
  }
  func.func @transform_3(%arg0: i32) -> (i32, i32) {
    %c0_i32 = arith.constant 0 : i32
    %c0_i32_0 = arith.constant 0 : i32
    %c0_i32_1 = arith.constant 0 : i32
    return %c0_i32, %c0_i32_0 : i32, i32
  }
  func.func @transform_4(%arg0: i32) -> (i32, i32) {
    %c0_i32 = arith.constant 0 : i32
    %c0_i32_0 = arith.constant 0 : i32
    %c0_i32_1 = arith.constant 0 : i32
    return %c0_i32, %c0_i32_0 : i32, i32
  }
  func.func @transform_5(%arg0: i32) -> (i32, i32) {
    %c0_i32 = arith.constant 0 : i32
    %c0_i32_0 = arith.constant 0 : i32
    %c0_i32_1 = arith.constant 0 : i32
    return %c0_i32, %c0_i32_0 : i32, i32
  }
  func.func @transform_6(%arg0: i32) -> (i32, i32) {
    %c0_i32 = arith.constant 0 : i32
    %c0_i32_0 = arith.constant 0 : i32
    %c0_i32_1 = arith.constant 0 : i32
    return %c0_i32, %c0_i32_0 : i32, i32
  }
  func.func @transform_7(%arg0: i32) -> (i32, i32, i32) {
    %c0_i32 = arith.constant 0 : i32
    %c0_i32_0 = arith.constant 0 : i32
    %c0_i32_1 = arith.constant 0 : i32
    return %arg0, %c0_i32, %c0_i32_0 : i32, i32, i32
  }
}

module attributes {stable_mosaic.version = 11 : i64} {
  func.func @_cross_attn_kernel(%arg0: i32, %arg1: memref<1x8x32xf32, #tpu.memory_space<vmem>>, %arg2: memref<1x8x32xf32, #tpu.memory_space<vmem>>, %arg3: memref<32x32xf32, #tpu.memory_space<vmem>>, %arg4: memref<1x32xf32, #tpu.memory_space<vmem>>, %arg5: memref<32x64xf32, #tpu.memory_space<vmem>>, %arg6: memref<1x64xf32, #tpu.memory_space<vmem>>, %arg7: memref<32x32xf32, #tpu.memory_space<vmem>>, %arg8: memref<1x32xf32, #tpu.memory_space<vmem>>, %arg9: memref<1x32xf32, #tpu.memory_space<vmem>>, %arg10: memref<1x32xf32, #tpu.memory_space<vmem>>, %arg11: memref<1x8x32xf32, #tpu.memory_space<vmem>>) attributes {dimension_semantics = [#tpu.dimension_semantics<parallel>], iteration_bounds = array<i64: 2>, scalar_prefetch = 0 : i64, scratch_operands = 0 : i64, tpu.core_type = #tpu.core_type<tc>, window_params = [{transform_indices = @transform_0, window_bounds = array<i64: 1, 8, 32>}, {transform_indices = @transform_1, window_bounds = array<i64: 1, 8, 32>}, {pipeline_mode = #tpu.pipeline_mode<synchronous>, transform_indices = @transform_2, window_bounds = array<i64: 32, 32>}, {pipeline_mode = #tpu.pipeline_mode<synchronous>, transform_indices = @transform_3, window_bounds = array<i64: 1, 32>}, {pipeline_mode = #tpu.pipeline_mode<synchronous>, transform_indices = @transform_4, window_bounds = array<i64: 32, 64>}, {pipeline_mode = #tpu.pipeline_mode<synchronous>, transform_indices = @transform_5, window_bounds = array<i64: 1, 64>}, {pipeline_mode = #tpu.pipeline_mode<synchronous>, transform_indices = @transform_6, window_bounds = array<i64: 32, 32>}, {pipeline_mode = #tpu.pipeline_mode<synchronous>, transform_indices = @transform_7, window_bounds = array<i64: 1, 32>}, {pipeline_mode = #tpu.pipeline_mode<synchronous>, transform_indices = @transform_8, window_bounds = array<i64: 1, 32>}, {pipeline_mode = #tpu.pipeline_mode<synchronous>, transform_indices = @transform_9, window_bounds = array<i64: 1, 32>}, {transform_indices = @transform_10, window_bounds = array<i64: 1, 8, 32>}]} {
    %c0 = arith.constant 0 : index
    %c0_0 = arith.constant 0 : index
    %c0_1 = arith.constant 0 : index
    %0 = vector.load %arg1[%c0, %c0_0, %c0_1] : memref<1x8x32xf32, #tpu.memory_space<vmem>>, vector<1x8x32xf32>
    %1 = vector.shape_cast %0 : vector<1x8x32xf32> to vector<8x32xf32>
    %c0_2 = arith.constant 0 : index
    %c0_3 = arith.constant 0 : index
    %c0_4 = arith.constant 0 : index
    %2 = vector.load %arg2[%c0_2, %c0_3, %c0_4] : memref<1x8x32xf32, #tpu.memory_space<vmem>>, vector<1x8x32xf32>
    %3 = vector.shape_cast %2 : vector<1x8x32xf32> to vector<8x32xf32>
    %c0_5 = arith.constant 0 : index
    %c0_6 = arith.constant 0 : index
    %4 = vector.load %arg3[%c0_5, %c0_6] : memref<32x32xf32, #tpu.memory_space<vmem>>, vector<32x32xf32>
    %cst = arith.constant dense<0.000000e+00> : vector<8x32xf32>
    %5 = tpu.matmul %1, %4, %cst {dimension_numbers = #tpu.dot_dimension_numbers<[1], [0], [0], [1], [0, 0, 1, 1], [], []>} : vector<8x32xf32>, vector<32x32xf32>, vector<8x32xf32> -> vector<8x32xf32>
    %c0_7 = arith.constant 0 : index
    %c0_8 = arith.constant 0 : index
    %6 = vector.load %arg4[%c0_7, %c0_8] : memref<1x32xf32, #tpu.memory_space<vmem>>, vector<1x32xf32>
    %7 = vector.broadcast %6 : vector<1x32xf32> to vector<8x32xf32>
    %8 = arith.addf %5, %7 : vector<8x32xf32>
    %c0_9 = arith.constant 0 : index
    %c0_10 = arith.constant 0 : index
    %9 = vector.load %arg5[%c0_9, %c0_10] : memref<32x64xf32, #tpu.memory_space<vmem>>, vector<32x64xf32>
    %cst_11 = arith.constant dense<0.000000e+00> : vector<8x64xf32>
    %10 = tpu.matmul %3, %9, %cst_11 {dimension_numbers = #tpu.dot_dimension_numbers<[1], [0], [0], [1], [0, 0, 1, 1], [], []>} : vector<8x32xf32>, vector<32x64xf32>, vector<8x64xf32> -> vector<8x64xf32>
    %c0_12 = arith.constant 0 : index
    %c0_13 = arith.constant 0 : index
    %11 = vector.load %arg6[%c0_12, %c0_13] : memref<1x64xf32, #tpu.memory_space<vmem>>, vector<1x64xf32>
    %12 = vector.broadcast %11 : vector<1x64xf32> to vector<8x64xf32>
    %13 = arith.addf %10, %12 : vector<8x64xf32>
    %14 = vector.extract_strided_slice %13 {offsets = [0, 0], sizes = [8, 32], strides = [1, 1]} : vector<8x64xf32> to vector<8x32xf32>
    %15 = vector.extract_strided_slice %13 {offsets = [0, 32], sizes = [8, 32], strides = [1, 1]} : vector<8x64xf32> to vector<8x32xf32>
    %16 = vector.extract_strided_slice %8 {offsets = [0, 0], sizes = [8, 8], strides = [1, 1]} : vector<8x32xf32> to vector<8x8xf32>
    %17 = vector.extract_strided_slice %14 {offsets = [0, 0], sizes = [8, 8], strides = [1, 1]} : vector<8x32xf32> to vector<8x8xf32>
    %cst_14 = arith.constant dense<0.000000e+00> : vector<8x8xf32>
    %18 = tpu.matmul %16, %17, %cst_14 {dimension_numbers = #tpu.dot_dimension_numbers<[1], [1], [0], [0], [0, 0, 1, 0], [], []>} : vector<8x8xf32>, vector<8x8xf32>, vector<8x8xf32> -> vector<8x8xf32>
    %cst_15 = arith.constant 0.353553385 : f32
    %19 = vector.broadcast %cst_15 : f32 to vector<8x8xf32>
    %20 = arith.mulf %18, %19 : vector<8x8xf32>
    %cst_16 = arith.constant dense<0xFF800000> : vector<8xf32>
    %21 = vector.multi_reduction <maximumf>, %20, %cst_16 [1] : vector<8x8xf32> to vector<8xf32>
    %22 = vector.shape_cast %21 : vector<8xf32> to vector<8x1xf32>
    %23 = vector.broadcast %22 : vector<8x1xf32> to vector<8x8xf32>
    %24 = arith.subf %20, %23 : vector<8x8xf32>
    %25 = math.exp %24 : vector<8x8xf32>
    %cst_17 = arith.constant dense<0.000000e+00> : vector<8xf32>
    %26 = vector.multi_reduction <add>, %25, %cst_17 [1] : vector<8x8xf32> to vector<8xf32>
    %27 = vector.shape_cast %26 : vector<8xf32> to vector<8x1xf32>
    %28 = tpu.reciprocal %27 {approx = true} : vector<8x1xf32> -> vector<8x1xf32>
    %29 = vector.broadcast %28 : vector<8x1xf32> to vector<8x8xf32>
    %30 = arith.mulf %25, %29 : vector<8x8xf32>
    %31 = vector.extract_strided_slice %15 {offsets = [0, 0], sizes = [8, 8], strides = [1, 1]} : vector<8x32xf32> to vector<8x8xf32>
    %cst_18 = arith.constant dense<0.000000e+00> : vector<8x8xf32>
    %32 = tpu.matmul %30, %31, %cst_18 {dimension_numbers = #tpu.dot_dimension_numbers<[1], [0], [0], [1], [0, 0, 1, 1], [], []>} : vector<8x8xf32>, vector<8x8xf32>, vector<8x8xf32> -> vector<8x8xf32>
    %33 = vector.extract_strided_slice %8 {offsets = [0, 8], sizes = [8, 8], strides = [1, 1]} : vector<8x32xf32> to vector<8x8xf32>
    %34 = vector.extract_strided_slice %14 {offsets = [0, 8], sizes = [8, 8], strides = [1, 1]} : vector<8x32xf32> to vector<8x8xf32>
    %cst_19 = arith.constant dense<0.000000e+00> : vector<8x8xf32>
    %35 = tpu.matmul %33, %34, %cst_19 {dimension_numbers = #tpu.dot_dimension_numbers<[1], [1], [0], [0], [0, 0, 1, 0], [], []>} : vector<8x8xf32>, vector<8x8xf32>, vector<8x8xf32> -> vector<8x8xf32>
    %cst_20 = arith.constant 0.353553385 : f32
    %36 = vector.broadcast %cst_20 : f32 to vector<8x8xf32>
    %37 = arith.mulf %35, %36 : vector<8x8xf32>
    %cst_21 = arith.constant dense<0xFF800000> : vector<8xf32>
    %38 = vector.multi_reduction <maximumf>, %37, %cst_21 [1] : vector<8x8xf32> to vector<8xf32>
    %39 = vector.shape_cast %38 : vector<8xf32> to vector<8x1xf32>
    %40 = vector.broadcast %39 : vector<8x1xf32> to vector<8x8xf32>
    %41 = arith.subf %37, %40 : vector<8x8xf32>
    %42 = math.exp %41 : vector<8x8xf32>
    %cst_22 = arith.constant dense<0.000000e+00> : vector<8xf32>
    %43 = vector.multi_reduction <add>, %42, %cst_22 [1] : vector<8x8xf32> to vector<8xf32>
    %44 = vector.shape_cast %43 : vector<8xf32> to vector<8x1xf32>
    %45 = tpu.reciprocal %44 {approx = true} : vector<8x1xf32> -> vector<8x1xf32>
    %46 = vector.broadcast %45 : vector<8x1xf32> to vector<8x8xf32>
    %47 = arith.mulf %42, %46 : vector<8x8xf32>
    %48 = vector.extract_strided_slice %15 {offsets = [0, 8], sizes = [8, 8], strides = [1, 1]} : vector<8x32xf32> to vector<8x8xf32>
    %cst_23 = arith.constant dense<0.000000e+00> : vector<8x8xf32>
    %49 = tpu.matmul %47, %48, %cst_23 {dimension_numbers = #tpu.dot_dimension_numbers<[1], [0], [0], [1], [0, 0, 1, 1], [], []>} : vector<8x8xf32>, vector<8x8xf32>, vector<8x8xf32> -> vector<8x8xf32>
    %50 = vector.extract_strided_slice %8 {offsets = [0, 16], sizes = [8, 8], strides = [1, 1]} : vector<8x32xf32> to vector<8x8xf32>
    %51 = vector.extract_strided_slice %14 {offsets = [0, 16], sizes = [8, 8], strides = [1, 1]} : vector<8x32xf32> to vector<8x8xf32>
    %cst_24 = arith.constant dense<0.000000e+00> : vector<8x8xf32>
    %52 = tpu.matmul %50, %51, %cst_24 {dimension_numbers = #tpu.dot_dimension_numbers<[1], [1], [0], [0], [0, 0, 1, 0], [], []>} : vector<8x8xf32>, vector<8x8xf32>, vector<8x8xf32> -> vector<8x8xf32>
    %cst_25 = arith.constant 0.353553385 : f32
    %53 = vector.broadcast %cst_25 : f32 to vector<8x8xf32>
    %54 = arith.mulf %52, %53 : vector<8x8xf32>
    %cst_26 = arith.constant dense<0xFF800000> : vector<8xf32>
    %55 = vector.multi_reduction <maximumf>, %54, %cst_26 [1] : vector<8x8xf32> to vector<8xf32>
    %56 = vector.shape_cast %55 : vector<8xf32> to vector<8x1xf32>
    %57 = vector.broadcast %56 : vector<8x1xf32> to vector<8x8xf32>
    %58 = arith.subf %54, %57 : vector<8x8xf32>
    %59 = math.exp %58 : vector<8x8xf32>
    %cst_27 = arith.constant dense<0.000000e+00> : vector<8xf32>
    %60 = vector.multi_reduction <add>, %59, %cst_27 [1] : vector<8x8xf32> to vector<8xf32>
    %61 = vector.shape_cast %60 : vector<8xf32> to vector<8x1xf32>
    %62 = tpu.reciprocal %61 {approx = true} : vector<8x1xf32> -> vector<8x1xf32>
    %63 = vector.broadcast %62 : vector<8x1xf32> to vector<8x8xf32>
    %64 = arith.mulf %59, %63 : vector<8x8xf32>
    %65 = vector.extract_strided_slice %15 {offsets = [0, 16], sizes = [8, 8], strides = [1, 1]} : vector<8x32xf32> to vector<8x8xf32>
    %cst_28 = arith.constant dense<0.000000e+00> : vector<8x8xf32>
    %66 = tpu.matmul %64, %65, %cst_28 {dimension_numbers = #tpu.dot_dimension_numbers<[1], [0], [0], [1], [0, 0, 1, 1], [], []>} : vector<8x8xf32>, vector<8x8xf32>, vector<8x8xf32> -> vector<8x8xf32>
    %67 = vector.extract_strided_slice %8 {offsets = [0, 24], sizes = [8, 8], strides = [1, 1]} : vector<8x32xf32> to vector<8x8xf32>
    %68 = vector.extract_strided_slice %14 {offsets = [0, 24], sizes = [8, 8], strides = [1, 1]} : vector<8x32xf32> to vector<8x8xf32>
    %cst_29 = arith.constant dense<0.000000e+00> : vector<8x8xf32>
    %69 = tpu.matmul %67, %68, %cst_29 {dimension_numbers = #tpu.dot_dimension_numbers<[1], [1], [0], [0], [0, 0, 1, 0], [], []>} : vector<8x8xf32>, vector<8x8xf32>, vector<8x8xf32> -> vector<8x8xf32>
    %cst_30 = arith.constant 0.353553385 : f32
    %70 = vector.broadcast %cst_30 : f32 to vector<8x8xf32>
    %71 = arith.mulf %69, %70 : vector<8x8xf32>
    %cst_31 = arith.constant dense<0xFF800000> : vector<8xf32>
    %72 = vector.multi_reduction <maximumf>, %71, %cst_31 [1] : vector<8x8xf32> to vector<8xf32>
    %73 = vector.shape_cast %72 : vector<8xf32> to vector<8x1xf32>
    %74 = vector.broadcast %73 : vector<8x1xf32> to vector<8x8xf32>
    %75 = arith.subf %71, %74 : vector<8x8xf32>
    %76 = math.exp %75 : vector<8x8xf32>
    %cst_32 = arith.constant dense<0.000000e+00> : vector<8xf32>
    %77 = vector.multi_reduction <add>, %76, %cst_32 [1] : vector<8x8xf32> to vector<8xf32>
    %78 = vector.shape_cast %77 : vector<8xf32> to vector<8x1xf32>
    %79 = tpu.reciprocal %78 {approx = true} : vector<8x1xf32> -> vector<8x1xf32>
    %80 = vector.broadcast %79 : vector<8x1xf32> to vector<8x8xf32>
    %81 = arith.mulf %76, %80 : vector<8x8xf32>
    %82 = vector.extract_strided_slice %15 {offsets = [0, 24], sizes = [8, 8], strides = [1, 1]} : vector<8x32xf32> to vector<8x8xf32>
    %cst_33 = arith.constant dense<0.000000e+00> : vector<8x8xf32>
    %83 = tpu.matmul %81, %82, %cst_33 {dimension_numbers = #tpu.dot_dimension_numbers<[1], [0], [0], [1], [0, 0, 1, 1], [], []>} : vector<8x8xf32>, vector<8x8xf32>, vector<8x8xf32> -> vector<8x8xf32>
    %84 = tpu.concatenate %32, %49, %66, %83 in 1 : vector<8x8xf32>, vector<8x8xf32>, vector<8x8xf32>, vector<8x8xf32> -> vector<8x32xf32>
    %c0_34 = arith.constant 0 : index
    %c0_35 = arith.constant 0 : index
    %85 = vector.load %arg7[%c0_34, %c0_35] : memref<32x32xf32, #tpu.memory_space<vmem>>, vector<32x32xf32>
    %c0_36 = arith.constant 0 : index
    %c0_37 = arith.constant 0 : index
    %86 = vector.load %arg8[%c0_36, %c0_37] : memref<1x32xf32, #tpu.memory_space<vmem>>, vector<1x32xf32>
    %c0_38 = arith.constant 0 : index
    %c0_39 = arith.constant 0 : index
    %87 = vector.load %arg9[%c0_38, %c0_39] : memref<1x32xf32, #tpu.memory_space<vmem>>, vector<1x32xf32>
    %c0_40 = arith.constant 0 : index
    %c0_41 = arith.constant 0 : index
    %88 = vector.load %arg10[%c0_40, %c0_41] : memref<1x32xf32, #tpu.memory_space<vmem>>, vector<1x32xf32>
    %cst_42 = arith.constant dense<0.000000e+00> : vector<8x32xf32>
    %89 = tpu.matmul %84, %85, %cst_42 {dimension_numbers = #tpu.dot_dimension_numbers<[1], [0], [0], [1], [0, 0, 1, 1], [], []>} : vector<8x32xf32>, vector<32x32xf32>, vector<8x32xf32> -> vector<8x32xf32>
    %90 = vector.broadcast %86 : vector<1x32xf32> to vector<8x32xf32>
    %91 = arith.addf %89, %90 : vector<8x32xf32>
    %92 = arith.addf %91, %1 : vector<8x32xf32>
    %cst_43 = arith.constant dense<0.000000e+00> : vector<8xf32>
    %93 = vector.multi_reduction <add>, %92, %cst_43 [1] : vector<8x32xf32> to vector<8xf32>
    %94 = vector.shape_cast %93 : vector<8xf32> to vector<8x1xf32>
    %cst_44 = arith.constant 3.200000e+01 : f32
    %95 = vector.broadcast %cst_44 : f32 to vector<8x1xf32>
    %96 = arith.divf %94, %95 : vector<8x1xf32>
    %97 = vector.broadcast %96 : vector<8x1xf32> to vector<8x32xf32>
    %98 = arith.subf %92, %97 : vector<8x32xf32>
    %99 = arith.mulf %98, %98 : vector<8x32xf32>
    %cst_45 = arith.constant dense<0.000000e+00> : vector<8xf32>
    %100 = vector.multi_reduction <add>, %99, %cst_45 [1] : vector<8x32xf32> to vector<8xf32>
    %101 = vector.shape_cast %100 : vector<8xf32> to vector<8x1xf32>
    %cst_46 = arith.constant 3.200000e+01 : f32
    %102 = vector.broadcast %cst_46 : f32 to vector<8x1xf32>
    %103 = arith.divf %101, %102 : vector<8x1xf32>
    %104 = vector.broadcast %96 : vector<8x1xf32> to vector<8x32xf32>
    %105 = arith.subf %92, %104 : vector<8x32xf32>
    %cst_47 = arith.constant 9.99999974E-6 : f32
    %106 = vector.broadcast %cst_47 : f32 to vector<8x1xf32>
    %107 = arith.addf %103, %106 : vector<8x1xf32>
    %108 = math.rsqrt %107 : vector<8x1xf32>
    %109 = vector.broadcast %108 : vector<8x1xf32> to vector<8x32xf32>
    %110 = arith.mulf %105, %109 : vector<8x32xf32>
    %111 = vector.broadcast %87 : vector<1x32xf32> to vector<8x32xf32>
    %112 = arith.mulf %110, %111 : vector<8x32xf32>
    %113 = vector.broadcast %88 : vector<1x32xf32> to vector<8x32xf32>
    %114 = arith.addf %112, %113 : vector<8x32xf32>
    %c0_48 = arith.constant 0 : index
    %c0_49 = arith.constant 0 : index
    %c0_50 = arith.constant 0 : index
    %115 = vector.load %arg11[%c0_48, %c0_49, %c0_50] : memref<1x8x32xf32, #tpu.memory_space<vmem>>, vector<1x8x32xf32>
    %116 = vector.shape_cast %115 : vector<1x8x32xf32> to vector<8x32xf32>
    %117 = vector.shape_cast %114 : vector<8x32xf32> to vector<1x8x32xf32>
    tpu.vector_store %arg11[%c0_48, %c0_49, %c0_50], %117 {strides = array<i32>} : memref<1x8x32xf32, #tpu.memory_space<vmem>>, vector<1x8x32xf32>,
    return
  }
  func.func @transform_0(%arg0: i32) -> (i32, i32, i32) {
    %c0_i32 = arith.constant 0 : i32
    %c0_i32_0 = arith.constant 0 : i32
    %c0_i32_1 = arith.constant 0 : i32
    return %arg0, %c0_i32, %c0_i32_0 : i32, i32, i32
  }
  func.func @transform_1(%arg0: i32) -> (i32, i32, i32) {
    %c0_i32 = arith.constant 0 : i32
    %c0_i32_0 = arith.constant 0 : i32
    %c0_i32_1 = arith.constant 0 : i32
    return %arg0, %c0_i32, %c0_i32_0 : i32, i32, i32
  }
  func.func @transform_2(%arg0: i32) -> (i32, i32) {
    %c0_i32 = arith.constant 0 : i32
    %c0_i32_0 = arith.constant 0 : i32
    %c0_i32_1 = arith.constant 0 : i32
    return %c0_i32, %c0_i32_0 : i32, i32
  }
  func.func @transform_3(%arg0: i32) -> (i32, i32) {
    %c0_i32 = arith.constant 0 : i32
    %c0_i32_0 = arith.constant 0 : i32
    %c0_i32_1 = arith.constant 0 : i32
    return %c0_i32, %c0_i32_0 : i32, i32
  }
  func.func @transform_4(%arg0: i32) -> (i32, i32) {
    %c0_i32 = arith.constant 0 : i32
    %c0_i32_0 = arith.constant 0 : i32
    %c0_i32_1 = arith.constant 0 : i32
    return %c0_i32, %c0_i32_0 : i32, i32
  }
  func.func @transform_5(%arg0: i32) -> (i32, i32) {
    %c0_i32 = arith.constant 0 : i32
    %c0_i32_0 = arith.constant 0 : i32
    %c0_i32_1 = arith.constant 0 : i32
    return %c0_i32, %c0_i32_0 : i32, i32
  }
  func.func @transform_6(%arg0: i32) -> (i32, i32) {
    %c0_i32 = arith.constant 0 : i32
    %c0_i32_0 = arith.constant 0 : i32
    %c0_i32_1 = arith.constant 0 : i32
    return %c0_i32, %c0_i32_0 : i32, i32
  }
  func.func @transform_7(%arg0: i32) -> (i32, i32) {
    %c0_i32 = arith.constant 0 : i32
    %c0_i32_0 = arith.constant 0 : i32
    %c0_i32_1 = arith.constant 0 : i32
    return %c0_i32, %c0_i32_0 : i32, i32
  }
  func.func @transform_8(%arg0: i32) -> (i32, i32) {
    %c0_i32 = arith.constant 0 : i32
    %c0_i32_0 = arith.constant 0 : i32
    %c0_i32_1 = arith.constant 0 : i32
    return %c0_i32, %c0_i32_0 : i32, i32
  }
  func.func @transform_9(%arg0: i32) -> (i32, i32) {
    %c0_i32 = arith.constant 0 : i32
    %c0_i32_0 = arith.constant 0 : i32
    %c0_i32_1 = arith.constant 0 : i32
    return %c0_i32, %c0_i32_0 : i32, i32
  }
  func.func @transform_10(%arg0: i32) -> (i32, i32, i32) {
    %c0_i32 = arith.constant 0 : i32
    %c0_i32_0 = arith.constant 0 : i32
    %c0_i32_1 = arith.constant 0 : i32
    return %arg0, %c0_i32, %c0_i32_0 : i32, i32, i32
  }
}

module attributes {stable_mosaic.version = 11 : i64} {
  func.func @_ln_proj_kernel(%arg0: i32, %arg1: memref<16x32xf32, #tpu.memory_space<vmem>>, %arg2: memref<1x32xf32, #tpu.memory_space<vmem>>, %arg3: memref<1x32xf32, #tpu.memory_space<vmem>>, %arg4: memref<32x4xf32, #tpu.memory_space<vmem>>, %arg5: memref<1x4xf32, #tpu.memory_space<vmem>>, %arg6: memref<16x4xf32, #tpu.memory_space<vmem>>) attributes {dimension_semantics = [#tpu.dimension_semantics<parallel>], iteration_bounds = array<i64: 1>, scalar_prefetch = 0 : i64, scratch_operands = 0 : i64, tpu.core_type = #tpu.core_type<tc>, window_params = [{transform_indices = @transform_0, window_bounds = array<i64: 16, 32>}, {pipeline_mode = #tpu.pipeline_mode<synchronous>, transform_indices = @transform_1, window_bounds = array<i64: 1, 32>}, {pipeline_mode = #tpu.pipeline_mode<synchronous>, transform_indices = @transform_2, window_bounds = array<i64: 1, 32>}, {pipeline_mode = #tpu.pipeline_mode<synchronous>, transform_indices = @transform_3, window_bounds = array<i64: 32, 4>}, {pipeline_mode = #tpu.pipeline_mode<synchronous>, transform_indices = @transform_4, window_bounds = array<i64: 1, 4>}, {transform_indices = @transform_5, window_bounds = array<i64: 16, 4>}]} {
    %c0 = arith.constant 0 : index
    %c0_0 = arith.constant 0 : index
    %0 = vector.load %arg1[%c0, %c0_0] : memref<16x32xf32, #tpu.memory_space<vmem>>, vector<16x32xf32>
    %cst = arith.constant dense<0.000000e+00> : vector<16xf32>
    %1 = vector.multi_reduction <add>, %0, %cst [1] : vector<16x32xf32> to vector<16xf32>
    %2 = vector.shape_cast %1 : vector<16xf32> to vector<16x1xf32>
    %cst_1 = arith.constant 3.200000e+01 : f32
    %3 = vector.broadcast %cst_1 : f32 to vector<16x1xf32>
    %4 = arith.divf %2, %3 : vector<16x1xf32>
    %5 = vector.broadcast %4 : vector<16x1xf32> to vector<16x32xf32>
    %6 = arith.subf %0, %5 : vector<16x32xf32>
    %7 = arith.mulf %6, %6 : vector<16x32xf32>
    %cst_2 = arith.constant dense<0.000000e+00> : vector<16xf32>
    %8 = vector.multi_reduction <add>, %7, %cst_2 [1] : vector<16x32xf32> to vector<16xf32>
    %9 = vector.shape_cast %8 : vector<16xf32> to vector<16x1xf32>
    %cst_3 = arith.constant 3.200000e+01 : f32
    %10 = vector.broadcast %cst_3 : f32 to vector<16x1xf32>
    %11 = arith.divf %9, %10 : vector<16x1xf32>
    %12 = vector.broadcast %4 : vector<16x1xf32> to vector<16x32xf32>
    %13 = arith.subf %0, %12 : vector<16x32xf32>
    %cst_4 = arith.constant 9.99999974E-6 : f32
    %14 = vector.broadcast %cst_4 : f32 to vector<16x1xf32>
    %15 = arith.addf %11, %14 : vector<16x1xf32>
    %16 = math.rsqrt %15 : vector<16x1xf32>
    %17 = vector.broadcast %16 : vector<16x1xf32> to vector<16x32xf32>
    %18 = arith.mulf %13, %17 : vector<16x32xf32>
    %c0_5 = arith.constant 0 : index
    %c0_6 = arith.constant 0 : index
    %19 = vector.load %arg2[%c0_5, %c0_6] : memref<1x32xf32, #tpu.memory_space<vmem>>, vector<1x32xf32>
    %20 = vector.broadcast %19 : vector<1x32xf32> to vector<16x32xf32>
    %21 = arith.mulf %18, %20 : vector<16x32xf32>
    %c0_7 = arith.constant 0 : index
    %c0_8 = arith.constant 0 : index
    %22 = vector.load %arg3[%c0_7, %c0_8] : memref<1x32xf32, #tpu.memory_space<vmem>>, vector<1x32xf32>
    %23 = vector.broadcast %22 : vector<1x32xf32> to vector<16x32xf32>
    %24 = arith.addf %21, %23 : vector<16x32xf32>
    %c0_9 = arith.constant 0 : index
    %c0_10 = arith.constant 0 : index
    %25 = vector.load %arg4[%c0_9, %c0_10] : memref<32x4xf32, #tpu.memory_space<vmem>>, vector<32x4xf32>
    %cst_11 = arith.constant dense<0.000000e+00> : vector<16x4xf32>
    %26 = tpu.matmul %24, %25, %cst_11 {dimension_numbers = #tpu.dot_dimension_numbers<[1], [0], [0], [1], [0, 0, 1, 1], [], []>} : vector<16x32xf32>, vector<32x4xf32>, vector<16x4xf32> -> vector<16x4xf32>
    %c0_12 = arith.constant 0 : index
    %c0_13 = arith.constant 0 : index
    %27 = vector.load %arg5[%c0_12, %c0_13] : memref<1x4xf32, #tpu.memory_space<vmem>>, vector<1x4xf32>
    %28 = vector.broadcast %27 : vector<1x4xf32> to vector<16x4xf32>
    %29 = arith.addf %26, %28 : vector<16x4xf32>
    %c0_14 = arith.constant 0 : index
    %c0_15 = arith.constant 0 : index
    %30 = vector.load %arg6[%c0_14, %c0_15] : memref<16x4xf32, #tpu.memory_space<vmem>>, vector<16x4xf32>
    tpu.vector_store %arg6[%c0_14, %c0_15], %29 {strides = array<i32>} : memref<16x4xf32, #tpu.memory_space<vmem>>, vector<16x4xf32>,
    return
  }
  func.func @transform_0(%arg0: i32) -> (i32, i32) {
    %c0_i32 = arith.constant 0 : i32
    %c0_i32_0 = arith.constant 0 : i32
    return %arg0, %c0_i32 : i32, i32
  }
  func.func @transform_1(%arg0: i32) -> (i32, i32) {
    %c0_i32 = arith.constant 0 : i32
    %c0_i32_0 = arith.constant 0 : i32
    %c0_i32_1 = arith.constant 0 : i32
    return %c0_i32, %c0_i32_0 : i32, i32
  }
  func.func @transform_2(%arg0: i32) -> (i32, i32) {
    %c0_i32 = arith.constant 0 : i32
    %c0_i32_0 = arith.constant 0 : i32
    %c0_i32_1 = arith.constant 0 : i32
    return %c0_i32, %c0_i32_0 : i32, i32
  }
  func.func @transform_3(%arg0: i32) -> (i32, i32) {
    %c0_i32 = arith.constant 0 : i32
    %c0_i32_0 = arith.constant 0 : i32
    %c0_i32_1 = arith.constant 0 : i32
    return %c0_i32, %c0_i32_0 : i32, i32
  }
  func.func @transform_4(%arg0: i32) -> (i32, i32) {
    %c0_i32 = arith.constant 0 : i32
    %c0_i32_0 = arith.constant 0 : i32
    %c0_i32_1 = arith.constant 0 : i32
    return %c0_i32, %c0_i32_0 : i32, i32
  }
  func.func @transform_5(%arg0: i32) -> (i32, i32) {
    %c0_i32 = arith.constant 0 : i32
    %c0_i32_0 = arith.constant 0 : i32
    return %arg0, %c0_i32 : i32, i32
  }
}

</mosaic_0001>

<llo_original>
// kernel: transformer_with_pe_forward.14
$region0: #{transformer_with_pe_forward.14}
  #allocation0 [shape = 'u32[]', space=smem, size = 0x4, offset = 0x4, fixed_abs, tag = 'smem constant byte address 0x4 - core index']
  #allocation1 [shape = 'u32[72,128]{1,0:T(1,128)}', space=vmem, size = 0x9000, scoped, tag = 'internal scratch']
  %s0 = inlined_call_operand.vmem [shape: f32[2,8,4], index: 0, kind: input, shape index: {}]
  %s1 = inlined_call_operand.vmem [shape: f32[4,32], index: 1, kind: input, shape index: {}]
  %s2 = inlined_call_operand.vmem [shape: f32[1,32], index: 2, kind: input, shape index: {}]
  %s3 = inlined_call_operand.vmem [shape: f32[1,8,32], index: 3, kind: input, shape index: {}]
  %s4 = inlined_call_operand.vmem [shape: f32[2,8,32], index: 4, kind: output, shape index: {}]
  %s5 = sld [smem:[#allocation0]]
  $region49: #{transformer_with_pe_forward.14} parent=0
    _
  %s7 = ssub.s32 1, %s5
  %s8 = scalar_select 0, %s7, %s5
  loop: start=0, step=1, limit=4
  $region2: #{transformer_with_pe_forward.14} parent=0 // loop_pre_header
    _
  $region3: #{transformer_with_pe_forward.14} parent=0 // loop_header
    %s10 = sphi 0, %s14
    %p11 = scmp.ge.s32.totalorder %s10, 4
    %s20 = sphi 0, %s22
    %s23 = sphi 0, %s20
    %s24 = sphi 0, %s23
    %s40 = sphi 0, %s24
    %s44 = sphi 0, %s44
    %s46 = sphi 0, %s44
    %s47 = sphi 0, %s46
    %s61 = sphi 0, %s47
    %s65 = sphi 0, %s65
    %s67 = sphi 0, %s65
    %s68 = sphi 0, %s67
    %s82 = sphi 0, %s68
    %s86 = sphi 0, %s86
    %s88 = sphi 0, %s86
    %s89 = sphi 0, %s88
    %s103 = sphi 0, %s89
    %s109 = sphi 0, %s111
    %s112 = sphi 0, %s109
    %s113 = sphi 0, %s112
    %s129 = sphi 0, %s113
  $region4: #{transformer_with_pe_forward.14} parent=0 // loop_header_branch
    %13 = sbr.rel (%p11) target = $region8
  $region5: #{transformer_with_pe_forward.14} parent=0 // loop_body
    %s15 = ssub.s32 %s10, 1
    %s16 = ssub.s32 %s10, 2
    %s17 = sadd.s32 %s10, 1
    %s18 = ssub.s32 %s10, %s17
    %p19 = scmp.eq.s32.totalorder %s18, 0
    %s21 = sadd.s32 %s20, 1
    %s22 = scalar_select %p19, %s20, %s21
    %p25 = pneg %p19
    %p26 = scmp.eq.s32.totalorder %s10, 1
    %p27 = por %p25, %p26
    %p28 = scmp.ne.s32.totalorder %s20, %s23
    %p29 = scmp.eq.s32.totalorder %s10, 0
    %p30 = por %p28, %p29
    %p31 = scmp.ne.s32.totalorder %s20, %s23
    %p32 = scmp.eq.s32.totalorder %s15, 1
    %p33 = por %p31, %p32
    %p34 = scmp.ne.s32.totalorder %s23, %s24
    %p35 = scmp.eq.s32.totalorder %s15, 0
    %p36 = por %p34, %p35
    %p37 = scmp.ne.s32.totalorder %s23, %s24
    %p38 = scmp.eq.s32.totalorder %s16, 1
    %p39 = por %p37, %p38
    %p41 = scmp.ne.s32.totalorder %s24, %s40
    %p42 = scmp.eq.s32.totalorder %s16, 0
    %p43 = por %p41, %p42
    %s45 = sadd.s32 %s44, 1
    %p48 = scmp.eq.s32.totalorder %s10, 1
    %p49 = scmp.ne.s32.totalorder %s44, %s46
    %p50 = scmp.eq.s32.totalorder %s10, 0
    %p51 = por %p49, %p50
    %p52 = scmp.ne.s32.totalorder %s44, %s46
    %p53 = scmp.eq.s32.totalorder %s15, 1
    %p54 = por %p52, %p53
    %p55 = scmp.ne.s32.totalorder %s46, %s47
    %p56 = scmp.eq.s32.totalorder %s15, 0
    %p57 = por %p55, %p56
    %p58 = scmp.ne.s32.totalorder %s46, %s47
    %p59 = scmp.eq.s32.totalorder %s16, 1
    %p60 = por %p58, %p59
    %p62 = scmp.ne.s32.totalorder %s47, %s61
    %p63 = scmp.eq.s32.totalorder %s16, 0
    %p64 = por %p62, %p63
    %s66 = sadd.s32 %s65, 1
    %p69 = scmp.eq.s32.totalorder %s10, 1
    %p70 = scmp.ne.s32.totalorder %s65, %s67
    %p71 = scmp.eq.s32.totalorder %s10, 0
    %p72 = por %p70, %p71
    %p73 = scmp.ne.s32.totalorder %s65, %s67
    %p74 = scmp.eq.s32.totalorder %s15, 1
    %p75 = por %p73, %p74
    %p76 = scmp.ne.s32.totalorder %s67, %s68
    %p77 = scmp.eq.s32.totalorder %s15, 0
    %p78 = por %p76, %p77
    %p79 = scmp.ne.s32.totalorder %s67, %s68
    %p80 = scmp.eq.s32.totalorder %s16, 1
    %p81 = por %p79, %p80
    %p83 = scmp.ne.s32.totalorder %s68, %s82
    %p84 = scmp.eq.s32.totalorder %s16, 0
    %p85 = por %p83, %p84
    %s87 = sadd.s32 %s86, 1
    %p90 = scmp.eq.s32.totalorder %s10, 1
    %p91 = scmp.ne.s32.totalorder %s86, %s88
    %p92 = scmp.eq.s32.totalorder %s10, 0
    %p93 = por %p91, %p92
    %p94 = scmp.ne.s32.totalorder %s86, %s88
    %p95 = scmp.eq.s32.totalorder %s15, 1
    %p96 = por %p94, %p95
    %p97 = scmp.ne.s32.totalorder %s88, %s89
    %p98 = scmp.eq.s32.totalorder %s15, 0
    %p99 = por %p97, %p98
    %p100 = scmp.ne.s32.totalorder %s88, %s89
    %p101 = scmp.eq.s32.totalorder %s16, 1
    %p102 = por %p100, %p101
    %p104 = scmp.ne.s32.totalorder %s89, %s103
    %p105 = scmp.eq.s32.totalorder %s16, 0
    %p106 = por %p104, %p105
    %s107 = ssub.s32 %s10, %s17
    %p108 = scmp.eq.s32.totalorder %s107, 0
    %s110 = sadd.s32 %s109, 1
    %s111 = scalar_select %p108, %s109, %s110
    %p114 = pneg %p108
    %p115 = scmp.eq.s32.totalorder %s10, 1
    %p116 = por %p114, %p115
    %p117 = scmp.ne.s32.totalorder %s109, %s112
    %p118 = scmp.eq.s32.totalorder %s10, 0
    %p119 = por %p117, %p118
    %p120 = scmp.ne.s32.totalorder %s109, %s112
    %p121 = scmp.eq.s32.totalorder %s15, 1
    %p122 = por %p120, %p121
    %p123 = scmp.ne.s32.totalorder %s112, %s113
    %p124 = scmp.eq.s32.totalorder %s15, 0
    %p125 = por %p123, %p124
    %p126 = scmp.ne.s32.totalorder %s112, %s113
    %p127 = scmp.eq.s32.totalorder %s16, 1
    %p128 = por %p126, %p127
    %p130 = scmp.ne.s32.totalorder %s113, %s129
    %p131 = scmp.eq.s32.totalorder %s16, 0
    %p132 = por %p130, %p131
    %p133 = scmp.le.s32.totalorder 1, %s10
    %p134 = scmp.lt.s32.totalorder %s10, 3
    %p135 = pnand %p133, %p134
    %p136 = pneg %p135
    // Predicated region
    $region9: #{transformer_with_pe_forward.14} parent=5 // pred_check
      _
    $region10: #{transformer_with_pe_forward.14} parent=5 // pred_check_branch
      %138 = sbr.rel (%p135) target = $region12
    $region11: #{transformer_with_pe_forward.14} parent=5 // pred_region
      %s139 = ssub.s32 %s10, 1
      // Predicated region
      $region13: #{transformer_with_pe_forward.14} parent=11 // pred_check
        %p140 = pneg %p57
      $region14: #{transformer_with_pe_forward.14} parent=11 // pred_check_branch
        %142 = sbr.rel (%p140) target = $region16
      $region15: #{transformer_with_pe_forward.14} parent=11 // pred_region
        _
      $region16: #{transformer_with_pe_forward.14} parent=11 // pred_fallthru
        _
      // Predicated region
      $region17: #{transformer_with_pe_forward.14} parent=11 // pred_check
        %p143 = pneg %p78
      $region18: #{transformer_with_pe_forward.14} parent=11 // pred_check_branch
        %145 = sbr.rel (%p143) target = $region20
      $region19: #{transformer_with_pe_forward.14} parent=11 // pred_region
        _
      $region20: #{transformer_with_pe_forward.14} parent=11 // pred_fallthru
        _
      // Predicated region
      $region21: #{transformer_with_pe_forward.14} parent=11 // pred_check
        %p146 = pneg %p99
      $region22: #{transformer_with_pe_forward.14} parent=11 // pred_check_branch
        %148 = sbr.rel (%p146) target = $region24
      $region23: #{transformer_with_pe_forward.14} parent=11 // pred_region
        _
      $region24: #{transformer_with_pe_forward.14} parent=11 // pred_fallthru
        _
    $region12: #{transformer_with_pe_forward.14} parent=5 // pred_fallthru
      _
    %p149 = scmp.lt.s32.totalorder %s10, 2
    // Predicated region
    $region25: #{transformer_with_pe_forward.14} parent=5 // pred_check
      %p150 = pneg %p149
    $region26: #{transformer_with_pe_forward.14} parent=5 // pred_check_branch
      %152 = sbr.rel (%p150) target = $region28
    $region27: #{transformer_with_pe_forward.14} parent=5 // pred_region
      // Predicated region
      $region29: #{transformer_with_pe_forward.14} parent=27 // pred_check
        %p153 = pneg %p30
      $region30: #{transformer_with_pe_forward.14} parent=27 // pred_check_branch
        %155 = sbr.rel (%p153) target = $region32
      $region31: #{transformer_with_pe_forward.14} parent=27 // pred_region
        %p156 = scmp.lt.s32.totalorder %s10, 1
        %s157 = scalar_select %p156, %s10, 1
        %s158 = smul.addr %s157, 8
        %s159 = scalar_lea.vmem %s0, %s158
      $region32: #{transformer_with_pe_forward.14} parent=27 // pred_fallthru
        _
    $region28: #{transformer_with_pe_forward.14} parent=5 // pred_fallthru
      _
    %p160 = scmp.le.s32.totalorder 1, %s10
    %p161 = scmp.lt.s32.totalorder %s10, 3
    %p162 = pnand %p160, %p161
    %p163 = pneg %p162
    // Predicated region
    $region33: #{transformer_with_pe_forward.14} parent=5 // pred_check
      _
    $region34: #{transformer_with_pe_forward.14} parent=5 // pred_check_branch
      %165 = sbr.rel (%p162) target = $region36
    $region35: #{transformer_with_pe_forward.14} parent=5 // pred_region
      %s166 = ssub.s32 %s10, 1
      %p167 = scmp.lt.s32.totalorder %s15, 1
      %s168 = scalar_select %p167, %s15, 1
      %s169 = smul.addr %s168, 8
      %s170 = scalar_lea.vmem %s0, %s169
      %p171 = pneg %p36
      %p172 = pneg %p33
      %p173 = pneg %p57
      %p174 = pneg %p54
      %p175 = pneg %p78
      %p176 = pneg %p75
      %p177 = pneg %p99
      %p178 = pneg %p96
      %p179 = pneg %p125
      %p180 = pneg %p122
      %p181 = scmp.lt.s32.totalorder %s15, 1
      %s182 = scalar_select %p181, %s15, 1
      %s183 = smul.addr %s182, 8
      %s184 = scalar_lea.vmem %s4, %s183
      %p185 = scmp.lt.s32.totalorder %s15, 1
      %s186 = scalar_select %p185, %s15, 1
      %s187 = smul.addr %s186, 8
      %s188 = scalar_lea.vmem %s0, %s187
      %p189 = scmp.lt.s32.totalorder %s15, 1
      %s190 = scalar_select %p189, %s15, 1
      %s191 = smul.addr %s190, 8
      %s192 = scalar_lea.vmem %s4, %s191
      %v193 = vld [vmem:[%s188] sm:$0xff]
      %v194 = vld [vmem:[%s1] sm:$0xf]
      %v195 = vld [vmem:[%s2] sm:$0x1]
      %v197 = vperm.slane %v195, 0
      %vm199 = vcmask 31744
      %v201 = vsel %vm199, %v193, 0
      %vm203 = vcmask 1043456
      %v205 = vsel %vm203, %v194, 0
      %207 = vmatpush.msra.mxu0 0.0
      %208 = vmatpush.msra.mxu0 0.0
      %209 = vmatpush.msra.mxu0 0.0
      %210 = vmatpush.msra.mxu0 0.0
      %211 = vmatpush.msra.mxu0 0.0
      %212 = vmatpush.msra.mxu0 0.0
      %213 = vmatpush.msra.mxu0 0.0
      %214 = vmatpush.msra.mxu0 0.0
      %215 = vmatpush.msra.mxu0 0.0
      %216 = vmatpush.msra.mxu0 0.0
      %217 = vmatpush.msra.mxu0 0.0
      %218 = vmatpush.msra.mxu0 0.0
      %219 = vmatpush.msra.mxu0 0.0
      %220 = vmatpush.msra.mxu0 0.0
      %221 = vmatpush.msra.mxu0 0.0
      %222 = vmatpush.msra.mxu0 %v205
      %223 = vmatmul.f32.gmra.mxu0 %v201
      %v224 = vpop.f32.mrf.mxu0
      %v225 = vadd.f32 %v197, %v224
      %226 = vdwg.mxu0
      %v227 = vld [vmem:[%s3] sm:$0xff]
      %v228 = vadd.f32 %v225, %v227
      %vm229 = vcmask 261120
      %230 = vst.msk [vmem:[%s192] sm:$0xff] %vm229, %v228
      %p231 = scmp.lt.s32.totalorder %s15, 1
      %s232 = scalar_select %p231, %s15, 1
      %s233 = smul.addr %s232, 8
      %s234 = scalar_lea.vmem %s4, %s233
      // Predicated region
      $region37: #{transformer_with_pe_forward.14} parent=35 // pred_check
        %p235 = pneg %p122
      $region38: #{transformer_with_pe_forward.14} parent=35 // pred_check_branch
        %237 = sbr.rel (%p235) target = $region40
      $region39: #{transformer_with_pe_forward.14} parent=35 // pred_region
        _
      $region40: #{transformer_with_pe_forward.14} parent=35 // pred_fallthru
        _
    $region36: #{transformer_with_pe_forward.14} parent=5 // pred_fallthru
      _
    %p238 = scmp.le.s32.totalorder 2, %s10
    // Predicated region
    $region41: #{transformer_with_pe_forward.14} parent=5 // pred_check
      %p239 = pneg %p238
    $region42: #{transformer_with_pe_forward.14} parent=5 // pred_check_branch
      %241 = sbr.rel (%p239) target = $region44
    $region43: #{transformer_with_pe_forward.14} parent=5 // pred_region
      %s242 = ssub.s32 %s10, 2
      // Predicated region
      $region45: #{transformer_with_pe_forward.14} parent=43 // pred_check
        %p243 = pneg %p128
      $region46: #{transformer_with_pe_forward.14} parent=43 // pred_check_branch
        %245 = sbr.rel (%p243) target = $region48
      $region47: #{transformer_with_pe_forward.14} parent=43 // pred_region
        %p246 = scmp.lt.s32.totalorder %s16, 1
        %s247 = scalar_select %p246, %s16, 1
        %s248 = smul.addr %s247, 8
        %s249 = scalar_lea.vmem %s4, %s248
      $region48: #{transformer_with_pe_forward.14} parent=43 // pred_fallthru
        _
    $region44: #{transformer_with_pe_forward.14} parent=5 // pred_fallthru
      _
  $region6: #{transformer_with_pe_forward.14} parent=0 // loop_footer
    %s14 = sadd.s32 1, %s10
  $region7: #{transformer_with_pe_forward.14} parent=0 // loop_footer_branch
    %9 = sbr.rel target = $region3
  $region8: #{transformer_with_pe_forward.14} parent=0 // loop_exit
    _

// kernel: transformer_with_pe_forward.16
$region0: #{transformer_with_pe_forward.16}
  #allocation0 [shape = 'u32[]', space=smem, size = 0x4, offset = 0x4, fixed_abs, tag = 'smem constant byte address 0x4 - core index']
  #allocation1 [shape = 'u32[72,128]{1,0:T(1,128)}', space=vmem, size = 0x9000, scoped, tag = 'internal scratch']
  %s0 = inlined_call_operand.vmem [shape: f32[2,8,32], index: 0, kind: input, shape index: {}]
  %s1 = inlined_call_operand.vmem [shape: f32[32,96], index: 1, kind: input, shape index: {}]
  %s2 = inlined_call_operand.vmem [shape: f32[1,96], index: 2, kind: input, shape index: {}]
  %s3 = inlined_call_operand.vmem [shape: f32[32,32], index: 3, kind: input, shape index: {}]
  %s4 = inlined_call_operand.vmem [shape: f32[1,32], index: 4, kind: input, shape index: {}]
  %s5 = inlined_call_operand.vmem [shape: f32[1,32], index: 5, kind: input, shape index: {}]
  %s6 = inlined_call_operand.vmem [shape: f32[1,32], index: 6, kind: input, shape index: {}]
  %s7 = inlined_call_operand.vmem [shape: f32[2,8,32], index: 7, kind: output, shape index: {}]
  %s8 = sld [smem:[#allocation0]]
  $region61: #{transformer_with_pe_forward.16} parent=0
    _
  %s10 = ssub.s32 1, %s8
  %s11 = scalar_select 0, %s10, %s8
  loop: start=0, step=1, limit=4
  $region2: #{transformer_with_pe_forward.16} parent=0 // loop_pre_header
    _
  $region3: #{transformer_with_pe_forward.16} parent=0 // loop_header
    %s13 = sphi 0, %s17
    %p14 = scmp.ge.s32.totalorder %s13, 4
    %s23 = sphi 0, %s25
    %s26 = sphi 0, %s23
    %s27 = sphi 0, %s26
    %s43 = sphi 0, %s27
    %s47 = sphi 0, %s47
    %s49 = sphi 0, %s47
    %s50 = sphi 0, %s49
    %s64 = sphi 0, %s50
    %s68 = sphi 0, %s68
    %s70 = sphi 0, %s68
    %s71 = sphi 0, %s70
    %s85 = sphi 0, %s71
    %s89 = sphi 0, %s89
    %s91 = sphi 0, %s89
    %s92 = sphi 0, %s91
    %s106 = sphi 0, %s92
    %s110 = sphi 0, %s110
    %s112 = sphi 0, %s110
    %s113 = sphi 0, %s112
    %s127 = sphi 0, %s113
    %s131 = sphi 0, %s131
    %s133 = sphi 0, %s131
    %s134 = sphi 0, %s133
    %s148 = sphi 0, %s134
    %s152 = sphi 0, %s152
    %s154 = sphi 0, %s152
    %s155 = sphi 0, %s154
    %s169 = sphi 0, %s155
    %s175 = sphi 0, %s177
    %s178 = sphi 0, %s175
    %s179 = sphi 0, %s178
    %s195 = sphi 0, %s179
  $region4: #{transformer_with_pe_forward.16} parent=0 // loop_header_branch
    %16 = sbr.rel (%p14) target = $region8
  $region5: #{transformer_with_pe_forward.16} parent=0 // loop_body
    %s18 = ssub.s32 %s13, 1
    %s19 = ssub.s32 %s13, 2
    %s20 = sadd.s32 %s13, 1
    %s21 = ssub.s32 %s13, %s20
    %p22 = scmp.eq.s32.totalorder %s21, 0
    %s24 = sadd.s32 %s23, 1
    %s25 = scalar_select %p22, %s23, %s24
    %p28 = pneg %p22
    %p29 = scmp.eq.s32.totalorder %s13, 1
    %p30 = por %p28, %p29
    %p31 = scmp.ne.s32.totalorder %s23, %s26
    %p32 = scmp.eq.s32.totalorder %s13, 0
    %p33 = por %p31, %p32
    %p34 = scmp.ne.s32.totalorder %s23, %s26
    %p35 = scmp.eq.s32.totalorder %s18, 1
    %p36 = por %p34, %p35
    %p37 = scmp.ne.s32.totalorder %s26, %s27
    %p38 = scmp.eq.s32.totalorder %s18, 0
    %p39 = por %p37, %p38
    %p40 = scmp.ne.s32.totalorder %s26, %s27
    %p41 = scmp.eq.s32.totalorder %s19, 1
    %p42 = por %p40, %p41
    %p44 = scmp.ne.s32.totalorder %s27, %s43
    %p45 = scmp.eq.s32.totalorder %s19, 0
    %p46 = por %p44, %p45
    %s48 = sadd.s32 %s47, 1
    %p51 = scmp.eq.s32.totalorder %s13, 1
    %p52 = scmp.ne.s32.totalorder %s47, %s49
    %p53 = scmp.eq.s32.totalorder %s13, 0
    %p54 = por %p52, %p53
    %p55 = scmp.ne.s32.totalorder %s47, %s49
    %p56 = scmp.eq.s32.totalorder %s18, 1
    %p57 = por %p55, %p56
    %p58 = scmp.ne.s32.totalorder %s49, %s50
    %p59 = scmp.eq.s32.totalorder %s18, 0
    %p60 = por %p58, %p59
    %p61 = scmp.ne.s32.totalorder %s49, %s50
    %p62 = scmp.eq.s32.totalorder %s19, 1
    %p63 = por %p61, %p62
    %p65 = scmp.ne.s32.totalorder %s50, %s64
    %p66 = scmp.eq.s32.totalorder %s19, 0
    %p67 = por %p65, %p66
    %s69 = sadd.s32 %s68, 1
    %p72 = scmp.eq.s32.totalorder %s13, 1
    %p73 = scmp.ne.s32.totalorder %s68, %s70
    %p74 = scmp.eq.s32.totalorder %s13, 0
    %p75 = por %p73, %p74
    %p76 = scmp.ne.s32.totalorder %s68, %s70
    %p77 = scmp.eq.s32.totalorder %s18, 1
    %p78 = por %p76, %p77
    %p79 = scmp.ne.s32.totalorder %s70, %s71
    %p80 = scmp.eq.s32.totalorder %s18, 0
    %p81 = por %p79, %p80
    %p82 = scmp.ne.s32.totalorder %s70, %s71
    %p83 = scmp.eq.s32.totalorder %s19, 1
    %p84 = por %p82, %p83
    %p86 = scmp.ne.s32.totalorder %s71, %s85
    %p87 = scmp.eq.s32.totalorder %s19, 0
    %p88 = por %p86, %p87
    %s90 = sadd.s32 %s89, 1
    %p93 = scmp.eq.s32.totalorder %s13, 1
    %p94 = scmp.ne.s32.totalorder %s89, %s91
    %p95 = scmp.eq.s32.totalorder %s13, 0
    %p96 = por %p94, %p95
    %p97 = scmp.ne.s32.totalorder %s89, %s91
    %p98 = scmp.eq.s32.totalorder %s18, 1
    %p99 = por %p97, %p98
    %p100 = scmp.ne.s32.totalorder %s91, %s92
    %p101 = scmp.eq.s32.totalorder %s18, 0
    %p102 = por %p100, %p101
    %p103 = scmp.ne.s32.totalorder %s91, %s92
    %p104 = scmp.eq.s32.totalorder %s19, 1
    %p105 = por %p103, %p104
    %p107 = scmp.ne.s32.totalorder %s92, %s106
    %p108 = scmp.eq.s32.totalorder %s19, 0
    %p109 = por %p107, %p108
    %s111 = sadd.s32 %s110, 1
    %p114 = scmp.eq.s32.totalorder %s13, 1
    %p115 = scmp.ne.s32.totalorder %s110, %s112
    %p116 = scmp.eq.s32.totalorder %s13, 0
    %p117 = por %p115, %p116
    %p118 = scmp.ne.s32.totalorder %s110, %s112
    %p119 = scmp.eq.s32.totalorder %s18, 1
    %p120 = por %p118, %p119
    %p121 = scmp.ne.s32.totalorder %s112, %s113
    %p122 = scmp.eq.s32.totalorder %s18, 0
    %p123 = por %p121, %p122
    %p124 = scmp.ne.s32.totalorder %s112, %s113
    %p125 = scmp.eq.s32.totalorder %s19, 1
    %p126 = por %p124, %p125
    %p128 = scmp.ne.s32.totalorder %s113, %s127
    %p129 = scmp.eq.s32.totalorder %s19, 0
    %p130 = por %p128, %p129
    %s132 = sadd.s32 %s131, 1
    %p135 = scmp.eq.s32.totalorder %s13, 1
    %p136 = scmp.ne.s32.totalorder %s131, %s133
    %p137 = scmp.eq.s32.totalorder %s13, 0
    %p138 = por %p136, %p137
    %p139 = scmp.ne.s32.totalorder %s131, %s133
    %p140 = scmp.eq.s32.totalorder %s18, 1
    %p141 = por %p139, %p140
    %p142 = scmp.ne.s32.totalorder %s133, %s134
    %p143 = scmp.eq.s32.totalorder %s18, 0
    %p144 = por %p142, %p143
    %p145 = scmp.ne.s32.totalorder %s133, %s134
    %p146 = scmp.eq.s32.totalorder %s19, 1
    %p147 = por %p145, %p146
    %p149 = scmp.ne.s32.totalorder %s134, %s148
    %p150 = scmp.eq.s32.totalorder %s19, 0
    %p151 = por %p149, %p150
    %s153 = sadd.s32 %s152, 1
    %p156 = scmp.eq.s32.totalorder %s13, 1
    %p157 = scmp.ne.s32.totalorder %s152, %s154
    %p158 = scmp.eq.s32.totalorder %s13, 0
    %p159 = por %p157, %p158
    %p160 = scmp.ne.s32.totalorder %s152, %s154
    %p161 = scmp.eq.s32.totalorder %s18, 1
    %p162 = por %p160, %p161
    %p163 = scmp.ne.s32.totalorder %s154, %s155
    %p164 = scmp.eq.s32.totalorder %s18, 0
    %p165 = por %p163, %p164
    %p166 = scmp.ne.s32.totalorder %s154, %s155
    %p167 = scmp.eq.s32.totalorder %s19, 1
    %p168 = por %p166, %p167
    %p170 = scmp.ne.s32.totalorder %s155, %s169
    %p171 = scmp.eq.s32.totalorder %s19, 0
    %p172 = por %p170, %p171
    %s173 = ssub.s32 %s13, %s20
    %p174 = scmp.eq.s32.totalorder %s173, 0
    %s176 = sadd.s32 %s175, 1
    %s177 = scalar_select %p174, %s175, %s176
    %p180 = pneg %p174
    %p181 = scmp.eq.s32.totalorder %s13, 1
    %p182 = por %p180, %p181
    %p183 = scmp.ne.s32.totalorder %s175, %s178
    %p184 = scmp.eq.s32.totalorder %s13, 0
    %p185 = por %p183, %p184
    %p186 = scmp.ne.s32.totalorder %s175, %s178
    %p187 = scmp.eq.s32.totalorder %s18, 1
    %p188 = por %p186, %p187
    %p189 = scmp.ne.s32.totalorder %s178, %s179
    %p190 = scmp.eq.s32.totalorder %s18, 0
    %p191 = por %p189, %p190
    %p192 = scmp.ne.s32.totalorder %s178, %s179
    %p193 = scmp.eq.s32.totalorder %s19, 1
    %p194 = por %p192, %p193
    %p196 = scmp.ne.s32.totalorder %s179, %s195
    %p197 = scmp.eq.s32.totalorder %s19, 0
    %p198 = por %p196, %p197
    %p199 = scmp.le.s32.totalorder 1, %s13
    %p200 = scmp.lt.s32.totalorder %s13, 3
    %p201 = pnand %p199, %p200
    %p202 = pneg %p201
    // Predicated region
    $region9: #{transformer_with_pe_forward.16} parent=5 // pred_check
      _
    $region10: #{transformer_with_pe_forward.16} parent=5 // pred_check_branch
      %204 = sbr.rel (%p201) target = $region12
    $region11: #{transformer_with_pe_forward.16} parent=5 // pred_region
      %s205 = ssub.s32 %s13, 1
      // Predicated region
      $region13: #{transformer_with_pe_forward.16} parent=11 // pred_check
        %p206 = pneg %p60
      $region14: #{transformer_with_pe_forward.16} parent=11 // pred_check_branch
        %208 = sbr.rel (%p206) target = $region16
      $region15: #{transformer_with_pe_forward.16} parent=11 // pred_region
        _
      $region16: #{transformer_with_pe_forward.16} parent=11 // pred_fallthru
        _
      // Predicated region
      $region17: #{transformer_with_pe_forward.16} parent=11 // pred_check
        %p209 = pneg %p81
      $region18: #{transformer_with_pe_forward.16} parent=11 // pred_check_branch
        %211 = sbr.rel (%p209) target = $region20
      $region19: #{transformer_with_pe_forward.16} parent=11 // pred_region
        _
      $region20: #{transformer_with_pe_forward.16} parent=11 // pred_fallthru
        _
      // Predicated region
      $region21: #{transformer_with_pe_forward.16} parent=11 // pred_check
        %p212 = pneg %p102
      $region22: #{transformer_with_pe_forward.16} parent=11 // pred_check_branch
        %214 = sbr.rel (%p212) target = $region24
      $region23: #{transformer_with_pe_forward.16} parent=11 // pred_region
        _
      $region24: #{transformer_with_pe_forward.16} parent=11 // pred_fallthru
        _
      // Predicated region
      $region25: #{transformer_with_pe_forward.16} parent=11 // pred_check
        %p215 = pneg %p123
      $region26: #{transformer_with_pe_forward.16} parent=11 // pred_check_branch
        %217 = sbr.rel (%p215) target = $region28
      $region27: #{transformer_with_pe_forward.16} parent=11 // pred_region
        _
      $region28: #{transformer_with_pe_forward.16} parent=11 // pred_fallthru
        _
      // Predicated region
      $region29: #{transformer_with_pe_forward.16} parent=11 // pred_check
        %p218 = pneg %p144
      $region30: #{transformer_with_pe_forward.16} parent=11 // pred_check_branch
        %220 = sbr.rel (%p218) target = $region32
      $region31: #{transformer_with_pe_forward.16} parent=11 // pred_region
        _
      $region32: #{transformer_with_pe_forward.16} parent=11 // pred_fallthru
        _
      // Predicated region
      $region33: #{transformer_with_pe_forward.16} parent=11 // pred_check
        %p221 = pneg %p165
      $region34: #{transformer_with_pe_forward.16} parent=11 // pred_check_branch
        %223 = sbr.rel (%p221) target = $region36
      $region35: #{transformer_with_pe_forward.16} parent=11 // pred_region
        _
      $region36: #{transformer_with_pe_forward.16} parent=11 // pred_fallthru
        _
    $region12: #{transformer_with_pe_forward.16} parent=5 // pred_fallthru
      _
    %p224 = scmp.lt.s32.totalorder %s13, 2
    // Predicated region
    $region37: #{transformer_with_pe_forward.16} parent=5 // pred_check
      %p225 = pneg %p224
    $region38: #{transformer_with_pe_forward.16} parent=5 // pred_check_branch
      %227 = sbr.rel (%p225) target = $region40
    $region39: #{transformer_with_pe_forward.16} parent=5 // pred_region
      // Predicated region
      $region41: #{transformer_with_pe_forward.16} parent=39 // pred_check
        %p228 = pneg %p33
      $region42: #{transformer_with_pe_forward.16} parent=39 // pred_check_branch
        %230 = sbr.rel (%p228) target = $region44
      $region43: #{transformer_with_pe_forward.16} parent=39 // pred_region
        %p231 = scmp.lt.s32.totalorder %s13, 1
        %s232 = scalar_select %p231, %s13, 1
        %s233 = smul.addr %s232, 8
        %s234 = scalar_lea.vmem %s0, %s233
      $region44: #{transformer_with_pe_forward.16} parent=39 // pred_fallthru
        _
    $region40: #{transformer_with_pe_forward.16} parent=5 // pred_fallthru
      _
    %p235 = scmp.le.s32.totalorder 1, %s13
    %p236 = scmp.lt.s32.totalorder %s13, 3
    %p237 = pnand %p235, %p236
    %p238 = pneg %p237
    // Predicated region
    $region45: #{transformer_with_pe_forward.16} parent=5 // pred_check
      _
    $region46: #{transformer_with_pe_forward.16} parent=5 // pred_check_branch
      %240 = sbr.rel (%p237) target = $region48
    $region47: #{transformer_with_pe_forward.16} parent=5 // pred_region
      %s241 = ssub.s32 %s13, 1
      %p242 = scmp.lt.s32.totalorder %s18, 1
      %s243 = scalar_select %p242, %s18, 1
      %s244 = smul.addr %s243, 8
      %s245 = scalar_lea.vmem %s0, %s244
      %p246 = pneg %p39
      %p247 = pneg %p36
      %p248 = pneg %p60
      %p249 = pneg %p57
      %p250 = pneg %p81
      %p251 = pneg %p78
      %p252 = pneg %p102
      %p253 = pneg %p99
      %p254 = pneg %p123
      %p255 = pneg %p120
      %p256 = pneg %p144
      %p257 = pneg %p141
      %p258 = pneg %p165
      %p259 = pneg %p162
      %p260 = pneg %p191
      %p261 = pneg %p188
      %p262 = scmp.lt.s32.totalorder %s18, 1
      %s263 = scalar_select %p262, %s18, 1
      %s264 = smul.addr %s263, 8
      %s265 = scalar_lea.vmem %s7, %s264
      %p266 = scmp.lt.s32.totalorder %s18, 1
      %s267 = scalar_select %p266, %s18, 1
      %s268 = smul.addr %s267, 8
      %s269 = scalar_lea.vmem %s0, %s268
      %p270 = scmp.lt.s32.totalorder %s18, 1
      %s271 = scalar_select %p270, %s18, 1
      %s272 = smul.addr %s271, 8
      %s273 = scalar_lea.vmem %s7, %s272
      %v274 = vld [vmem:[%s269] sm:$0xff]
      %v275 = vld [vmem:[%s1] sm:$0xff]
      %v276 = vld [vmem:[%s1 + $0x8] sm:$0xff]
      %v277 = vld [vmem:[%s1 + $0x10] sm:$0xff]
      %v278 = vld [vmem:[%s1 + $0x18] sm:$0xff]
      %v279 = vld [vmem:[%s2] sm:$0x1]
      %v281 = vperm.slane %v279, 0
      %vm283 = vcmask 261120
      %v285 = vsel %vm283, %v274, 0
      %287 = vmatpush.msra.mxu0 0.0
      %288 = vmatpush.msra.mxu0 0.0
      %289 = vmatpush.msra.mxu0 0.0
      %290 = vmatpush.msra.mxu0 0.0
      %291 = vmatpush.msra.mxu0 0.0
      %292 = vmatpush.msra.mxu0 0.0
      %293 = vmatpush.msra.mxu0 0.0
      %294 = vmatpush.msra.mxu0 0.0
      %295 = vmatpush.msra.mxu0 0.0
      %296 = vmatpush.msra.mxu0 0.0
      %297 = vmatpush.msra.mxu0 0.0
      %298 = vmatpush.msra.mxu0 0.0
      %299 = vmatpush.msra.mxu0 %v278
      %300 = vmatpush.msra.mxu0 %v277
      %301 = vmatpush.msra.mxu0 %v276
      %302 = vmatpush.msra.mxu0 %v275
      %303 = vmatmul.f32.gmra.mxu0 %v285
      %v304 = vpop.f32.mrf.mxu0
      %v305 = vadd.f32 %v281, %v304
      %306 = vdwg.mxu0
      %308 = vrot.lane.b32.xlu0 %v305, 96
      %v309 = vpop.permute.xlu0 %308
      %vm310 = vcmask 64512
      %v311 = vsel %vm310, %v305, 0
      %v313 = vsel %vm310, %v309, 0
      %315 = vmatpush.xpose.msra.mxu0 0.0
      %316 = vmatpush.xpose.msra.mxu0 0.0
      %317 = vmatpush.xpose.msra.mxu0 0.0
      %318 = vmatpush.xpose.msra.mxu0 0.0
      %319 = vmatpush.xpose.msra.mxu0 0.0
      %320 = vmatpush.xpose.msra.mxu0 0.0
      %321 = vmatpush.xpose.msra.mxu0 0.0
      %322 = vmatpush.xpose.msra.mxu0 0.0
      %323 = vmatpush.xpose.msra.mxu0 0.0
      %324 = vmatpush.xpose.msra.mxu0 0.0
      %325 = vmatpush.xpose.msra.mxu0 0.0
      %326 = vmatpush.xpose.msra.mxu0 0.0
      %327 = vmatpush.xpose.msra.mxu0 0.0
      %328 = vmatpush.xpose.msra.mxu0 0.0
      %329 = vmatpush.xpose.msra.mxu0 0.0
      %330 = vmatpush.xpose.msra.mxu0 %v313
      %331 = vmatmul.f32.gmra.mxu0 %v311
      %v332 = vpop.f32.mrf.mxu0
      %v333 = vadd.f32 0.0, %v332
      %334 = vdwg.mxu0
      %v335 = vmul.f32 %v333, 0.35355338
      %v336 = vsel %vm310, %v335, -inf
      %337 = vmax.xlane.f32.xlu0 %v336
      %v338 = vpop.xlane.xlu0 %337
      %v339 = vsub.f32 %v335, %v338
      %v340 = vmul.f32 %v339, 1.442695
      %v341 = vpow.pop %v340
      %v342 = vsel %vm310, %v341, 0.0
      %343 = vadd.xlane.f32.xlu0 %v342
      %v344 = vpop.xlane.xlu0 %343
      %v345 = vrcp.pop %v344
      %v346 = vmul.f32 %v341, %v345
      %347 = vrot.lane.b32.xlu0 %v305, 64
      %v348 = vpop.permute.xlu0 %347
      %v351 = vsel %vm310, %v346, 0
      %353 = vmatpush.msra.mxu0 0.0
      %354 = vmatpush.msra.mxu0 0.0
      %355 = vmatpush.msra.mxu0 0.0
      %356 = vmatpush.msra.mxu0 0.0
      %357 = vmatpush.msra.mxu0 0.0
      %358 = vmatpush.msra.mxu0 0.0
      %359 = vmatpush.msra.mxu0 0.0
      %360 = vmatpush.msra.mxu0 0.0
      %361 = vmatpush.msra.mxu0 0.0
      %362 = vmatpush.msra.mxu0 0.0
      %363 = vmatpush.msra.mxu0 0.0
      %364 = vmatpush.msra.mxu0 0.0
      %365 = vmatpush.msra.mxu0 0.0
      %366 = vmatpush.msra.mxu0 0.0
      %367 = vmatpush.msra.mxu0 0.0
      %368 = vmatpush.msra.mxu0 %v348
      %369 = vmatmul.f32.gmra.mxu0 %v351
      %v370 = vpop.f32.mrf.mxu0
      %v371 = vadd.f32 0.0, %v370
      %372 = vdwg.mxu0
      %373 = vrot.lane.b32.xlu0 %v305, 120
      %v374 = vpop.permute.xlu0 %373
      %375 = vrot.lane.b32.xlu0 %v305, 88
      %v376 = vpop.permute.xlu0 %375
      %v377 = vsel %vm310, %v374, 0
      %v379 = vsel %vm310, %v376, 0
      %381 = vmatpush.xpose.msra.mxu0 0.0
      %382 = vmatpush.xpose.msra.mxu0 0.0
      %383 = vmatpush.xpose.msra.mxu0 0.0
      %384 = vmatpush.xpose.msra.mxu0 0.0
      %385 = vmatpush.xpose.msra.mxu0 0.0
      %386 = vmatpush.xpose.msra.mxu0 0.0
      %387 = vmatpush.xpose.msra.mxu0 0.0
      %388 = vmatpush.xpose.msra.mxu0 0.0
      %389 = vmatpush.xpose.msra.mxu0 0.0
      %390 = vmatpush.xpose.msra.mxu0 0.0
      %391 = vmatpush.xpose.msra.mxu0 0.0
      %392 = vmatpush.xpose.msra.mxu0 0.0
      %393 = vmatpush.xpose.msra.mxu0 0.0
      %394 = vmatpush.xpose.msra.mxu0 0.0
      %395 = vmatpush.xpose.msra.mxu0 0.0
      %396 = vmatpush.xpose.msra.mxu0 %v379
      %397 = vmatmul.f32.gmra.mxu0 %v377
      %v398 = vpop.f32.mrf.mxu0
      %v399 = vadd.f32 0.0, %v398
      %400 = vdwg.mxu0
      %v401 = vmul.f32 %v399, 0.35355338
      %v402 = vsel %vm310, %v401, -inf
      %403 = vmax.xlane.f32.xlu0 %v402
      %v404 = vpop.xlane.xlu0 %403
      %v405 = vsub.f32 %v401, %v404
      %v406 = vmul.f32 %v405, 1.442695
      %v407 = vpow.pop %v406
      %v408 = vsel %vm310, %v407, 0.0
      %409 = vadd.xlane.f32.xlu0 %v408
      %v410 = vpop.xlane.xlu0 %409
      %v411 = vrcp.pop %v410
      %v412 = vmul.f32 %v407, %v411
      %413 = vrot.lane.b32.xlu0 %v305, 56
      %v414 = vpop.permute.xlu0 %413
      %v417 = vsel %vm310, %v412, 0
      %419 = vmatpush.msra.mxu0 0.0
      %420 = vmatpush.msra.mxu0 0.0
      %421 = vmatpush.msra.mxu0 0.0
      %422 = vmatpush.msra.mxu0 0.0
      %423 = vmatpush.msra.mxu0 0.0
      %424 = vmatpush.msra.mxu0 0.0
      %425 = vmatpush.msra.mxu0 0.0
      %426 = vmatpush.msra.mxu0 0.0
      %427 = vmatpush.msra.mxu0 0.0
      %428 = vmatpush.msra.mxu0 0.0
      %429 = vmatpush.msra.mxu0 0.0
      %430 = vmatpush.msra.mxu0 0.0
      %431 = vmatpush.msra.mxu0 0.0
      %432 = vmatpush.msra.mxu0 0.0
      %433 = vmatpush.msra.mxu0 0.0
      %434 = vmatpush.msra.mxu0 %v414
      %435 = vmatmul.f32.gmra.mxu0 %v417
      %v436 = vpop.f32.mrf.mxu0
      %v437 = vadd.f32 0.0, %v436
      %438 = vdwg.mxu0
      %439 = vrot.lane.b32.xlu0 %v305, 112
      %v440 = vpop.permute.xlu0 %439
      %441 = vrot.lane.b32.xlu0 %v305, 80
      %v442 = vpop.permute.xlu0 %441
      %v443 = vsel %vm310, %v440, 0
      %v445 = vsel %vm310, %v442, 0
      %447 = vmatpush.xpose.msra.mxu0 0.0
      %448 = vmatpush.xpose.msra.mxu0 0.0
      %449 = vmatpush.xpose.msra.mxu0 0.0
      %450 = vmatpush.xpose.msra.mxu0 0.0
      %451 = vmatpush.xpose.msra.mxu0 0.0
      %452 = vmatpush.xpose.msra.mxu0 0.0
      %453 = vmatpush.xpose.msra.mxu0 0.0
      %454 = vmatpush.xpose.msra.mxu0 0.0
      %455 = vmatpush.xpose.msra.mxu0 0.0
      %456 = vmatpush.xpose.msra.mxu0 0.0
      %457 = vmatpush.xpose.msra.mxu0 0.0
      %458 = vmatpush.xpose.msra.mxu0 0.0
      %459 = vmatpush.xpose.msra.mxu0 0.0
      %460 = vmatpush.xpose.msra.mxu0 0.0
      %461 = vmatpush.xpose.msra.mxu0 0.0
      %462 = vmatpush.xpose.msra.mxu0 %v445
      %463 = vmatmul.f32.gmra.mxu0 %v443
      %v464 = vpop.f32.mrf.mxu0
      %v465 = vadd.f32 0.0, %v464
      %466 = vdwg.mxu0
      %v467 = vmul.f32 %v465, 0.35355338
      %v468 = vsel %vm310, %v467, -inf
      %469 = vmax.xlane.f32.xlu0 %v468
      %v470 = vpop.xlane.xlu0 %469
      %v471 = vsub.f32 %v467, %v470
      %v472 = vmul.f32 %v471, 1.442695
      %v473 = vpow.pop %v472
      %v474 = vsel %vm310, %v473, 0.0
      %475 = vadd.xlane.f32.xlu0 %v474
      %v476 = vpop.xlane.xlu0 %475
      %v477 = vrcp.pop %v476
      %v478 = vmul.f32 %v473, %v477
      %479 = vrot.lane.b32.xlu0 %v305, 48
      %v480 = vpop.permute.xlu0 %479
      %v483 = vsel %vm310, %v478, 0
      %485 = vmatpush.msra.mxu0 0.0
      %486 = vmatpush.msra.mxu0 0.0
      %487 = vmatpush.msra.mxu0 0.0
      %488 = vmatpush.msra.mxu0 0.0
      %489 = vmatpush.msra.mxu0 0.0
      %490 = vmatpush.msra.mxu0 0.0
      %491 = vmatpush.msra.mxu0 0.0
      %492 = vmatpush.msra.mxu0 0.0
      %493 = vmatpush.msra.mxu0 0.0
      %494 = vmatpush.msra.mxu0 0.0
      %495 = vmatpush.msra.mxu0 0.0
      %496 = vmatpush.msra.mxu0 0.0
      %497 = vmatpush.msra.mxu0 0.0
      %498 = vmatpush.msra.mxu0 0.0
      %499 = vmatpush.msra.mxu0 0.0
      %500 = vmatpush.msra.mxu0 %v480
      %501 = vmatmul.f32.gmra.mxu0 %v483
      %v502 = vpop.f32.mrf.mxu0
      %v503 = vadd.f32 0.0, %v502
      %504 = vdwg.mxu0
      %505 = vrot.lane.b32.xlu0 %v305, 104
      %v506 = vpop.permute.xlu0 %505
      %507 = vrot.lane.b32.xlu0 %v305, 72
      %v508 = vpop.permute.xlu0 %507
      %v509 = vsel %vm310, %v506, 0
      %v511 = vsel %vm310, %v508, 0
      %513 = vmatpush.xpose.msra.mxu0 0.0
      %514 = vmatpush.xpose.msra.mxu0 0.0
      %515 = vmatpush.xpose.msra.mxu0 0.0
      %516 = vmatpush.xpose.msra.mxu0 0.0
      %517 = vmatpush.xpose.msra.mxu0 0.0
      %518 = vmatpush.xpose.msra.mxu0 0.0
      %519 = vmatpush.xpose.msra.mxu0 0.0
      %520 = vmatpush.xpose.msra.mxu0 0.0
      %521 = vmatpush.xpose.msra.mxu0 0.0
      %522 = vmatpush.xpose.msra.mxu0 0.0
      %523 = vmatpush.xpose.msra.mxu0 0.0
      %524 = vmatpush.xpose.msra.mxu0 0.0
      %525 = vmatpush.xpose.msra.mxu0 0.0
      %526 = vmatpush.xpose.msra.mxu0 0.0
      %527 = vmatpush.xpose.msra.mxu0 0.0
      %528 = vmatpush.xpose.msra.mxu0 %v511
      %529 = vmatmul.f32.gmra.mxu0 %v509
      %v530 = vpop.f32.mrf.mxu0
      %v531 = vadd.f32 0.0, %v530
      %532 = vdwg.mxu0
      %v533 = vmul.f32 %v531, 0.35355338
      %v534 = vsel %vm310, %v533, -inf
      %535 = vmax.xlane.f32.xlu0 %v534
      %v536 = vpop.xlane.xlu0 %535
      %v537 = vsub.f32 %v533, %v536
      %v538 = vmul.f32 %v537, 1.442695
      %v539 = vpow.pop %v538
      %v540 = vsel %vm310, %v539, 0.0
      %541 = vadd.xlane.f32.xlu0 %v540
      %v542 = vpop.xlane.xlu0 %541
      %v543 = vrcp.pop %v542
      %v544 = vmul.f32 %v539, %v543
      %545 = vrot.lane.b32.xlu0 %v305, 40
      %v546 = vpop.permute.xlu0 %545
      %v549 = vsel %vm310, %v544, 0
      %551 = vmatpush.msra.mxu0 0.0
      %552 = vmatpush.msra.mxu0 0.0
      %553 = vmatpush.msra.mxu0 0.0
      %554 = vmatpush.msra.mxu0 0.0
      %555 = vmatpush.msra.mxu0 0.0
      %556 = vmatpush.msra.mxu0 0.0
      %557 = vmatpush.msra.mxu0 0.0
      %558 = vmatpush.msra.mxu0 0.0
      %559 = vmatpush.msra.mxu0 0.0
      %560 = vmatpush.msra.mxu0 0.0
      %561 = vmatpush.msra.mxu0 0.0
      %562 = vmatpush.msra.mxu0 0.0
      %563 = vmatpush.msra.mxu0 0.0
      %564 = vmatpush.msra.mxu0 0.0
      %565 = vmatpush.msra.mxu0 0.0
      %566 = vmatpush.msra.mxu0 %v546
      %567 = vmatmul.f32.gmra.mxu0 %v549
      %v568 = vpop.f32.mrf.mxu0
      %v569 = vadd.f32 0.0, %v568
      %570 = vdwg.mxu0
      %572 = vrot.lane.b32.xlu0 %v437, 8
      %v573 = vpop.permute.xlu0 %572
      %576 = vrot.lane.b32.xlu0 %v503, 16
      %v577 = vpop.permute.xlu0 %576
      %580 = vrot.lane.b32.xlu0 %v569, 24
      %v581 = vpop.permute.xlu0 %580
      %v583 = vsel %vm310, %v371, %v573
      %vm584 = vcmask 130048
      %v585 = vsel %vm584, %v583, %v577
      %vm586 = vcmask 195584
      %v587 = vsel %vm586, %v585, %v581
      %v588 = vld [vmem:[%s3] sm:$0xff]
      %v589 = vld [vmem:[%s3 + $0x8] sm:$0xff]
      %v590 = vld [vmem:[%s3 + $0x10] sm:$0xff]
      %v591 = vld [vmem:[%s3 + $0x18] sm:$0xff]
      %v592 = vld [vmem:[%s4] sm:$0x1]
      %v593 = vld [vmem:[%s5] sm:$0x1]
      %v594 = vld [vmem:[%s6] sm:$0x1]
      %v596 = vperm.slane %v592, 0
      %v599 = vsel %vm283, %v587, 0
      %601 = vmatpush.msra.mxu0 0.0
      %602 = vmatpush.msra.mxu0 0.0
      %603 = vmatpush.msra.mxu0 0.0
      %604 = vmatpush.msra.mxu0 0.0
      %605 = vmatpush.msra.mxu0 0.0
      %606 = vmatpush.msra.mxu0 0.0
      %607 = vmatpush.msra.mxu0 0.0
      %608 = vmatpush.msra.mxu0 0.0
      %609 = vmatpush.msra.mxu0 0.0
      %610 = vmatpush.msra.mxu0 0.0
      %611 = vmatpush.msra.mxu0 0.0
      %612 = vmatpush.msra.mxu0 0.0
      %613 = vmatpush.msra.mxu0 %v591
      %614 = vmatpush.msra.mxu0 %v590
      %615 = vmatpush.msra.mxu0 %v589
      %616 = vmatpush.msra.mxu0 %v588
      %617 = vmatmul.f32.gmra.mxu0 %v599
      %v618 = vpop.f32.mrf.mxu0
      %v619 = vadd.f32 %v596, %v618
      %620 = vdwg.mxu0
      %v621 = vadd.f32 %v619, %v274
      %v622 = vsel %vm283, %v621, 0.0
      %623 = vadd.xlane.f32.xlu0 %v622
      %v624 = vpop.xlane.xlu0 %623
      %v625 = vrcp.pop 32.0
      %v626 = vmul.f32 32.0, %v625
      %v627 = vsub.f32 1.0, %v626
      %v628 = vmul.f32 %v625, %v627
      %v629 = vadd.f32 %v625, %v628
      %vm630 = vweird.f32 %v625
      %v631 = vsel %vm630, %v625, %v629
      %v632 = vmul.f32 %v624, %v631
      %v633 = vsub.f32 %v621, %v632
      %v634 = vmul.f32 %v633, %v633
      %v635 = vsel %vm283, %v634, 0.0
      %636 = vadd.xlane.f32.xlu0 %v635
      %v637 = vpop.xlane.xlu0 %636
      %v638 = vmul.f32 %v637, %v631
      %v639 = vadd.f32 %v638, 1e-05
      %v640 = vrsqrt.pop %v639
      %v641 = vmul.f32 %v640, %v639
      %v642 = vmul.f32 %v641, %v640
      %v643 = vmul.f32 0.5, %v642
      %v644 = vsub.f32 1.5, %v643
      %v645 = vmul.f32 %v640, %v644
      %vm646 = vweird.f32 %v639
      %vm647 = vweird.f32 %v640
      %vm648 = vmor %vm646, %vm647
      %v649 = vsel %vm648, %v640, %v645
      %v650 = vmul.f32 %v633, %v649
      %v652 = vperm.slane %v593, 0
      %v654 = vmul.f32 %v650, %v652
      %v656 = vperm.slane %v594, 0
      %v658 = vadd.f32 %v654, %v656
      %659 = vst.msk [vmem:[%s273] sm:$0xff] %vm283, %v658
      %p660 = scmp.lt.s32.totalorder %s18, 1
      %s661 = scalar_select %p660, %s18, 1
      %s662 = smul.addr %s661, 8
      %s663 = scalar_lea.vmem %s7, %s662
      // Predicated region
      $region49: #{transformer_with_pe_forward.16} parent=47 // pred_check
        %p664 = pneg %p188
      $region50: #{transformer_with_pe_forward.16} parent=47 // pred_check_branch
        %666 = sbr.rel (%p664) target = $region52
      $region51: #{transformer_with_pe_forward.16} parent=47 // pred_region
        _
      $region52: #{transformer_with_pe_forward.16} parent=47 // pred_fallthru
        _
    $region48: #{transformer_with_pe_forward.16} parent=5 // pred_fallthru
      _
    %p667 = scmp.le.s32.totalorder 2, %s13
    // Predicated region
    $region53: #{transformer_with_pe_forward.16} parent=5 // pred_check
      %p668 = pneg %p667
    $region54: #{transformer_with_pe_forward.16} parent=5 // pred_check_branch
      %670 = sbr.rel (%p668) target = $region56
    $region55: #{transformer_with_pe_forward.16} parent=5 // pred_region
      %s671 = ssub.s32 %s13, 2
      // Predicated region
      $region57: #{transformer_with_pe_forward.16} parent=55 // pred_check
        %p672 = pneg %p194
      $region58: #{transformer_with_pe_forward.16} parent=55 // pred_check_branch
        %674 = sbr.rel (%p672) target = $region60
      $region59: #{transformer_with_pe_forward.16} parent=55 // pred_region
        %p675 = scmp.lt.s32.totalorder %s19, 1
        %s676 = scalar_select %p675, %s19, 1
        %s677 = smul.addr %s676, 8
        %s678 = scalar_lea.vmem %s7, %s677
      $region60: #{transformer_with_pe_forward.16} parent=55 // pred_fallthru
        _
    $region56: #{transformer_with_pe_forward.16} parent=5 // pred_fallthru
      _
  $region6: #{transformer_with_pe_forward.16} parent=0 // loop_footer
    %s17 = sadd.s32 1, %s13
  $region7: #{transformer_with_pe_forward.16} parent=0 // loop_footer_branch
    %12 = sbr.rel target = $region3
  $region8: #{transformer_with_pe_forward.16} parent=0 // loop_exit
    _

// kernel: transformer_with_pe_forward.17
$region0: #{transformer_with_pe_forward.17}
  #allocation0 [shape = 'u32[]', space=smem, size = 0x4, offset = 0x4, fixed_abs, tag = 'smem constant byte address 0x4 - core index']
  #allocation1 [shape = 'u32[72,128]{1,0:T(1,128)}', space=vmem, size = 0x9000, scoped, tag = 'internal scratch']
  #allocation2 [shape = 'f32[16,32]{1,0:T(8,128)}', space=vmem, size = 0x2000, scoped, tag = 'scratch operand']
  %s0 = inlined_call_operand.vmem [shape: f32[16,32], index: 0, kind: input, shape index: {}]
  %s1 = inlined_call_operand.vmem [shape: f32[32,2048], index: 1, kind: input, shape index: {}]
  %s2 = inlined_call_operand.vmem [shape: f32[1,2048], index: 2, kind: input, shape index: {}]
  %s3 = inlined_call_operand.vmem [shape: f32[2048,32], index: 3, kind: input, shape index: {}]
  %s4 = inlined_call_operand.vmem [shape: f32[1,32], index: 4, kind: input, shape index: {}]
  %s5 = inlined_call_operand.vmem [shape: f32[1,32], index: 5, kind: input, shape index: {}]
  %s6 = inlined_call_operand.vmem [shape: f32[1,32], index: 6, kind: input, shape index: {}]
  %s7 = inlined_call_operand.vmem [shape: f32[16,32], index: 7, kind: output, shape index: {}]
  %s8 = sld [smem:[#allocation0]]
  $region92: #{transformer_with_pe_forward.17} parent=0
    _
  %s10 = ssub.s32 1, %s8
  %s11 = scalar_select 0, %s10, %s8
  $region1: #{transformer_with_pe_forward.17} parent=0
    #allocation3 [shape = 'u8[131072]{0}', space=vmem, size = 0x20000, scoped, tag = 'input window, operand 1']
    loop: start=0, step=1, limit=6
    $region2: #{transformer_with_pe_forward.17} parent=1 // loop_pre_header
      _
    $region3: #{transformer_with_pe_forward.17} parent=1 // loop_header
      %s13 = sphi 0, %s17
      %p14 = scmp.ge.s32.totalorder %s13, 6
      %s20 = sphi 0, %s32
      %s21 = sphi 0, %s28
      %s22 = sphi 0, %s20
      %s23 = sphi 0, %s21
      %s24 = sphi 0, %s22
      %s25 = sphi 0, %s23
      %s35 = sphi 0, %s37
      %s38 = sphi 0, %s35
      %s39 = sphi 0, %s38
      %s55 = sphi 0, %s39
      %s61 = sphi 0, %s63
      %s64 = sphi 0, %s61
      %s65 = sphi 0, %s64
      %s81 = sphi 0, %s65
      %s87 = sphi 0, %s89
      %s90 = sphi 0, %s87
      %s91 = sphi 0, %s90
      %s107 = sphi 0, %s91
      %s113 = sphi 0, %s115
      %s116 = sphi 0, %s113
      %s117 = sphi 0, %s116
      %s133 = sphi 0, %s117
      %s137 = sphi 0, %s137
      %s139 = sphi 0, %s137
      %s140 = sphi 0, %s139
      %s154 = sphi 0, %s140
      %s158 = sphi 0, %s158
      %s160 = sphi 0, %s158
      %s161 = sphi 0, %s160
      %s175 = sphi 0, %s161
      %s179 = sphi 0, %s179
      %s181 = sphi 0, %s179
      %s182 = sphi 0, %s181
      %s196 = sphi 0, %s182
      %s202 = sphi 0, %s204
      %s205 = sphi 0, %s202
      %s206 = sphi 0, %s205
      %s222 = sphi 0, %s206
    $region4: #{transformer_with_pe_forward.17} parent=1 // loop_header_branch
      %16 = sbr.rel (%p14) target = $region8
    $region5: #{transformer_with_pe_forward.17} parent=1 // loop_body
      %s18 = ssub.s32 %s13, 1
      %s19 = ssub.s32 %s13, 2
      %s26 = sadd.s32 1, %s21
      %p27 = scmp.ge.s32.totalorder %s26, 4
      %s28 = scalar_select %p27, 0, %s26
      %s29 = sadd.s32 1, %s20
      %s30 = scalar_select %p27, %s29, %s20
      %p31 = scmp.ge.s32.totalorder %s30, 1
      %s32 = scalar_select %p31, 0, %s30
      %s33 = ssub.s32 %s20, %s32
      %p34 = scmp.eq.s32.totalorder %s33, 0
      %s36 = sadd.s32 %s35, 1
      %s37 = scalar_select %p34, %s35, %s36
      %p40 = pneg %p34
      %p41 = scmp.eq.s32.totalorder %s13, 3
      %p42 = por %p40, %p41
      %p43 = scmp.ne.s32.totalorder %s35, %s38
      %p44 = scmp.eq.s32.totalorder %s13, 0
      %p45 = por %p43, %p44
      %p46 = scmp.ne.s32.totalorder %s35, %s38
      %p47 = scmp.eq.s32.totalorder %s18, 3
      %p48 = por %p46, %p47
      %p49 = scmp.ne.s32.totalorder %s38, %s39
      %p50 = scmp.eq.s32.totalorder %s18, 0
      %p51 = por %p49, %p50
      %p52 = scmp.ne.s32.totalorder %s38, %s39
      %p53 = scmp.eq.s32.totalorder %s19, 3
      %p54 = por %p52, %p53
      %p56 = scmp.ne.s32.totalorder %s39, %s55
      %p57 = scmp.eq.s32.totalorder %s19, 0
      %p58 = por %p56, %p57
      %s59 = ssub.s32 %s21, %s28
      %p60 = scmp.eq.s32.totalorder %s59, 0
      %s62 = sadd.s32 %s61, 1
      %s63 = scalar_select %p60, %s61, %s62
      %p66 = pneg %p60
      %p67 = scmp.eq.s32.totalorder %s13, 3
      %p68 = por %p66, %p67
      %p69 = scmp.ne.s32.totalorder %s61, %s64
      %p70 = scmp.eq.s32.totalorder %s13, 0
      %p71 = por %p69, %p70
      %p72 = scmp.ne.s32.totalorder %s61, %s64
      %p73 = scmp.eq.s32.totalorder %s18, 3
      %p74 = por %p72, %p73
      %p75 = scmp.ne.s32.totalorder %s64, %s65
      %p76 = scmp.eq.s32.totalorder %s18, 0
      %p77 = por %p75, %p76
      %p78 = scmp.ne.s32.totalorder %s64, %s65
      %p79 = scmp.eq.s32.totalorder %s19, 3
      %p80 = por %p78, %p79
      %p82 = scmp.ne.s32.totalorder %s65, %s81
      %p83 = scmp.eq.s32.totalorder %s19, 0
      %p84 = por %p82, %p83
      %s85 = ssub.s32 %s21, %s28
      %p86 = scmp.eq.s32.totalorder %s85, 0
      %s88 = sadd.s32 %s87, 1
      %s89 = scalar_select %p86, %s87, %s88
      %p92 = pneg %p86
      %p93 = scmp.eq.s32.totalorder %s13, 3
      %p94 = por %p92, %p93
      %p95 = scmp.ne.s32.totalorder %s87, %s90
      %p96 = scmp.eq.s32.totalorder %s13, 0
      %p97 = por %p95, %p96
      %p98 = scmp.ne.s32.totalorder %s87, %s90
      %p99 = scmp.eq.s32.totalorder %s18, 3
      %p100 = por %p98, %p99
      %p101 = scmp.ne.s32.totalorder %s90, %s91
      %p102 = scmp.eq.s32.totalorder %s18, 0
      %p103 = por %p101, %p102
      %p104 = scmp.ne.s32.totalorder %s90, %s91
      %p105 = scmp.eq.s32.totalorder %s19, 3
      %p106 = por %p104, %p105
      %p108 = scmp.ne.s32.totalorder %s91, %s107
      %p109 = scmp.eq.s32.totalorder %s19, 0
      %p110 = por %p108, %p109
      %s111 = ssub.s32 %s21, %s28
      %p112 = scmp.eq.s32.totalorder %s111, 0
      %s114 = sadd.s32 %s113, 1
      %s115 = scalar_select %p112, %s113, %s114
      %p118 = pneg %p112
      %p119 = scmp.eq.s32.totalorder %s13, 3
      %p120 = por %p118, %p119
      %p121 = scmp.ne.s32.totalorder %s113, %s116
      %p122 = scmp.eq.s32.totalorder %s13, 0
      %p123 = por %p121, %p122
      %p124 = scmp.ne.s32.totalorder %s113, %s116
      %p125 = scmp.eq.s32.totalorder %s18, 3
      %p126 = por %p124, %p125
      %p127 = scmp.ne.s32.totalorder %s116, %s117
      %p128 = scmp.eq.s32.totalorder %s18, 0
      %p129 = por %p127, %p128
      %p130 = scmp.ne.s32.totalorder %s116, %s117
      %p131 = scmp.eq.s32.totalorder %s19, 3
      %p132 = por %p130, %p131
      %p134 = scmp.ne.s32.totalorder %s117, %s133
      %p135 = scmp.eq.s32.totalorder %s19, 0
      %p136 = por %p134, %p135
      %s138 = sadd.s32 %s137, 1
      %p141 = scmp.eq.s32.totalorder %s13, 3
      %p142 = scmp.ne.s32.totalorder %s137, %s139
      %p143 = scmp.eq.s32.totalorder %s13, 0
      %p144 = por %p142, %p143
      %p145 = scmp.ne.s32.totalorder %s137, %s139
      %p146 = scmp.eq.s32.totalorder %s18, 3
      %p147 = por %p145, %p146
      %p148 = scmp.ne.s32.totalorder %s139, %s140
      %p149 = scmp.eq.s32.totalorder %s18, 0
      %p150 = por %p148, %p149
      %p151 = scmp.ne.s32.totalorder %s139, %s140
      %p152 = scmp.eq.s32.totalorder %s19, 3
      %p153 = por %p151, %p152
      %p155 = scmp.ne.s32.totalorder %s140, %s154
      %p156 = scmp.eq.s32.totalorder %s19, 0
      %p157 = por %p155, %p156
      %s159 = sadd.s32 %s158, 1
      %p162 = scmp.eq.s32.totalorder %s13, 3
      %p163 = scmp.ne.s32.totalorder %s158, %s160
      %p164 = scmp.eq.s32.totalorder %s13, 0
      %p165 = por %p163, %p164
      %p166 = scmp.ne.s32.totalorder %s158, %s160
      %p167 = scmp.eq.s32.totalorder %s18, 3
      %p168 = por %p166, %p167
      %p169 = scmp.ne.s32.totalorder %s160, %s161
      %p170 = scmp.eq.s32.totalorder %s18, 0
      %p171 = por %p169, %p170
      %p172 = scmp.ne.s32.totalorder %s160, %s161
      %p173 = scmp.eq.s32.totalorder %s19, 3
      %p174 = por %p172, %p173
      %p176 = scmp.ne.s32.totalorder %s161, %s175
      %p177 = scmp.eq.s32.totalorder %s19, 0
      %p178 = por %p176, %p177
      %s180 = sadd.s32 %s179, 1
      %p183 = scmp.eq.s32.totalorder %s13, 3
      %p184 = scmp.ne.s32.totalorder %s179, %s181
      %p185 = scmp.eq.s32.totalorder %s13, 0
      %p186 = por %p184, %p185
      %p187 = scmp.ne.s32.totalorder %s179, %s181
      %p188 = scmp.eq.s32.totalorder %s18, 3
      %p189 = por %p187, %p188
      %p190 = scmp.ne.s32.totalorder %s181, %s182
      %p191 = scmp.eq.s32.totalorder %s18, 0
      %p192 = por %p190, %p191
      %p193 = scmp.ne.s32.totalorder %s181, %s182
      %p194 = scmp.eq.s32.totalorder %s19, 3
      %p195 = por %p193, %p194
      %p197 = scmp.ne.s32.totalorder %s182, %s196
      %p198 = scmp.eq.s32.totalorder %s19, 0
      %p199 = por %p197, %p198
      %s200 = ssub.s32 %s20, %s32
      %p201 = scmp.eq.s32.totalorder %s200, 0
      %s203 = sadd.s32 %s202, 1
      %s204 = scalar_select %p201, %s202, %s203
      %p207 = pneg %p201
      %p208 = scmp.eq.s32.totalorder %s13, 3
      %p209 = por %p207, %p208
      %p210 = scmp.ne.s32.totalorder %s202, %s205
      %p211 = scmp.eq.s32.totalorder %s13, 0
      %p212 = por %p210, %p211
      %p213 = scmp.ne.s32.totalorder %s202, %s205
      %p214 = scmp.eq.s32.totalorder %s18, 3
      %p215 = por %p213, %p214
      %p216 = scmp.ne.s32.totalorder %s205, %s206
      %p217 = scmp.eq.s32.totalorder %s18, 0
      %p218 = por %p216, %p217
      %p219 = scmp.ne.s32.totalorder %s205, %s206
      %p220 = scmp.eq.s32.totalorder %s19, 3
      %p221 = por %p219, %p220
      %p223 = scmp.ne.s32.totalorder %s206, %s222
      %p224 = scmp.eq.s32.totalorder %s19, 0
      %p225 = por %p223, %p224
      %p226 = scmp.le.s32.totalorder 1, %s13
      %p227 = scmp.lt.s32.totalorder %s13, 5
      %p228 = pnand %p226, %p227
      %p229 = pneg %p228
      // Predicated region
      $region9: #{transformer_with_pe_forward.17} parent=5 // pred_check
        _
      $region10: #{transformer_with_pe_forward.17} parent=5 // pred_check_branch
        %231 = sbr.rel (%p228) target = $region12
      $region11: #{transformer_with_pe_forward.17} parent=5 // pred_region
        %s232 = ssub.s32 %s13, 1
        // Predicated region
        $region13: #{transformer_with_pe_forward.17} parent=11 // pred_check
          %p233 = pneg %p51
        $region14: #{transformer_with_pe_forward.17} parent=11 // pred_check_branch
          %235 = sbr.rel (%p233) target = $region16
        $region15: #{transformer_with_pe_forward.17} parent=11 // pred_region
          %s236 = smul.u32 2, %s22
          %p237 = scmp.lt.s32.totalorder %s236, 1
          %s238 = scalar_select %p237, %s236, 1
          %s239 = smul.addr %s238, 8
          %s240 = scalar_lea.vmem %s0, %s239
          %s241 = smul.u32 2, %s22
        $region16: #{transformer_with_pe_forward.17} parent=11 // pred_fallthru
          _
        // Predicated region
        $region17: #{transformer_with_pe_forward.17} parent=11 // pred_check
          %p242 = pneg %p150
        $region18: #{transformer_with_pe_forward.17} parent=11 // pred_check_branch
          %244 = sbr.rel (%p242) target = $region20
        $region19: #{transformer_with_pe_forward.17} parent=11 // pred_region
          _
        $region20: #{transformer_with_pe_forward.17} parent=11 // pred_fallthru
          _
        // Predicated region
        $region21: #{transformer_with_pe_forward.17} parent=11 // pred_check
          %p245 = pneg %p171
        $region22: #{transformer_with_pe_forward.17} parent=11 // pred_check_branch
          %247 = sbr.rel (%p245) target = $region24
        $region23: #{transformer_with_pe_forward.17} parent=11 // pred_region
          _
        $region24: #{transformer_with_pe_forward.17} parent=11 // pred_fallthru
          _
        // Predicated region
        $region25: #{transformer_with_pe_forward.17} parent=11 // pred_check
          %p248 = pneg %p192
        $region26: #{transformer_with_pe_forward.17} parent=11 // pred_check_branch
          %250 = sbr.rel (%p248) target = $region28
        $region27: #{transformer_with_pe_forward.17} parent=11 // pred_region
          _
        $region28: #{transformer_with_pe_forward.17} parent=11 // pred_fallthru
          _
      $region12: #{transformer_with_pe_forward.17} parent=5 // pred_fallthru
        _
      %p251 = scmp.lt.s32.totalorder %s13, 4
      // Predicated region
      $region29: #{transformer_with_pe_forward.17} parent=5 // pred_check
        %p252 = pneg %p251
      $region30: #{transformer_with_pe_forward.17} parent=5 // pred_check_branch
        %254 = sbr.rel (%p252) target = $region32
      $region31: #{transformer_with_pe_forward.17} parent=5 // pred_region
        // Predicated region
        $region33: #{transformer_with_pe_forward.17} parent=31 // pred_check
          %p255 = pneg %p71
        $region34: #{transformer_with_pe_forward.17} parent=31 // pred_check_branch
          %257 = sbr.rel (%p255) target = $region36
        $region35: #{transformer_with_pe_forward.17} parent=31 // pred_region
          %s258 = sand.u32 %s61, 1
          %s259 = sand.u32 %s61, 1
          %s260 = smul.addr %s259, 128
          %s261 = scalar_lea.vmem [#allocation3], %s260
          %s262 = smul.u32 4, %s21
          %s263 = smul.addr %s262, 8
          %s264 = scalar_lea.vmem %s1, %s263
          // Predicated region
          $region37: #{transformer_with_pe_forward.17} parent=35 // pred_check
            _
          $region38: #{transformer_with_pe_forward.17} parent=35 // pred_check_branch
            %266 = sbr.rel (0) target = $region40
          $region39: #{transformer_with_pe_forward.17} parent=35 // pred_region
            // Predicated region
            $region41: #{transformer_with_pe_forward.17} parent=39 // pred_check
              _
            $region42: #{transformer_with_pe_forward.17} parent=39 // pred_check_branch
              %268 = sbr.rel (0) target = $region44
            $region43: #{transformer_with_pe_forward.17} parent=39 // pred_region
              loop: start=0, step=1, limit=1
              $region45: #{transformer_with_pe_forward.17} parent=43 // loop_pre_header
                _
              $region46: #{transformer_with_pe_forward.17} parent=43 // loop_header
                %s270 = sphi 0, %s274
                %p271 = scmp.ge.s32.totalorder %s270, 1
                %s275 = sphi %s264, %s264
                %s276 = sphi %s261, %s261
              $region47: #{transformer_with_pe_forward.17} parent=43 // loop_header_branch
                %273 = sbr.rel (%p271) target = $region51
              $region48: #{transformer_with_pe_forward.17} parent=43 // loop_body
                %v277 = vld [vmem:[%s275] sm:$0xff]
                %278 = vst [vmem:[%s276] sm:$0xff] %v277
                %v279 = vld [vmem:[%s275 + $0x8] sm:$0xff]
                %280 = vst [vmem:[%s276 + $0x8] sm:$0xff] %v279
                %v281 = vld [vmem:[%s275 + $0x10] sm:$0xff]
                %282 = vst [vmem:[%s276 + $0x10] sm:$0xff] %v281
                %v283 = vld [vmem:[%s275 + $0x18] sm:$0xff]
                %284 = vst [vmem:[%s276 + $0x18] sm:$0xff] %v283
                %v285 = vld [vmem:[%s275 + $0x80] sm:$0xff]
                %286 = vst [vmem:[%s276 + $0x20] sm:$0xff] %v285
                %v287 = vld [vmem:[%s275 + $0x88] sm:$0xff]
                %288 = vst [vmem:[%s276 + $0x28] sm:$0xff] %v287
                %v289 = vld [vmem:[%s275 + $0x90] sm:$0xff]
                %290 = vst [vmem:[%s276 + $0x30] sm:$0xff] %v289
                %v291 = vld [vmem:[%s275 + $0x98] sm:$0xff]
                %292 = vst [vmem:[%s276 + $0x38] sm:$0xff] %v291
                %v293 = vld [vmem:[%s275 + $0x100] sm:$0xff]
                %294 = vst [vmem:[%s276 + $0x40] sm:$0xff] %v293
                %v295 = vld [vmem:[%s275 + $0x108] sm:$0xff]
                %296 = vst [vmem:[%s276 + $0x48] sm:$0xff] %v295
                %v297 = vld [vmem:[%s275 + $0x110] sm:$0xff]
                %298 = vst [vmem:[%s276 + $0x50] sm:$0xff] %v297
                %v299 = vld [vmem:[%s275 + $0x118] sm:$0xff]
                %300 = vst [vmem:[%s276 + $0x58] sm:$0xff] %v299
                %v301 = vld [vmem:[%s275 + $0x180] sm:$0xff]
                %302 = vst [vmem:[%s276 + $0x60] sm:$0xff] %v301
                %v303 = vld [vmem:[%s275 + $0x188] sm:$0xff]
                %304 = vst [vmem:[%s276 + $0x68] sm:$0xff] %v303
                %v305 = vld [vmem:[%s275 + $0x190] sm:$0xff]
                %306 = vst [vmem:[%s276 + $0x70] sm:$0xff] %v305
                %v307 = vld [vmem:[%s275 + $0x198] sm:$0xff]
                %308 = vst [vmem:[%s276 + $0x78] sm:$0xff] %v307
              $region49: #{transformer_with_pe_forward.17} parent=43 // loop_footer
                %s274 = sadd.s32 1, %s270
              $region50: #{transformer_with_pe_forward.17} parent=43 // loop_footer_branch
                %269 = sbr.rel target = $region46
              $region51: #{transformer_with_pe_forward.17} parent=43 // loop_exit
                _
            $region44: #{transformer_with_pe_forward.17} parent=39 // pred_fallthru
              _
            // Predicated region
            $region52: #{transformer_with_pe_forward.17} parent=39 // pred_check
              _
            $region53: #{transformer_with_pe_forward.17} parent=39 // pred_check_branch
              %310 = sbr.rel target = $region55
            $region54: #{transformer_with_pe_forward.17} parent=39 // pred_region
              _
            $region55: #{transformer_with_pe_forward.17} parent=39 // pred_fallthru
              _
          $region40: #{transformer_with_pe_forward.17} parent=35 // pred_fallthru
            _
          %311 = vnop
        $region36: #{transformer_with_pe_forward.17} parent=31 // pred_fallthru
          _
        // Predicated region
        $region56: #{transformer_with_pe_forward.17} parent=31 // pred_check
          %p312 = pneg %p97
        $region57: #{transformer_with_pe_forward.17} parent=31 // pred_check_branch
          %314 = sbr.rel (%p312) target = $region59
        $region58: #{transformer_with_pe_forward.17} parent=31 // pred_region
          %s315 = smul.u32 4, %s21
          %p316 = scmp.lt.s32.totalorder %s315, 15
          %s317 = scalar_select %p316, %s315, 15
          %s318 = scalar_lea.vmem %s2, %s317
          %s319 = smul.u32 4, %s21
        $region59: #{transformer_with_pe_forward.17} parent=31 // pred_fallthru
          _
        // Predicated region
        $region60: #{transformer_with_pe_forward.17} parent=31 // pred_check
          %p320 = pneg %p123
        $region61: #{transformer_with_pe_forward.17} parent=31 // pred_check_branch
          %322 = sbr.rel (%p320) target = $region63
        $region62: #{transformer_with_pe_forward.17} parent=31 // pred_region
          %s323 = smul.u32 64, %s21
          %p324 = scmp.lt.s32.totalorder %s323, 255
          %s325 = scalar_select %p324, %s323, 255
          %s326 = smul.addr %s325, 8
          %s327 = scalar_lea.vmem %s3, %s326
          %s328 = smul.u32 64, %s21
        $region63: #{transformer_with_pe_forward.17} parent=31 // pred_fallthru
          _
      $region32: #{transformer_with_pe_forward.17} parent=5 // pred_fallthru
        _
      %p329 = scmp.le.s32.totalorder 1, %s13
      %p330 = scmp.lt.s32.totalorder %s13, 5
      %p331 = pnand %p329, %p330
      %p332 = pneg %p331
      // Predicated region
      $region64: #{transformer_with_pe_forward.17} parent=5 // pred_check
        _
      $region65: #{transformer_with_pe_forward.17} parent=5 // pred_check_branch
        %334 = sbr.rel (%p331) target = $region67
      $region66: #{transformer_with_pe_forward.17} parent=5 // pred_region
        %s335 = ssub.s32 %s13, 1
        %s336 = sand.u32 %s64, 1
        %s337 = sand.u32 %s64, 1
        %s338 = smul.addr %s337, 128
        %s339 = scalar_lea.vmem [#allocation3], %s338
        // Predicated region
        $region68: #{transformer_with_pe_forward.17} parent=66 // pred_check
          %p340 = pneg %p77
        $region69: #{transformer_with_pe_forward.17} parent=66 // pred_check_branch
          %342 = sbr.rel (%p340) target = $region71
        $region70: #{transformer_with_pe_forward.17} parent=66 // pred_region
          _
        $region71: #{transformer_with_pe_forward.17} parent=66 // pred_fallthru
          _
        %s343 = smul.u32 2, %s22
        %p344 = scmp.lt.s32.totalorder %s343, 1
        %s345 = scalar_select %p344, %s343, 1
        %s346 = smul.addr %s345, 8
        %s347 = scalar_lea.vmem %s0, %s346
        %p348 = pneg %p51
        %p349 = pneg %p48
        %s350 = sand.u32 %s64, 1
        %s351 = sand.u32 %s64, 1
        %s352 = smul.addr %s351, 128
        %s353 = scalar_lea.vmem [#allocation3], %s352
        %p354 = pneg %p77
        %p355 = pneg %p74
        %s356 = smul.u32 4, %s23
        %p357 = scmp.lt.s32.totalorder %s356, 15
        %s358 = scalar_select %p357, %s356, 15
        %s359 = scalar_lea.vmem %s2, %s358
        %p360 = pneg %p103
        %p361 = pneg %p100
        %s362 = smul.u32 64, %s23
        %p363 = scmp.lt.s32.totalorder %s362, 255
        %s364 = scalar_select %p363, %s362, 255
        %s365 = smul.addr %s364, 8
        %s366 = scalar_lea.vmem %s3, %s365
        %p367 = pneg %p129
        %p368 = pneg %p126
        %p369 = pneg %p150
        %p370 = pneg %p147
        %p371 = pneg %p171
        %p372 = pneg %p168
        %p373 = pneg %p192
        %p374 = pneg %p189
        %p375 = pneg %p218
        %p376 = pneg %p215
        %s377 = smul.u32 2, %s22
        %p378 = scmp.lt.s32.totalorder %s377, 1
        %s379 = scalar_select %p378, %s377, 1
        %s380 = smul.addr %s379, 8
        %s381 = scalar_lea.vmem %s7, %s380
        %s382 = smul.u32 2, %s22
        %p383 = scmp.lt.s32.totalorder %s382, 1
        %s384 = scalar_select %p383, %s382, 1
        %s385 = smul.addr %s384, 8
        %s386 = scalar_lea.vmem %s0, %s385
        %s387 = smul.u32 2, %s22
        %s388 = smul.u32 4, %s23
        %s389 = smul.u32 4, %s23
        %p390 = scmp.lt.s32.totalorder %s389, 15
        %s391 = scalar_select %p390, %s389, 15
        %s392 = scalar_lea.vmem %s2, %s391
        %s393 = smul.u32 4, %s23
        %s394 = smul.u32 64, %s23
        %p395 = scmp.lt.s32.totalorder %s394, 255
        %s396 = scalar_select %p395, %s394, 255
        %s397 = smul.addr %s396, 8
        %s398 = scalar_lea.vmem %s3, %s397
        %s399 = smul.u32 64, %s23
        %s400 = smul.u32 2, %s22
        %p401 = scmp.lt.s32.totalorder %s400, 1
        %s402 = scalar_select %p401, %s400, 1
        %s403 = smul.addr %s402, 8
        %s404 = scalar_lea.vmem %s7, %s403
        %s405 = smul.u32 2, %s22
        %p406 = scmp.eq.s32.totalorder %s23, 0
        // Predicated region
        $region72: #{transformer_with_pe_forward.17} parent=66 // pred_check
          %p407 = pneg %p406
        $region73: #{transformer_with_pe_forward.17} parent=66 // pred_check_branch
          %409 = sbr.rel (%p407) target = $region75
        $region74: #{transformer_with_pe_forward.17} parent=66 // pred_region
          %vm410 = vcmask 261120
          %411 = vst.msk [vmem:[#allocation2] sm:$0xff] %vm410, 0.0
          %412 = vst.msk [vmem:[#allocation2 + $0x8] sm:$0xff] %vm410, 0.0
        $region75: #{transformer_with_pe_forward.17} parent=66 // pred_fallthru
          _
        %v413 = vld [vmem:[%s386] sm:$0xff]
        %v414 = vld [vmem:[%s386 + $0x8] sm:$0xff]
        %v415 = vld [vmem:[%s339] sm:$0xff]
        %v416 = vld [vmem:[%s339 + $0x8] sm:$0xff]
        %v417 = vld [vmem:[%s339 + $0x10] sm:$0xff]
        %v418 = vld [vmem:[%s339 + $0x18] sm:$0xff]
        %v419 = vld [vmem:[%s339 + $0x20] sm:$0xff]
        %v420 = vld [vmem:[%s339 + $0x28] sm:$0xff]
        %v421 = vld [vmem:[%s339 + $0x30] sm:$0xff]
        %v422 = vld [vmem:[%s339 + $0x38] sm:$0xff]
        %v423 = vld [vmem:[%s339 + $0x40] sm:$0xff]
        %v424 = vld [vmem:[%s339 + $0x48] sm:$0xff]
        %v425 = vld [vmem:[%s339 + $0x50] sm:$0xff]
        %v426 = vld [vmem:[%s339 + $0x58] sm:$0xff]
        %v427 = vld [vmem:[%s339 + $0x60] sm:$0xff]
        %v428 = vld [vmem:[%s339 + $0x68] sm:$0xff]
        %v429 = vld [vmem:[%s339 + $0x70] sm:$0xff]
        %v430 = vld [vmem:[%s339 + $0x78] sm:$0xff]
        %v431 = vld [vmem:[%s392] sm:$0xf]
        %v433 = vperm.slane %v431, 0
        %v434 = vperm.slane %v431, 1
        %v435 = vperm.slane %v431, 2
        %v436 = vperm.slane %v431, 3
        %vm441 = vcmask 261120
        %v443 = vsel %vm441, %v413, 0
        %v446 = vsel %vm441, %v414, 0
        %448 = vmatpush.msra.mxu0 0.0
        %449 = vmatpush.msra.mxu0 0.0
        %450 = vmatpush.msra.mxu0 0.0
        %451 = vmatpush.msra.mxu0 0.0
        %452 = vmatpush.msra.mxu0 0.0
        %453 = vmatpush.msra.mxu0 0.0
        %454 = vmatpush.msra.mxu0 0.0
        %455 = vmatpush.msra.mxu0 0.0
        %456 = vmatpush.msra.mxu0 0.0
        %457 = vmatpush.msra.mxu0 0.0
        %458 = vmatpush.msra.mxu0 0.0
        %459 = vmatpush.msra.mxu0 0.0
        %460 = vmatpush.msra.mxu0 %v427
        %461 = vmatpush.msra.mxu0 %v423
        %462 = vmatpush.msra.mxu0 %v419
        %463 = vmatpush.msra.mxu0 %v415
        %464 = vmatmul.f32.gmra.mxu0 %v443
        %v465 = vpop.f32.mrf.mxu0
        %v466 = vadd.f32 %v433, %v465
        %467 = vmatmul.f32.gmra.mxu0 %v446
        %v468 = vpop.f32.mrf.mxu0
        %v469 = vadd.f32 %v433, %v468
        %470 = vdwg.mxu0
        %471 = vmatpush.msra.mxu0 0.0
        %472 = vmatpush.msra.mxu0 0.0
        %473 = vmatpush.msra.mxu0 0.0
        %474 = vmatpush.msra.mxu0 0.0
        %475 = vmatpush.msra.mxu0 0.0
        %476 = vmatpush.msra.mxu0 0.0
        %477 = vmatpush.msra.mxu0 0.0
        %478 = vmatpush.msra.mxu0 0.0
        %479 = vmatpush.msra.mxu0 0.0
        %480 = vmatpush.msra.mxu0 0.0
        %481 = vmatpush.msra.mxu0 0.0
        %482 = vmatpush.msra.mxu0 0.0
        %483 = vmatpush.msra.mxu0 %v428
        %484 = vmatpush.msra.mxu0 %v424
        %485 = vmatpush.msra.mxu0 %v420
        %486 = vmatpush.msra.mxu0 %v416
        %487 = vmatmul.f32.gmra.mxu0 %v443
        %v488 = vpop.f32.mrf.mxu0
        %v489 = vadd.f32 %v434, %v488
        %490 = vmatmul.f32.gmra.mxu0 %v446
        %v491 = vpop.f32.mrf.mxu0
        %v492 = vadd.f32 %v434, %v491
        %493 = vdwg.mxu0
        %494 = vmatpush.msra.mxu0 0.0
        %495 = vmatpush.msra.mxu0 0.0
        %496 = vmatpush.msra.mxu0 0.0
        %497 = vmatpush.msra.mxu0 0.0
        %498 = vmatpush.msra.mxu0 0.0
        %499 = vmatpush.msra.mxu0 0.0
        %500 = vmatpush.msra.mxu0 0.0
        %501 = vmatpush.msra.mxu0 0.0
        %502 = vmatpush.msra.mxu0 0.0
        %503 = vmatpush.msra.mxu0 0.0
        %504 = vmatpush.msra.mxu0 0.0
        %505 = vmatpush.msra.mxu0 0.0
        %506 = vmatpush.msra.mxu0 %v429
        %507 = vmatpush.msra.mxu0 %v425
        %508 = vmatpush.msra.mxu0 %v421
        %509 = vmatpush.msra.mxu0 %v417
        %510 = vmatmul.f32.gmra.mxu0 %v443
        %v511 = vpop.f32.mrf.mxu0
        %v512 = vadd.f32 %v435, %v511
        %513 = vmatmul.f32.gmra.mxu0 %v446
        %v514 = vpop.f32.mrf.mxu0
        %v515 = vadd.f32 %v435, %v514
        %516 = vdwg.mxu0
        %517 = vmatpush.msra.mxu0 0.0
        %518 = vmatpush.msra.mxu0 0.0
        %519 = vmatpush.msra.mxu0 0.0
        %520 = vmatpush.msra.mxu0 0.0
        %521 = vmatpush.msra.mxu0 0.0
        %522 = vmatpush.msra.mxu0 0.0
        %523 = vmatpush.msra.mxu0 0.0
        %524 = vmatpush.msra.mxu0 0.0
        %525 = vmatpush.msra.mxu0 0.0
        %526 = vmatpush.msra.mxu0 0.0
        %527 = vmatpush.msra.mxu0 0.0
        %528 = vmatpush.msra.mxu0 0.0
        %529 = vmatpush.msra.mxu0 %v430
        %530 = vmatpush.msra.mxu0 %v426
        %531 = vmatpush.msra.mxu0 %v422
        %532 = vmatpush.msra.mxu0 %v418
        %533 = vmatmul.f32.gmra.mxu0 %v443
        %v534 = vpop.f32.mrf.mxu0
        %v535 = vadd.f32 %v436, %v534
        %536 = vmatmul.f32.gmra.mxu0 %v446
        %v537 = vpop.f32.mrf.mxu0
        %v538 = vadd.f32 %v436, %v537
        %539 = vdwg.mxu0
        %v540 = vmax.f32 %v466, 0.0
        %v541 = vmax.f32 %v489, 0.0
        %v542 = vmax.f32 %v512, 0.0
        %v543 = vmax.f32 %v535, 0.0
        %v544 = vmax.f32 %v469, 0.0
        %v545 = vmax.f32 %v492, 0.0
        %v546 = vmax.f32 %v515, 0.0
        %v547 = vmax.f32 %v538, 0.0
        %v548 = vld [vmem:[#allocation2] sm:$0xff]
        %v549 = vld [vmem:[#allocation2 + $0x8] sm:$0xff]
        %v550 = vld [vmem:[%s398] sm:$0xff]
        %v551 = vld [vmem:[%s398 + $0x8] sm:$0xff]
        %v552 = vld [vmem:[%s398 + $0x10] sm:$0xff]
        %v553 = vld [vmem:[%s398 + $0x18] sm:$0xff]
        %v554 = vld [vmem:[%s398 + $0x20] sm:$0xff]
        %v555 = vld [vmem:[%s398 + $0x28] sm:$0xff]
        %v556 = vld [vmem:[%s398 + $0x30] sm:$0xff]
        %v557 = vld [vmem:[%s398 + $0x38] sm:$0xff]
        %v558 = vld [vmem:[%s398 + $0x40] sm:$0xff]
        %v559 = vld [vmem:[%s398 + $0x48] sm:$0xff]
        %v560 = vld [vmem:[%s398 + $0x50] sm:$0xff]
        %v561 = vld [vmem:[%s398 + $0x58] sm:$0xff]
        %v562 = vld [vmem:[%s398 + $0x60] sm:$0xff]
        %v563 = vld [vmem:[%s398 + $0x68] sm:$0xff]
        %v564 = vld [vmem:[%s398 + $0x70] sm:$0xff]
        %v565 = vld [vmem:[%s398 + $0x78] sm:$0xff]
        %v566 = vld [vmem:[%s398 + $0x80] sm:$0xff]
        %v567 = vld [vmem:[%s398 + $0x88] sm:$0xff]
        %v568 = vld [vmem:[%s398 + $0x90] sm:$0xff]
        %v569 = vld [vmem:[%s398 + $0x98] sm:$0xff]
        %v570 = vld [vmem:[%s398 + $0xa0] sm:$0xff]
        %v571 = vld [vmem:[%s398 + $0xa8] sm:$0xff]
        %v572 = vld [vmem:[%s398 + $0xb0] sm:$0xff]
        %v573 = vld [vmem:[%s398 + $0xb8] sm:$0xff]
        %v574 = vld [vmem:[%s398 + $0xc0] sm:$0xff]
        %v575 = vld [vmem:[%s398 + $0xc8] sm:$0xff]
        %v576 = vld [vmem:[%s398 + $0xd0] sm:$0xff]
        %v577 = vld [vmem:[%s398 + $0xd8] sm:$0xff]
        %v578 = vld [vmem:[%s398 + $0xe0] sm:$0xff]
        %v579 = vld [vmem:[%s398 + $0xe8] sm:$0xff]
        %v580 = vld [vmem:[%s398 + $0xf0] sm:$0xff]
        %v581 = vld [vmem:[%s398 + $0xf8] sm:$0xff]
        %v582 = vld [vmem:[%s398 + $0x100] sm:$0xff]
        %v583 = vld [vmem:[%s398 + $0x108] sm:$0xff]
        %v584 = vld [vmem:[%s398 + $0x110] sm:$0xff]
        %v585 = vld [vmem:[%s398 + $0x118] sm:$0xff]
        %v586 = vld [vmem:[%s398 + $0x120] sm:$0xff]
        %v587 = vld [vmem:[%s398 + $0x128] sm:$0xff]
        %v588 = vld [vmem:[%s398 + $0x130] sm:$0xff]
        %v589 = vld [vmem:[%s398 + $0x138] sm:$0xff]
        %v590 = vld [vmem:[%s398 + $0x140] sm:$0xff]
        %v591 = vld [vmem:[%s398 + $0x148] sm:$0xff]
        %v592 = vld [vmem:[%s398 + $0x150] sm:$0xff]
        %v593 = vld [vmem:[%s398 + $0x158] sm:$0xff]
        %v594 = vld [vmem:[%s398 + $0x160] sm:$0xff]
        %v595 = vld [vmem:[%s398 + $0x168] sm:$0xff]
        %v596 = vld [vmem:[%s398 + $0x170] sm:$0xff]
        %v597 = vld [vmem:[%s398 + $0x178] sm:$0xff]
        %v598 = vld [vmem:[%s398 + $0x180] sm:$0xff]
        %v599 = vld [vmem:[%s398 + $0x188] sm:$0xff]
        %v600 = vld [vmem:[%s398 + $0x190] sm:$0xff]
        %v601 = vld [vmem:[%s398 + $0x198] sm:$0xff]
        %v602 = vld [vmem:[%s398 + $0x1a0] sm:$0xff]
        %v603 = vld [vmem:[%s398 + $0x1a8] sm:$0xff]
        %v604 = vld [vmem:[%s398 + $0x1b0] sm:$0xff]
        %v605 = vld [vmem:[%s398 + $0x1b8] sm:$0xff]
        %v606 = vld [vmem:[%s398 + $0x1c0] sm:$0xff]
        %v607 = vld [vmem:[%s398 + $0x1c8] sm:$0xff]
        %v608 = vld [vmem:[%s398 + $0x1d0] sm:$0xff]
        %v609 = vld [vmem:[%s398 + $0x1d8] sm:$0xff]
        %v610 = vld [vmem:[%s398 + $0x1e0] sm:$0xff]
        %v611 = vld [vmem:[%s398 + $0x1e8] sm:$0xff]
        %v612 = vld [vmem:[%s398 + $0x1f0] sm:$0xff]
        %v613 = vld [vmem:[%s398 + $0x1f8] sm:$0xff]
        %614 = vmatpush.msra.mxu0 %v565
        %615 = vmatpush.msra.mxu0 %v564
        %616 = vmatpush.msra.mxu0 %v563
        %617 = vmatpush.msra.mxu0 %v562
        %618 = vmatpush.msra.mxu0 %v561
        %619 = vmatpush.msra.mxu0 %v560
        %620 = vmatpush.msra.mxu0 %v559
        %621 = vmatpush.msra.mxu0 %v558
        %622 = vmatpush.msra.mxu0 %v557
        %623 = vmatpush.msra.mxu0 %v556
        %624 = vmatpush.msra.mxu0 %v555
        %625 = vmatpush.msra.mxu0 %v554
        %626 = vmatpush.msra.mxu0 %v553
        %627 = vmatpush.msra.mxu0 %v552
        %628 = vmatpush.msra.mxu0 %v551
        %629 = vmatpush.msra.mxu0 %v550
        %630 = vmatmul.f32.gmra.mxu0 %v540
        %v631 = vpop.f32.mrf.mxu0
        %v632 = vadd.f32 0.0, %v631
        %633 = vmatmul.f32.gmra.mxu0 %v544
        %v634 = vpop.f32.mrf.mxu0
        %v635 = vadd.f32 0.0, %v634
        %636 = vdwg.mxu0
        %637 = vmatpush.msra.mxu0 %v581
        %638 = vmatpush.msra.mxu0 %v580
        %639 = vmatpush.msra.mxu0 %v579
        %640 = vmatpush.msra.mxu0 %v578
        %641 = vmatpush.msra.mxu0 %v577
        %642 = vmatpush.msra.mxu0 %v576
        %643 = vmatpush.msra.mxu0 %v575
        %644 = vmatpush.msra.mxu0 %v574
        %645 = vmatpush.msra.mxu0 %v573
        %646 = vmatpush.msra.mxu0 %v572
        %647 = vmatpush.msra.mxu0 %v571
        %648 = vmatpush.msra.mxu0 %v570
        %649 = vmatpush.msra.mxu0 %v569
        %650 = vmatpush.msra.mxu0 %v568
        %651 = vmatpush.msra.mxu0 %v567
        %652 = vmatpush.msra.mxu0 %v566
        %653 = vmatmul.f32.gmra.mxu0 %v541
        %v654 = vpop.f32.mrf.mxu0
        %v655 = vadd.f32 %v632, %v654
        %656 = vmatmul.f32.gmra.mxu0 %v545
        %v657 = vpop.f32.mrf.mxu0
        %v658 = vadd.f32 %v635, %v657
        %659 = vdwg.mxu0
        %660 = vmatpush.msra.mxu0 %v597
        %661 = vmatpush.msra.mxu0 %v596
        %662 = vmatpush.msra.mxu0 %v595
        %663 = vmatpush.msra.mxu0 %v594
        %664 = vmatpush.msra.mxu0 %v593
        %665 = vmatpush.msra.mxu0 %v592
        %666 = vmatpush.msra.mxu0 %v591
        %667 = vmatpush.msra.mxu0 %v590
        %668 = vmatpush.msra.mxu0 %v589
        %669 = vmatpush.msra.mxu0 %v588
        %670 = vmatpush.msra.mxu0 %v587
        %671 = vmatpush.msra.mxu0 %v586
        %672 = vmatpush.msra.mxu0 %v585
        %673 = vmatpush.msra.mxu0 %v584
        %674 = vmatpush.msra.mxu0 %v583
        %675 = vmatpush.msra.mxu0 %v582
        %676 = vmatmul.f32.gmra.mxu0 %v542
        %v677 = vpop.f32.mrf.mxu0
        %v678 = vadd.f32 %v655, %v677
        %679 = vmatmul.f32.gmra.mxu0 %v546
        %v680 = vpop.f32.mrf.mxu0
        %v681 = vadd.f32 %v658, %v680
        %682 = vdwg.mxu0
        %683 = vmatpush.msra.mxu0 %v613
        %684 = vmatpush.msra.mxu0 %v612
        %685 = vmatpush.msra.mxu0 %v611
        %686 = vmatpush.msra.mxu0 %v610
        %687 = vmatpush.msra.mxu0 %v609
        %688 = vmatpush.msra.mxu0 %v608
        %689 = vmatpush.msra.mxu0 %v607
        %690 = vmatpush.msra.mxu0 %v606
        %691 = vmatpush.msra.mxu0 %v605
        %692 = vmatpush.msra.mxu0 %v604
        %693 = vmatpush.msra.mxu0 %v603
        %694 = vmatpush.msra.mxu0 %v602
        %695 = vmatpush.msra.mxu0 %v601
        %696 = vmatpush.msra.mxu0 %v600
        %697 = vmatpush.msra.mxu0 %v599
        %698 = vmatpush.msra.mxu0 %v598
        %699 = vmatmul.f32.gmra.mxu0 %v543
        %v700 = vpop.f32.mrf.mxu0
        %v701 = vadd.f32 %v678, %v700
        %702 = vmatmul.f32.gmra.mxu0 %v547
        %v703 = vpop.f32.mrf.mxu0
        %v704 = vadd.f32 %v681, %v703
        %705 = vdwg.mxu0
        %v706 = vadd.f32 %v548, %v701
        %v707 = vadd.f32 %v549, %v704
        %708 = vst.msk [vmem:[#allocation2] sm:$0xff] %vm441, %v706
        %709 = vst.msk [vmem:[#allocation2 + $0x8] sm:$0xff] %vm441, %v707
        %p710 = scmp.eq.s32.totalorder %s23, 3
        // Predicated region
        $region76: #{transformer_with_pe_forward.17} parent=66 // pred_check
          %p711 = pneg %p710
        $region77: #{transformer_with_pe_forward.17} parent=66 // pred_check_branch
          %713 = sbr.rel (%p711) target = $region79
        $region78: #{transformer_with_pe_forward.17} parent=66 // pred_region
          %v714 = vld [vmem:[#allocation2] sm:$0xff]
          %v715 = vld [vmem:[#allocation2 + $0x8] sm:$0xff]
          %v716 = vld [vmem:[%s4] sm:$0x1]
          %v718 = vperm.slane %v716, 0
          %v720 = vadd.f32 %v714, %v718
          %v721 = vadd.f32 %v715, %v718
          %v722 = vld [vmem:[%s386] sm:$0xff]
          %v723 = vld [vmem:[%s386 + $0x8] sm:$0xff]
          %v724 = vadd.f32 %v720, %v722
          %v725 = vadd.f32 %v721, %v723
          %v726 = vsel %vm441, %v724, 0.0
          %727 = vadd.xlane.f32.xlu0 %v726
          %v728 = vpop.xlane.xlu0 %727
          %v729 = vsel %vm441, %v725, 0.0
          %730 = vadd.xlane.f32.xlu0 %v729
          %v731 = vpop.xlane.xlu0 %730
          %v732 = vrcp.pop 32.0
          %v733 = vmul.f32 32.0, %v732
          %v734 = vsub.f32 1.0, %v733
          %v735 = vmul.f32 %v732, %v734
          %v736 = vadd.f32 %v732, %v735
          %vm737 = vweird.f32 %v732
          %v738 = vsel %vm737, %v732, %v736
          %v739 = vmul.f32 %v728, %v738
          %v740 = vmul.f32 %v731, %v738
          %v741 = vsub.f32 %v724, %v739
          %v742 = vsub.f32 %v725, %v740
          %v743 = vmul.f32 %v741, %v741
          %v744 = vmul.f32 %v742, %v742
          %v745 = vsel %vm441, %v743, 0.0
          %746 = vadd.xlane.f32.xlu0 %v745
          %v747 = vpop.xlane.xlu0 %746
          %v748 = vsel %vm441, %v744, 0.0
          %749 = vadd.xlane.f32.xlu0 %v748
          %v750 = vpop.xlane.xlu0 %749
          %v751 = vmul.f32 %v747, %v738
          %v752 = vmul.f32 %v750, %v738
          %v753 = vadd.f32 %v751, 1e-05
          %v754 = vadd.f32 %v752, 1e-05
          %v755 = vrsqrt.pop %v753
          %v756 = vmul.f32 %v755, %v753
          %v757 = vmul.f32 %v756, %v755
          %v758 = vmul.f32 0.5, %v757
          %v759 = vsub.f32 1.5, %v758
          %v760 = vmul.f32 %v755, %v759
          %vm761 = vweird.f32 %v753
          %vm762 = vweird.f32 %v755
          %vm763 = vmor %vm761, %vm762
          %v764 = vsel %vm763, %v755, %v760
          %v765 = vrsqrt.pop %v754
          %v766 = vmul.f32 %v765, %v754
          %v767 = vmul.f32 %v766, %v765
          %v768 = vmul.f32 0.5, %v767
          %v769 = vsub.f32 1.5, %v768
          %v770 = vmul.f32 %v765, %v769
          %vm771 = vweird.f32 %v754
          %vm772 = vweird.f32 %v765
          %vm773 = vmor %vm771, %vm772
          %v774 = vsel %vm773, %v765, %v770
          %v775 = vmul.f32 %v741, %v764
          %v776 = vmul.f32 %v742, %v774
          %v777 = vld [vmem:[%s5] sm:$0x1]
          %v779 = vperm.slane %v777, 0
          %v781 = vmul.f32 %v775, %v779
          %v782 = vmul.f32 %v776, %v779
          %v783 = vld [vmem:[%s6] sm:$0x1]
          %v785 = vperm.slane %v783, 0
          %v787 = vadd.f32 %v781, %v785
          %v788 = vadd.f32 %v782, %v785
          %789 = vst.msk [vmem:[%s404] sm:$0xff] %vm441, %v787
          %790 = vst.msk [vmem:[%s404 + $0x8] sm:$0xff] %vm441, %v788
        $region79: #{transformer_with_pe_forward.17} parent=66 // pred_fallthru
          _
        %s791 = smul.u32 2, %s22
        %p792 = scmp.lt.s32.totalorder %s791, 1
        %s793 = scalar_select %p792, %s791, 1
        %s794 = smul.addr %s793, 8
        %s795 = scalar_lea.vmem %s7, %s794
        // Predicated region
        $region80: #{transformer_with_pe_forward.17} parent=66 // pred_check
          %p796 = pneg %p215
        $region81: #{transformer_with_pe_forward.17} parent=66 // pred_check_branch
          %798 = sbr.rel (%p796) target = $region83
        $region82: #{transformer_with_pe_forward.17} parent=66 // pred_region
          %s799 = smul.u32 2, %s22
        $region83: #{transformer_with_pe_forward.17} parent=66 // pred_fallthru
          _
        // Predicated region
        $region84: #{transformer_with_pe_forward.17} parent=66 // pred_check
          %p800 = pneg %p215
        $region85: #{transformer_with_pe_forward.17} parent=66 // pred_check_branch
          %802 = sbr.rel (%p800) target = $region87
        $region86: #{transformer_with_pe_forward.17} parent=66 // pred_region
          %s803 = smul.u32 2, %s22
          %p804 = scmp.lt.s32.totalorder %s803, 1
          %s805 = scalar_select %p804, %s803, 1
          %s806 = smul.addr %s805, 8
          %s807 = scalar_lea.vmem %s7, %s806
        $region87: #{transformer_with_pe_forward.17} parent=66 // pred_fallthru
          _
      $region67: #{transformer_with_pe_forward.17} parent=5 // pred_fallthru
        _
      %p808 = scmp.le.s32.totalorder 2, %s13
      // Predicated region
      $region88: #{transformer_with_pe_forward.17} parent=5 // pred_check
        %p809 = pneg %p808
      $region89: #{transformer_with_pe_forward.17} parent=5 // pred_check_branch
        %811 = sbr.rel (%p809) target = $region91
      $region90: #{transformer_with_pe_forward.17} parent=5 // pred_region
        %s812 = ssub.s32 %s13, 2
      $region91: #{transformer_with_pe_forward.17} parent=5 // pred_fallthru
        _
    $region6: #{transformer_with_pe_forward.17} parent=1 // loop_footer
      %s17 = sadd.s32 1, %s13
    $region7: #{transformer_with_pe_forward.17} parent=1 // loop_footer_branch
      %12 = sbr.rel target = $region3
    $region8: #{transformer_with_pe_forward.17} parent=1 // loop_exit
      _

// kernel: transformer_with_pe_forward.20
$region0: #{transformer_with_pe_forward.20}
  #allocation0 [shape = 'u32[]', space=smem, size = 0x4, offset = 0x4, fixed_abs, tag = 'smem constant byte address 0x4 - core index']
  #allocation1 [shape = 'u32[72,128]{1,0:T(1,128)}', space=vmem, size = 0x9000, scoped, tag = 'internal scratch']
  %s0 = inlined_call_operand.vmem [shape: f32[16,32], index: 0, kind: input, shape index: {}]
  %s1 = inlined_call_operand.vmem [shape: f32[1,32], index: 1, kind: input, shape index: {}]
  %s2 = inlined_call_operand.vmem [shape: f32[1,32], index: 2, kind: input, shape index: {}]
  %s3 = inlined_call_operand.vmem [shape: f32[16,32], index: 3, kind: output, shape index: {}]
  %s4 = sld [smem:[#allocation0]]
  $region22: #{transformer_with_pe_forward.20} parent=0
    _
  %s6 = ssub.s32 1, %s4
  %s7 = scalar_select 0, %s6, %s4
  // Predicated region
  $region2: #{transformer_with_pe_forward.20} parent=0 // pred_check
    _
  $region3: #{transformer_with_pe_forward.20} parent=0 // pred_check_branch
    %9 = sbr.rel (0) target = $region5
  $region4: #{transformer_with_pe_forward.20} parent=0 // pred_region
    _
  $region5: #{transformer_with_pe_forward.20} parent=0 // pred_fallthru
    _
  // Predicated region
  $region6: #{transformer_with_pe_forward.20} parent=0 // pred_check
    _
  $region7: #{transformer_with_pe_forward.20} parent=0 // pred_check_branch
    %11 = sbr.rel (0) target = $region9
  $region8: #{transformer_with_pe_forward.20} parent=0 // pred_region
    _
  $region9: #{transformer_with_pe_forward.20} parent=0 // pred_fallthru
    _
  // Predicated region
  $region10: #{transformer_with_pe_forward.20} parent=0 // pred_check
    _
  $region11: #{transformer_with_pe_forward.20} parent=0 // pred_check_branch
    %13 = sbr.rel (0) target = $region13
  $region12: #{transformer_with_pe_forward.20} parent=0 // pred_region
    _
  $region13: #{transformer_with_pe_forward.20} parent=0 // pred_fallthru
    _
  %v14 = vld [vmem:[%s0] sm:$0xff]
  %v15 = vld [vmem:[%s0 + $0x8] sm:$0xff]
  %vm16 = vcmask 261120
  %v17 = vsel %vm16, %v14, 0.0
  %18 = vadd.xlane.f32.xlu0 %v17
  %v19 = vpop.xlane.xlu0 %18
  %v20 = vsel %vm16, %v15, 0.0
  %21 = vadd.xlane.f32.xlu0 %v20
  %v22 = vpop.xlane.xlu0 %21
  %v23 = vrcp.pop 32.0
  %v24 = vmul.f32 32.0, %v23
  %v25 = vsub.f32 1.0, %v24
  %v26 = vmul.f32 %v23, %v25
  %v27 = vadd.f32 %v23, %v26
  %vm28 = vweird.f32 %v23
  %v29 = vsel %vm28, %v23, %v27
  %v30 = vmul.f32 %v19, %v29
  %v31 = vmul.f32 %v22, %v29
  %v32 = vsub.f32 %v14, %v30
  %v33 = vsub.f32 %v15, %v31
  %v34 = vmul.f32 %v32, %v32
  %v35 = vmul.f32 %v33, %v33
  %v36 = vsel %vm16, %v34, 0.0
  %37 = vadd.xlane.f32.xlu0 %v36
  %v38 = vpop.xlane.xlu0 %37
  %v39 = vsel %vm16, %v35, 0.0
  %40 = vadd.xlane.f32.xlu0 %v39
  %v41 = vpop.xlane.xlu0 %40
  %v42 = vmul.f32 %v38, %v29
  %v43 = vmul.f32 %v41, %v29
  %v44 = vadd.f32 %v42, 1e-05
  %v45 = vadd.f32 %v43, 1e-05
  %v46 = vrsqrt.pop %v44
  %v47 = vmul.f32 %v46, %v44
  %v48 = vmul.f32 %v47, %v46
  %v49 = vmul.f32 0.5, %v48
  %v50 = vsub.f32 1.5, %v49
  %v51 = vmul.f32 %v46, %v50
  %vm52 = vweird.f32 %v44
  %vm53 = vweird.f32 %v46
  %vm54 = vmor %vm52, %vm53
  %v55 = vsel %vm54, %v46, %v51
  %v56 = vrsqrt.pop %v45
  %v57 = vmul.f32 %v56, %v45
  %v58 = vmul.f32 %v57, %v56
  %v59 = vmul.f32 0.5, %v58
  %v60 = vsub.f32 1.5, %v59
  %v61 = vmul.f32 %v56, %v60
  %vm62 = vweird.f32 %v45
  %vm63 = vweird.f32 %v56
  %vm64 = vmor %vm62, %vm63
  %v65 = vsel %vm64, %v56, %v61
  %v66 = vmul.f32 %v32, %v55
  %v67 = vmul.f32 %v33, %v65
  %v68 = vld [vmem:[%s1] sm:$0x1]
  %v70 = vperm.slane %v68, 0
  %v72 = vmul.f32 %v66, %v70
  %v73 = vmul.f32 %v67, %v70
  %v74 = vld [vmem:[%s2] sm:$0x1]
  %v76 = vperm.slane %v74, 0
  %v78 = vadd.f32 %v72, %v76
  %v79 = vadd.f32 %v73, %v76
  %80 = vst.msk [vmem:[%s3] sm:$0xff] %vm16, %v78
  %81 = vst.msk [vmem:[%s3 + $0x8] sm:$0xff] %vm16, %v79
  // Predicated region
  $region14: #{transformer_with_pe_forward.20} parent=0 // pred_check
    _
  $region15: #{transformer_with_pe_forward.20} parent=0 // pred_check_branch
    %83 = sbr.rel (0) target = $region17
  $region16: #{transformer_with_pe_forward.20} parent=0 // pred_region
    _
  $region17: #{transformer_with_pe_forward.20} parent=0 // pred_fallthru
    _
  // Predicated region
  $region18: #{transformer_with_pe_forward.20} parent=0 // pred_check
    _
  $region19: #{transformer_with_pe_forward.20} parent=0 // pred_check_branch
    %85 = sbr.rel (0) target = $region21
  $region20: #{transformer_with_pe_forward.20} parent=0 // pred_region
    _
  $region21: #{transformer_with_pe_forward.20} parent=0 // pred_fallthru
    _

// kernel: transformer_with_pe_forward.21
$region0: #{transformer_with_pe_forward.21}
  #allocation0 [shape = 'u32[]', space=smem, size = 0x4, offset = 0x4, fixed_abs, tag = 'smem constant byte address 0x4 - core index']
  #allocation1 [shape = 'u32[72,128]{1,0:T(1,128)}', space=vmem, size = 0x9000, scoped, tag = 'internal scratch']
  %s0 = inlined_call_operand.vmem [shape: f32[2,8,32], index: 0, kind: input, shape index: {}]
  %s1 = inlined_call_operand.vmem [shape: f32[32,96], index: 1, kind: input, shape index: {}]
  %s2 = inlined_call_operand.vmem [shape: f32[1,96], index: 2, kind: input, shape index: {}]
  %s3 = inlined_call_operand.vmem [shape: f32[32,32], index: 3, kind: input, shape index: {}]
  %s4 = inlined_call_operand.vmem [shape: f32[1,32], index: 4, kind: input, shape index: {}]
  %s5 = inlined_call_operand.vmem [shape: f32[1,32], index: 5, kind: input, shape index: {}]
  %s6 = inlined_call_operand.vmem [shape: f32[1,32], index: 6, kind: input, shape index: {}]
  %s7 = inlined_call_operand.vmem [shape: f32[2,8,32], index: 7, kind: output, shape index: {}]
  %s8 = sld [smem:[#allocation0]]
  $region61: #{transformer_with_pe_forward.21} parent=0
    _
  %s10 = ssub.s32 1, %s8
  %s11 = scalar_select 0, %s10, %s8
  loop: start=0, step=1, limit=4
  $region2: #{transformer_with_pe_forward.21} parent=0 // loop_pre_header
    _
  $region3: #{transformer_with_pe_forward.21} parent=0 // loop_header
    %s13 = sphi 0, %s17
    %p14 = scmp.ge.s32.totalorder %s13, 4
    %s23 = sphi 0, %s25
    %s26 = sphi 0, %s23
    %s27 = sphi 0, %s26
    %s43 = sphi 0, %s27
    %s47 = sphi 0, %s47
    %s49 = sphi 0, %s47
    %s50 = sphi 0, %s49
    %s64 = sphi 0, %s50
    %s68 = sphi 0, %s68
    %s70 = sphi 0, %s68
    %s71 = sphi 0, %s70
    %s85 = sphi 0, %s71
    %s89 = sphi 0, %s89
    %s91 = sphi 0, %s89
    %s92 = sphi 0, %s91
    %s106 = sphi 0, %s92
    %s110 = sphi 0, %s110
    %s112 = sphi 0, %s110
    %s113 = sphi 0, %s112
    %s127 = sphi 0, %s113
    %s131 = sphi 0, %s131
    %s133 = sphi 0, %s131
    %s134 = sphi 0, %s133
    %s148 = sphi 0, %s134
    %s152 = sphi 0, %s152
    %s154 = sphi 0, %s152
    %s155 = sphi 0, %s154
    %s169 = sphi 0, %s155
    %s175 = sphi 0, %s177
    %s178 = sphi 0, %s175
    %s179 = sphi 0, %s178
    %s195 = sphi 0, %s179
  $region4: #{transformer_with_pe_forward.21} parent=0 // loop_header_branch
    %16 = sbr.rel (%p14) target = $region8
  $region5: #{transformer_with_pe_forward.21} parent=0 // loop_body
    %s18 = ssub.s32 %s13, 1
    %s19 = ssub.s32 %s13, 2
    %s20 = sadd.s32 %s13, 1
    %s21 = ssub.s32 %s13, %s20
    %p22 = scmp.eq.s32.totalorder %s21, 0
    %s24 = sadd.s32 %s23, 1
    %s25 = scalar_select %p22, %s23, %s24
    %p28 = pneg %p22
    %p29 = scmp.eq.s32.totalorder %s13, 1
    %p30 = por %p28, %p29
    %p31 = scmp.ne.s32.totalorder %s23, %s26
    %p32 = scmp.eq.s32.totalorder %s13, 0
    %p33 = por %p31, %p32
    %p34 = scmp.ne.s32.totalorder %s23, %s26
    %p35 = scmp.eq.s32.totalorder %s18, 1
    %p36 = por %p34, %p35
    %p37 = scmp.ne.s32.totalorder %s26, %s27
    %p38 = scmp.eq.s32.totalorder %s18, 0
    %p39 = por %p37, %p38
    %p40 = scmp.ne.s32.totalorder %s26, %s27
    %p41 = scmp.eq.s32.totalorder %s19, 1
    %p42 = por %p40, %p41
    %p44 = scmp.ne.s32.totalorder %s27, %s43
    %p45 = scmp.eq.s32.totalorder %s19, 0
    %p46 = por %p44, %p45
    %s48 = sadd.s32 %s47, 1
    %p51 = scmp.eq.s32.totalorder %s13, 1
    %p52 = scmp.ne.s32.totalorder %s47, %s49
    %p53 = scmp.eq.s32.totalorder %s13, 0
    %p54 = por %p52, %p53
    %p55 = scmp.ne.s32.totalorder %s47, %s49
    %p56 = scmp.eq.s32.totalorder %s18, 1
    %p57 = por %p55, %p56
    %p58 = scmp.ne.s32.totalorder %s49, %s50
    %p59 = scmp.eq.s32.totalorder %s18, 0
    %p60 = por %p58, %p59
    %p61 = scmp.ne.s32.totalorder %s49, %s50
    %p62 = scmp.eq.s32.totalorder %s19, 1
    %p63 = por %p61, %p62
    %p65 = scmp.ne.s32.totalorder %s50, %s64
    %p66 = scmp.eq.s32.totalorder %s19, 0
    %p67 = por %p65, %p66
    %s69 = sadd.s32 %s68, 1
    %p72 = scmp.eq.s32.totalorder %s13, 1
    %p73 = scmp.ne.s32.totalorder %s68, %s70
    %p74 = scmp.eq.s32.totalorder %s13, 0
    %p75 = por %p73, %p74
    %p76 = scmp.ne.s32.totalorder %s68, %s70
    %p77 = scmp.eq.s32.totalorder %s18, 1
    %p78 = por %p76, %p77
    %p79 = scmp.ne.s32.totalorder %s70, %s71
    %p80 = scmp.eq.s32.totalorder %s18, 0
    %p81 = por %p79, %p80
    %p82 = scmp.ne.s32.totalorder %s70, %s71
    %p83 = scmp.eq.s32.totalorder %s19, 1
    %p84 = por %p82, %p83
    %p86 = scmp.ne.s32.totalorder %s71, %s85
    %p87 = scmp.eq.s32.totalorder %s19, 0
    %p88 = por %p86, %p87
    %s90 = sadd.s32 %s89, 1
    %p93 = scmp.eq.s32.totalorder %s13, 1
    %p94 = scmp.ne.s32.totalorder %s89, %s91
    %p95 = scmp.eq.s32.totalorder %s13, 0
    %p96 = por %p94, %p95
    %p97 = scmp.ne.s32.totalorder %s89, %s91
    %p98 = scmp.eq.s32.totalorder %s18, 1
    %p99 = por %p97, %p98
    %p100 = scmp.ne.s32.totalorder %s91, %s92
    %p101 = scmp.eq.s32.totalorder %s18, 0
    %p102 = por %p100, %p101
    %p103 = scmp.ne.s32.totalorder %s91, %s92
    %p104 = scmp.eq.s32.totalorder %s19, 1
    %p105 = por %p103, %p104
    %p107 = scmp.ne.s32.totalorder %s92, %s106
    %p108 = scmp.eq.s32.totalorder %s19, 0
    %p109 = por %p107, %p108
    %s111 = sadd.s32 %s110, 1
    %p114 = scmp.eq.s32.totalorder %s13, 1
    %p115 = scmp.ne.s32.totalorder %s110, %s112
    %p116 = scmp.eq.s32.totalorder %s13, 0
    %p117 = por %p115, %p116
    %p118 = scmp.ne.s32.totalorder %s110, %s112
    %p119 = scmp.eq.s32.totalorder %s18, 1
    %p120 = por %p118, %p119
    %p121 = scmp.ne.s32.totalorder %s112, %s113
    %p122 = scmp.eq.s32.totalorder %s18, 0
    %p123 = por %p121, %p122
    %p124 = scmp.ne.s32.totalorder %s112, %s113
    %p125 = scmp.eq.s32.totalorder %s19, 1
    %p126 = por %p124, %p125
    %p128 = scmp.ne.s32.totalorder %s113, %s127
    %p129 = scmp.eq.s32.totalorder %s19, 0
    %p130 = por %p128, %p129
    %s132 = sadd.s32 %s131, 1
    %p135 = scmp.eq.s32.totalorder %s13, 1
    %p136 = scmp.ne.s32.totalorder %s131, %s133
    %p137 = scmp.eq.s32.totalorder %s13, 0
    %p138 = por %p136, %p137
    %p139 = scmp.ne.s32.totalorder %s131, %s133
    %p140 = scmp.eq.s32.totalorder %s18, 1
    %p141 = por %p139, %p140
    %p142 = scmp.ne.s32.totalorder %s133, %s134
    %p143 = scmp.eq.s32.totalorder %s18, 0
    %p144 = por %p142, %p143
    %p145 = scmp.ne.s32.totalorder %s133, %s134
    %p146 = scmp.eq.s32.totalorder %s19, 1
    %p147 = por %p145, %p146
    %p149 = scmp.ne.s32.totalorder %s134, %s148
    %p150 = scmp.eq.s32.totalorder %s19, 0
    %p151 = por %p149, %p150
    %s153 = sadd.s32 %s152, 1
    %p156 = scmp.eq.s32.totalorder %s13, 1
    %p157 = scmp.ne.s32.totalorder %s152, %s154
    %p158 = scmp.eq.s32.totalorder %s13, 0
    %p159 = por %p157, %p158
    %p160 = scmp.ne.s32.totalorder %s152, %s154
    %p161 = scmp.eq.s32.totalorder %s18, 1
    %p162 = por %p160, %p161
    %p163 = scmp.ne.s32.totalorder %s154, %s155
    %p164 = scmp.eq.s32.totalorder %s18, 0
    %p165 = por %p163, %p164
    %p166 = scmp.ne.s32.totalorder %s154, %s155
    %p167 = scmp.eq.s32.totalorder %s19, 1
    %p168 = por %p166, %p167
    %p170 = scmp.ne.s32.totalorder %s155, %s169
    %p171 = scmp.eq.s32.totalorder %s19, 0
    %p172 = por %p170, %p171
    %s173 = ssub.s32 %s13, %s20
    %p174 = scmp.eq.s32.totalorder %s173, 0
    %s176 = sadd.s32 %s175, 1
    %s177 = scalar_select %p174, %s175, %s176
    %p180 = pneg %p174
    %p181 = scmp.eq.s32.totalorder %s13, 1
    %p182 = por %p180, %p181
    %p183 = scmp.ne.s32.totalorder %s175, %s178
    %p184 = scmp.eq.s32.totalorder %s13, 0
    %p185 = por %p183, %p184
    %p186 = scmp.ne.s32.totalorder %s175, %s178
    %p187 = scmp.eq.s32.totalorder %s18, 1
    %p188 = por %p186, %p187
    %p189 = scmp.ne.s32.totalorder %s178, %s179
    %p190 = scmp.eq.s32.totalorder %s18, 0
    %p191 = por %p189, %p190
    %p192 = scmp.ne.s32.totalorder %s178, %s179
    %p193 = scmp.eq.s32.totalorder %s19, 1
    %p194 = por %p192, %p193
    %p196 = scmp.ne.s32.totalorder %s179, %s195
    %p197 = scmp.eq.s32.totalorder %s19, 0
    %p198 = por %p196, %p197
    %p199 = scmp.le.s32.totalorder 1, %s13
    %p200 = scmp.lt.s32.totalorder %s13, 3
    %p201 = pnand %p199, %p200
    %p202 = pneg %p201
    // Predicated region
    $region9: #{transformer_with_pe_forward.21} parent=5 // pred_check
      _
    $region10: #{transformer_with_pe_forward.21} parent=5 // pred_check_branch
      %204 = sbr.rel (%p201) target = $region12
    $region11: #{transformer_with_pe_forward.21} parent=5 // pred_region
      %s205 = ssub.s32 %s13, 1
      // Predicated region
      $region13: #{transformer_with_pe_forward.21} parent=11 // pred_check
        %p206 = pneg %p60
      $region14: #{transformer_with_pe_forward.21} parent=11 // pred_check_branch
        %208 = sbr.rel (%p206) target = $region16
      $region15: #{transformer_with_pe_forward.21} parent=11 // pred_region
        _
      $region16: #{transformer_with_pe_forward.21} parent=11 // pred_fallthru
        _
      // Predicated region
      $region17: #{transformer_with_pe_forward.21} parent=11 // pred_check
        %p209 = pneg %p81
      $region18: #{transformer_with_pe_forward.21} parent=11 // pred_check_branch
        %211 = sbr.rel (%p209) target = $region20
      $region19: #{transformer_with_pe_forward.21} parent=11 // pred_region
        _
      $region20: #{transformer_with_pe_forward.21} parent=11 // pred_fallthru
        _
      // Predicated region
      $region21: #{transformer_with_pe_forward.21} parent=11 // pred_check
        %p212 = pneg %p102
      $region22: #{transformer_with_pe_forward.21} parent=11 // pred_check_branch
        %214 = sbr.rel (%p212) target = $region24
      $region23: #{transformer_with_pe_forward.21} parent=11 // pred_region
        _
      $region24: #{transformer_with_pe_forward.21} parent=11 // pred_fallthru
        _
      // Predicated region
      $region25: #{transformer_with_pe_forward.21} parent=11 // pred_check
        %p215 = pneg %p123
      $region26: #{transformer_with_pe_forward.21} parent=11 // pred_check_branch
        %217 = sbr.rel (%p215) target = $region28
      $region27: #{transformer_with_pe_forward.21} parent=11 // pred_region
        _
      $region28: #{transformer_with_pe_forward.21} parent=11 // pred_fallthru
        _
      // Predicated region
      $region29: #{transformer_with_pe_forward.21} parent=11 // pred_check
        %p218 = pneg %p144
      $region30: #{transformer_with_pe_forward.21} parent=11 // pred_check_branch
        %220 = sbr.rel (%p218) target = $region32
      $region31: #{transformer_with_pe_forward.21} parent=11 // pred_region
        _
      $region32: #{transformer_with_pe_forward.21} parent=11 // pred_fallthru
        _
      // Predicated region
      $region33: #{transformer_with_pe_forward.21} parent=11 // pred_check
        %p221 = pneg %p165
      $region34: #{transformer_with_pe_forward.21} parent=11 // pred_check_branch
        %223 = sbr.rel (%p221) target = $region36
      $region35: #{transformer_with_pe_forward.21} parent=11 // pred_region
        _
      $region36: #{transformer_with_pe_forward.21} parent=11 // pred_fallthru
        _
    $region12: #{transformer_with_pe_forward.21} parent=5 // pred_fallthru
      _
    %p224 = scmp.lt.s32.totalorder %s13, 2
    // Predicated region
    $region37: #{transformer_with_pe_forward.21} parent=5 // pred_check
      %p225 = pneg %p224
    $region38: #{transformer_with_pe_forward.21} parent=5 // pred_check_branch
      %227 = sbr.rel (%p225) target = $region40
    $region39: #{transformer_with_pe_forward.21} parent=5 // pred_region
      // Predicated region
      $region41: #{transformer_with_pe_forward.21} parent=39 // pred_check
        %p228 = pneg %p33
      $region42: #{transformer_with_pe_forward.21} parent=39 // pred_check_branch
        %230 = sbr.rel (%p228) target = $region44
      $region43: #{transformer_with_pe_forward.21} parent=39 // pred_region
        %p231 = scmp.lt.s32.totalorder %s13, 1
        %s232 = scalar_select %p231, %s13, 1
        %s233 = smul.addr %s232, 8
        %s234 = scalar_lea.vmem %s0, %s233
      $region44: #{transformer_with_pe_forward.21} parent=39 // pred_fallthru
        _
    $region40: #{transformer_with_pe_forward.21} parent=5 // pred_fallthru
      _
    %p235 = scmp.le.s32.totalorder 1, %s13
    %p236 = scmp.lt.s32.totalorder %s13, 3
    %p237 = pnand %p235, %p236
    %p238 = pneg %p237
    // Predicated region
    $region45: #{transformer_with_pe_forward.21} parent=5 // pred_check
      _
    $region46: #{transformer_with_pe_forward.21} parent=5 // pred_check_branch
      %240 = sbr.rel (%p237) target = $region48
    $region47: #{transformer_with_pe_forward.21} parent=5 // pred_region
      %s241 = ssub.s32 %s13, 1
      %p242 = scmp.lt.s32.totalorder %s18, 1
      %s243 = scalar_select %p242, %s18, 1
      %s244 = smul.addr %s243, 8
      %s245 = scalar_lea.vmem %s0, %s244
      %p246 = pneg %p39
      %p247 = pneg %p36
      %p248 = pneg %p60
      %p249 = pneg %p57
      %p250 = pneg %p81
      %p251 = pneg %p78
      %p252 = pneg %p102
      %p253 = pneg %p99
      %p254 = pneg %p123
      %p255 = pneg %p120
      %p256 = pneg %p144
      %p257 = pneg %p141
      %p258 = pneg %p165
      %p259 = pneg %p162
      %p260 = pneg %p191
      %p261 = pneg %p188
      %p262 = scmp.lt.s32.totalorder %s18, 1
      %s263 = scalar_select %p262, %s18, 1
      %s264 = smul.addr %s263, 8
      %s265 = scalar_lea.vmem %s7, %s264
      %p266 = scmp.lt.s32.totalorder %s18, 1
      %s267 = scalar_select %p266, %s18, 1
      %s268 = smul.addr %s267, 8
      %s269 = scalar_lea.vmem %s0, %s268
      %p270 = scmp.lt.s32.totalorder %s18, 1
      %s271 = scalar_select %p270, %s18, 1
      %s272 = smul.addr %s271, 8
      %s273 = scalar_lea.vmem %s7, %s272
      %v274 = vld [vmem:[%s269] sm:$0xff]
      %v275 = vld [vmem:[%s1] sm:$0xff]
      %v276 = vld [vmem:[%s1 + $0x8] sm:$0xff]
      %v277 = vld [vmem:[%s1 + $0x10] sm:$0xff]
      %v278 = vld [vmem:[%s1 + $0x18] sm:$0xff]
      %v279 = vld [vmem:[%s2] sm:$0x1]
      %v281 = vperm.slane %v279, 0
      %vm283 = vcmask 261120
      %v285 = vsel %vm283, %v274, 0
      %287 = vmatpush.msra.mxu0 0.0
      %288 = vmatpush.msra.mxu0 0.0
      %289 = vmatpush.msra.mxu0 0.0
      %290 = vmatpush.msra.mxu0 0.0
      %291 = vmatpush.msra.mxu0 0.0
      %292 = vmatpush.msra.mxu0 0.0
      %293 = vmatpush.msra.mxu0 0.0
      %294 = vmatpush.msra.mxu0 0.0
      %295 = vmatpush.msra.mxu0 0.0
      %296 = vmatpush.msra.mxu0 0.0
      %297 = vmatpush.msra.mxu0 0.0
      %298 = vmatpush.msra.mxu0 0.0
      %299 = vmatpush.msra.mxu0 %v278
      %300 = vmatpush.msra.mxu0 %v277
      %301 = vmatpush.msra.mxu0 %v276
      %302 = vmatpush.msra.mxu0 %v275
      %303 = vmatmul.f32.gmra.mxu0 %v285
      %v304 = vpop.f32.mrf.mxu0
      %v305 = vadd.f32 %v281, %v304
      %306 = vdwg.mxu0
      %v307 = vlaneseq
      %v308 = vshrl.u32 %v307, 7
      %v309 = vlaneseq
      %v310 = vand.u32 %v309, 127
      %vm311 = vcmp.gt.s32.totalorder %v310, %v308
      %v312 = vsel %vm311, -1e+30, 0.0
      %314 = vrot.lane.b32.xlu0 %v305, 96
      %v315 = vpop.permute.xlu0 %314
      %vm316 = vcmask 64512
      %v317 = vsel %vm316, %v305, 0
      %v319 = vsel %vm316, %v315, 0
      %321 = vmatpush.xpose.msra.mxu0 0.0
      %322 = vmatpush.xpose.msra.mxu0 0.0
      %323 = vmatpush.xpose.msra.mxu0 0.0
      %324 = vmatpush.xpose.msra.mxu0 0.0
      %325 = vmatpush.xpose.msra.mxu0 0.0
      %326 = vmatpush.xpose.msra.mxu0 0.0
      %327 = vmatpush.xpose.msra.mxu0 0.0
      %328 = vmatpush.xpose.msra.mxu0 0.0
      %329 = vmatpush.xpose.msra.mxu0 0.0
      %330 = vmatpush.xpose.msra.mxu0 0.0
      %331 = vmatpush.xpose.msra.mxu0 0.0
      %332 = vmatpush.xpose.msra.mxu0 0.0
      %333 = vmatpush.xpose.msra.mxu0 0.0
      %334 = vmatpush.xpose.msra.mxu0 0.0
      %335 = vmatpush.xpose.msra.mxu0 0.0
      %336 = vmatpush.xpose.msra.mxu0 %v319
      %337 = vmatmul.f32.gmra.mxu0 %v317
      %v338 = vpop.f32.mrf.mxu0
      %v339 = vadd.f32 0.0, %v338
      %340 = vdwg.mxu0
      %v341 = vmul.f32 %v339, 0.35355338
      %v342 = vadd.f32 %v341, %v312
      %v343 = vsel %vm316, %v342, -inf
      %344 = vmax.xlane.f32.xlu0 %v343
      %v345 = vpop.xlane.xlu0 %344
      %v346 = vsub.f32 %v342, %v345
      %v347 = vmul.f32 %v346, 1.442695
      %v348 = vpow.pop %v347
      %v349 = vsel %vm316, %v348, 0.0
      %350 = vadd.xlane.f32.xlu0 %v349
      %v351 = vpop.xlane.xlu0 %350
      %v352 = vrcp.pop %v351
      %v353 = vmul.f32 %v348, %v352
      %354 = vrot.lane.b32.xlu0 %v305, 64
      %v355 = vpop.permute.xlu0 %354
      %v358 = vsel %vm316, %v353, 0
      %360 = vmatpush.msra.mxu0 0.0
      %361 = vmatpush.msra.mxu0 0.0
      %362 = vmatpush.msra.mxu0 0.0
      %363 = vmatpush.msra.mxu0 0.0
      %364 = vmatpush.msra.mxu0 0.0
      %365 = vmatpush.msra.mxu0 0.0
      %366 = vmatpush.msra.mxu0 0.0
      %367 = vmatpush.msra.mxu0 0.0
      %368 = vmatpush.msra.mxu0 0.0
      %369 = vmatpush.msra.mxu0 0.0
      %370 = vmatpush.msra.mxu0 0.0
      %371 = vmatpush.msra.mxu0 0.0
      %372 = vmatpush.msra.mxu0 0.0
      %373 = vmatpush.msra.mxu0 0.0
      %374 = vmatpush.msra.mxu0 0.0
      %375 = vmatpush.msra.mxu0 %v355
      %376 = vmatmul.f32.gmra.mxu0 %v358
      %v377 = vpop.f32.mrf.mxu0
      %v378 = vadd.f32 0.0, %v377
      %379 = vdwg.mxu0
      %380 = vrot.lane.b32.xlu0 %v305, 120
      %v381 = vpop.permute.xlu0 %380
      %382 = vrot.lane.b32.xlu0 %v305, 88
      %v383 = vpop.permute.xlu0 %382
      %v384 = vsel %vm316, %v381, 0
      %v386 = vsel %vm316, %v383, 0
      %388 = vmatpush.xpose.msra.mxu0 0.0
      %389 = vmatpush.xpose.msra.mxu0 0.0
      %390 = vmatpush.xpose.msra.mxu0 0.0
      %391 = vmatpush.xpose.msra.mxu0 0.0
      %392 = vmatpush.xpose.msra.mxu0 0.0
      %393 = vmatpush.xpose.msra.mxu0 0.0
      %394 = vmatpush.xpose.msra.mxu0 0.0
      %395 = vmatpush.xpose.msra.mxu0 0.0
      %396 = vmatpush.xpose.msra.mxu0 0.0
      %397 = vmatpush.xpose.msra.mxu0 0.0
      %398 = vmatpush.xpose.msra.mxu0 0.0
      %399 = vmatpush.xpose.msra.mxu0 0.0
      %400 = vmatpush.xpose.msra.mxu0 0.0
      %401 = vmatpush.xpose.msra.mxu0 0.0
      %402 = vmatpush.xpose.msra.mxu0 0.0
      %403 = vmatpush.xpose.msra.mxu0 %v386
      %404 = vmatmul.f32.gmra.mxu0 %v384
      %v405 = vpop.f32.mrf.mxu0
      %v406 = vadd.f32 0.0, %v405
      %407 = vdwg.mxu0
      %v408 = vmul.f32 %v406, 0.35355338
      %v409 = vadd.f32 %v408, %v312
      %v410 = vsel %vm316, %v409, -inf
      %411 = vmax.xlane.f32.xlu0 %v410
      %v412 = vpop.xlane.xlu0 %411
      %v413 = vsub.f32 %v409, %v412
      %v414 = vmul.f32 %v413, 1.442695
      %v415 = vpow.pop %v414
      %v416 = vsel %vm316, %v415, 0.0
      %417 = vadd.xlane.f32.xlu0 %v416
      %v418 = vpop.xlane.xlu0 %417
      %v419 = vrcp.pop %v418
      %v420 = vmul.f32 %v415, %v419
      %421 = vrot.lane.b32.xlu0 %v305, 56
      %v422 = vpop.permute.xlu0 %421
      %v425 = vsel %vm316, %v420, 0
      %427 = vmatpush.msra.mxu0 0.0
      %428 = vmatpush.msra.mxu0 0.0
      %429 = vmatpush.msra.mxu0 0.0
      %430 = vmatpush.msra.mxu0 0.0
      %431 = vmatpush.msra.mxu0 0.0
      %432 = vmatpush.msra.mxu0 0.0
      %433 = vmatpush.msra.mxu0 0.0
      %434 = vmatpush.msra.mxu0 0.0
      %435 = vmatpush.msra.mxu0 0.0
      %436 = vmatpush.msra.mxu0 0.0
      %437 = vmatpush.msra.mxu0 0.0
      %438 = vmatpush.msra.mxu0 0.0
      %439 = vmatpush.msra.mxu0 0.0
      %440 = vmatpush.msra.mxu0 0.0
      %441 = vmatpush.msra.mxu0 0.0
      %442 = vmatpush.msra.mxu0 %v422
      %443 = vmatmul.f32.gmra.mxu0 %v425
      %v444 = vpop.f32.mrf.mxu0
      %v445 = vadd.f32 0.0, %v444
      %446 = vdwg.mxu0
      %447 = vrot.lane.b32.xlu0 %v305, 112
      %v448 = vpop.permute.xlu0 %447
      %449 = vrot.lane.b32.xlu0 %v305, 80
      %v450 = vpop.permute.xlu0 %449
      %v451 = vsel %vm316, %v448, 0
      %v453 = vsel %vm316, %v450, 0
      %455 = vmatpush.xpose.msra.mxu0 0.0
      %456 = vmatpush.xpose.msra.mxu0 0.0
      %457 = vmatpush.xpose.msra.mxu0 0.0
      %458 = vmatpush.xpose.msra.mxu0 0.0
      %459 = vmatpush.xpose.msra.mxu0 0.0
      %460 = vmatpush.xpose.msra.mxu0 0.0
      %461 = vmatpush.xpose.msra.mxu0 0.0
      %462 = vmatpush.xpose.msra.mxu0 0.0
      %463 = vmatpush.xpose.msra.mxu0 0.0
      %464 = vmatpush.xpose.msra.mxu0 0.0
      %465 = vmatpush.xpose.msra.mxu0 0.0
      %466 = vmatpush.xpose.msra.mxu0 0.0
      %467 = vmatpush.xpose.msra.mxu0 0.0
      %468 = vmatpush.xpose.msra.mxu0 0.0
      %469 = vmatpush.xpose.msra.mxu0 0.0
      %470 = vmatpush.xpose.msra.mxu0 %v453
      %471 = vmatmul.f32.gmra.mxu0 %v451
      %v472 = vpop.f32.mrf.mxu0
      %v473 = vadd.f32 0.0, %v472
      %474 = vdwg.mxu0
      %v475 = vmul.f32 %v473, 0.35355338
      %v476 = vadd.f32 %v475, %v312
      %v477 = vsel %vm316, %v476, -inf
      %478 = vmax.xlane.f32.xlu0 %v477
      %v479 = vpop.xlane.xlu0 %478
      %v480 = vsub.f32 %v476, %v479
      %v481 = vmul.f32 %v480, 1.442695
      %v482 = vpow.pop %v481
      %v483 = vsel %vm316, %v482, 0.0
      %484 = vadd.xlane.f32.xlu0 %v483
      %v485 = vpop.xlane.xlu0 %484
      %v486 = vrcp.pop %v485
      %v487 = vmul.f32 %v482, %v486
      %488 = vrot.lane.b32.xlu0 %v305, 48
      %v489 = vpop.permute.xlu0 %488
      %v492 = vsel %vm316, %v487, 0
      %494 = vmatpush.msra.mxu0 0.0
      %495 = vmatpush.msra.mxu0 0.0
      %496 = vmatpush.msra.mxu0 0.0
      %497 = vmatpush.msra.mxu0 0.0
      %498 = vmatpush.msra.mxu0 0.0
      %499 = vmatpush.msra.mxu0 0.0
      %500 = vmatpush.msra.mxu0 0.0
      %501 = vmatpush.msra.mxu0 0.0
      %502 = vmatpush.msra.mxu0 0.0
      %503 = vmatpush.msra.mxu0 0.0
      %504 = vmatpush.msra.mxu0 0.0
      %505 = vmatpush.msra.mxu0 0.0
      %506 = vmatpush.msra.mxu0 0.0
      %507 = vmatpush.msra.mxu0 0.0
      %508 = vmatpush.msra.mxu0 0.0
      %509 = vmatpush.msra.mxu0 %v489
      %510 = vmatmul.f32.gmra.mxu0 %v492
      %v511 = vpop.f32.mrf.mxu0
      %v512 = vadd.f32 0.0, %v511
      %513 = vdwg.mxu0
      %514 = vrot.lane.b32.xlu0 %v305, 104
      %v515 = vpop.permute.xlu0 %514
      %516 = vrot.lane.b32.xlu0 %v305, 72
      %v517 = vpop.permute.xlu0 %516
      %v518 = vsel %vm316, %v515, 0
      %v520 = vsel %vm316, %v517, 0
      %522 = vmatpush.xpose.msra.mxu0 0.0
      %523 = vmatpush.xpose.msra.mxu0 0.0
      %524 = vmatpush.xpose.msra.mxu0 0.0
      %525 = vmatpush.xpose.msra.mxu0 0.0
      %526 = vmatpush.xpose.msra.mxu0 0.0
      %527 = vmatpush.xpose.msra.mxu0 0.0
      %528 = vmatpush.xpose.msra.mxu0 0.0
      %529 = vmatpush.xpose.msra.mxu0 0.0
      %530 = vmatpush.xpose.msra.mxu0 0.0
      %531 = vmatpush.xpose.msra.mxu0 0.0
      %532 = vmatpush.xpose.msra.mxu0 0.0
      %533 = vmatpush.xpose.msra.mxu0 0.0
      %534 = vmatpush.xpose.msra.mxu0 0.0
      %535 = vmatpush.xpose.msra.mxu0 0.0
      %536 = vmatpush.xpose.msra.mxu0 0.0
      %537 = vmatpush.xpose.msra.mxu0 %v520
      %538 = vmatmul.f32.gmra.mxu0 %v518
      %v539 = vpop.f32.mrf.mxu0
      %v540 = vadd.f32 0.0, %v539
      %541 = vdwg.mxu0
      %v542 = vmul.f32 %v540, 0.35355338
      %v543 = vadd.f32 %v542, %v312
      %v544 = vsel %vm316, %v543, -inf
      %545 = vmax.xlane.f32.xlu0 %v544
      %v546 = vpop.xlane.xlu0 %545
      %v547 = vsub.f32 %v543, %v546
      %v548 = vmul.f32 %v547, 1.442695
      %v549 = vpow.pop %v548
      %v550 = vsel %vm316, %v549, 0.0
      %551 = vadd.xlane.f32.xlu0 %v550
      %v552 = vpop.xlane.xlu0 %551
      %v553 = vrcp.pop %v552
      %v554 = vmul.f32 %v549, %v553
      %555 = vrot.lane.b32.xlu0 %v305, 40
      %v556 = vpop.permute.xlu0 %555
      %v559 = vsel %vm316, %v554, 0
      %561 = vmatpush.msra.mxu0 0.0
      %562 = vmatpush.msra.mxu0 0.0
      %563 = vmatpush.msra.mxu0 0.0
      %564 = vmatpush.msra.mxu0 0.0
      %565 = vmatpush.msra.mxu0 0.0
      %566 = vmatpush.msra.mxu0 0.0
      %567 = vmatpush.msra.mxu0 0.0
      %568 = vmatpush.msra.mxu0 0.0
      %569 = vmatpush.msra.mxu0 0.0
      %570 = vmatpush.msra.mxu0 0.0
      %571 = vmatpush.msra.mxu0 0.0
      %572 = vmatpush.msra.mxu0 0.0
      %573 = vmatpush.msra.mxu0 0.0
      %574 = vmatpush.msra.mxu0 0.0
      %575 = vmatpush.msra.mxu0 0.0
      %576 = vmatpush.msra.mxu0 %v556
      %577 = vmatmul.f32.gmra.mxu0 %v559
      %v578 = vpop.f32.mrf.mxu0
      %v579 = vadd.f32 0.0, %v578
      %580 = vdwg.mxu0
      %582 = vrot.lane.b32.xlu0 %v445, 8
      %v583 = vpop.permute.xlu0 %582
      %586 = vrot.lane.b32.xlu0 %v512, 16
      %v587 = vpop.permute.xlu0 %586
      %590 = vrot.lane.b32.xlu0 %v579, 24
      %v591 = vpop.permute.xlu0 %590
      %v593 = vsel %vm316, %v378, %v583
      %vm594 = vcmask 130048
      %v595 = vsel %vm594, %v593, %v587
      %vm596 = vcmask 195584
      %v597 = vsel %vm596, %v595, %v591
      %v598 = vld [vmem:[%s3] sm:$0xff]
      %v599 = vld [vmem:[%s3 + $0x8] sm:$0xff]
      %v600 = vld [vmem:[%s3 + $0x10] sm:$0xff]
      %v601 = vld [vmem:[%s3 + $0x18] sm:$0xff]
      %v602 = vld [vmem:[%s4] sm:$0x1]
      %v603 = vld [vmem:[%s5] sm:$0x1]
      %v604 = vld [vmem:[%s6] sm:$0x1]
      %v606 = vperm.slane %v602, 0
      %v609 = vsel %vm283, %v597, 0
      %611 = vmatpush.msra.mxu0 0.0
      %612 = vmatpush.msra.mxu0 0.0
      %613 = vmatpush.msra.mxu0 0.0
      %614 = vmatpush.msra.mxu0 0.0
      %615 = vmatpush.msra.mxu0 0.0
      %616 = vmatpush.msra.mxu0 0.0
      %617 = vmatpush.msra.mxu0 0.0
      %618 = vmatpush.msra.mxu0 0.0
      %619 = vmatpush.msra.mxu0 0.0
      %620 = vmatpush.msra.mxu0 0.0
      %621 = vmatpush.msra.mxu0 0.0
      %622 = vmatpush.msra.mxu0 0.0
      %623 = vmatpush.msra.mxu0 %v601
      %624 = vmatpush.msra.mxu0 %v600
      %625 = vmatpush.msra.mxu0 %v599
      %626 = vmatpush.msra.mxu0 %v598
      %627 = vmatmul.f32.gmra.mxu0 %v609
      %v628 = vpop.f32.mrf.mxu0
      %v629 = vadd.f32 %v606, %v628
      %630 = vdwg.mxu0
      %v631 = vadd.f32 %v629, %v274
      %v632 = vsel %vm283, %v631, 0.0
      %633 = vadd.xlane.f32.xlu0 %v632
      %v634 = vpop.xlane.xlu0 %633
      %v635 = vrcp.pop 32.0
      %v636 = vmul.f32 32.0, %v635
      %v637 = vsub.f32 1.0, %v636
      %v638 = vmul.f32 %v635, %v637
      %v639 = vadd.f32 %v635, %v638
      %vm640 = vweird.f32 %v635
      %v641 = vsel %vm640, %v635, %v639
      %v642 = vmul.f32 %v634, %v641
      %v643 = vsub.f32 %v631, %v642
      %v644 = vmul.f32 %v643, %v643
      %v645 = vsel %vm283, %v644, 0.0
      %646 = vadd.xlane.f32.xlu0 %v645
      %v647 = vpop.xlane.xlu0 %646
      %v648 = vmul.f32 %v647, %v641
      %v649 = vadd.f32 %v648, 1e-05
      %v650 = vrsqrt.pop %v649
      %v651 = vmul.f32 %v650, %v649
      %v652 = vmul.f32 %v651, %v650
      %v653 = vmul.f32 0.5, %v652
      %v654 = vsub.f32 1.5, %v653
      %v655 = vmul.f32 %v650, %v654
      %vm656 = vweird.f32 %v649
      %vm657 = vweird.f32 %v650
      %vm658 = vmor %vm656, %vm657
      %v659 = vsel %vm658, %v650, %v655
      %v660 = vmul.f32 %v643, %v659
      %v662 = vperm.slane %v603, 0
      %v664 = vmul.f32 %v660, %v662
      %v666 = vperm.slane %v604, 0
      %v668 = vadd.f32 %v664, %v666
      %669 = vst.msk [vmem:[%s273] sm:$0xff] %vm283, %v668
      %p670 = scmp.lt.s32.totalorder %s18, 1
      %s671 = scalar_select %p670, %s18, 1
      %s672 = smul.addr %s671, 8
      %s673 = scalar_lea.vmem %s7, %s672
      // Predicated region
      $region49: #{transformer_with_pe_forward.21} parent=47 // pred_check
        %p674 = pneg %p188
      $region50: #{transformer_with_pe_forward.21} parent=47 // pred_check_branch
        %676 = sbr.rel (%p674) target = $region52
      $region51: #{transformer_with_pe_forward.21} parent=47 // pred_region
        _
      $region52: #{transformer_with_pe_forward.21} parent=47 // pred_fallthru
        _
    $region48: #{transformer_with_pe_forward.21} parent=5 // pred_fallthru
      _
    %p677 = scmp.le.s32.totalorder 2, %s13
    // Predicated region
    $region53: #{transformer_with_pe_forward.21} parent=5 // pred_check
      %p678 = pneg %p677
    $region54: #{transformer_with_pe_forward.21} parent=5 // pred_check_branch
      %680 = sbr.rel (%p678) target = $region56
    $region55: #{transformer_with_pe_forward.21} parent=5 // pred_region
      %s681 = ssub.s32 %s13, 2
      // Predicated region
      $region57: #{transformer_with_pe_forward.21} parent=55 // pred_check
        %p682 = pneg %p194
      $region58: #{transformer_with_pe_forward.21} parent=55 // pred_check_branch
        %684 = sbr.rel (%p682) target = $region60
      $region59: #{transformer_with_pe_forward.21} parent=55 // pred_region
        %p685 = scmp.lt.s32.totalorder %s19, 1
        %s686 = scalar_select %p685, %s19, 1
        %s687 = smul.addr %s686, 8
        %s688 = scalar_lea.vmem %s7, %s687
      $region60: #{transformer_with_pe_forward.21} parent=55 // pred_fallthru
        _
    $region56: #{transformer_with_pe_forward.21} parent=5 // pred_fallthru
      _
  $region6: #{transformer_with_pe_forward.21} parent=0 // loop_footer
    %s17 = sadd.s32 1, %s13
  $region7: #{transformer_with_pe_forward.21} parent=0 // loop_footer_branch
    %12 = sbr.rel target = $region3
  $region8: #{transformer_with_pe_forward.21} parent=0 // loop_exit
    _

// kernel: transformer_with_pe_forward.22
$region0: #{transformer_with_pe_forward.22}
  #allocation0 [shape = 'u32[]', space=smem, size = 0x4, offset = 0x4, fixed_abs, tag = 'smem constant byte address 0x4 - core index']
  #allocation1 [shape = 'u32[72,128]{1,0:T(1,128)}', space=vmem, size = 0x9000, scoped, tag = 'internal scratch']
  %s0 = inlined_call_operand.vmem [shape: f32[2,8,32], index: 0, kind: input, shape index: {}]
  %s1 = inlined_call_operand.vmem [shape: f32[2,8,32], index: 1, kind: input, shape index: {}]
  %s2 = inlined_call_operand.vmem [shape: f32[32,32], index: 2, kind: input, shape index: {}]
  %s3 = inlined_call_operand.vmem [shape: f32[1,32], index: 3, kind: input, shape index: {}]
  %s4 = inlined_call_operand.vmem [shape: f32[32,64], index: 4, kind: input, shape index: {}]
  %s5 = inlined_call_operand.vmem [shape: f32[1,64], index: 5, kind: input, shape index: {}]
  %s6 = inlined_call_operand.vmem [shape: f32[32,32], index: 6, kind: input, shape index: {}]
  %s7 = inlined_call_operand.vmem [shape: f32[1,32], index: 7, kind: input, shape index: {}]
  %s8 = inlined_call_operand.vmem [shape: f32[1,32], index: 8, kind: input, shape index: {}]
  %s9 = inlined_call_operand.vmem [shape: f32[1,32], index: 9, kind: input, shape index: {}]
  %s10 = inlined_call_operand.vmem [shape: f32[2,8,32], index: 10, kind: output, shape index: {}]
  %s11 = sld [smem:[#allocation0]]
  $region73: #{transformer_with_pe_forward.22} parent=0
    _
  %s13 = ssub.s32 1, %s11
  %s14 = scalar_select 0, %s13, %s11
  loop: start=0, step=1, limit=4
  $region2: #{transformer_with_pe_forward.22} parent=0 // loop_pre_header
    _
  $region3: #{transformer_with_pe_forward.22} parent=0 // loop_header
    %s16 = sphi 0, %s20
    %p17 = scmp.ge.s32.totalorder %s16, 4
    %s26 = sphi 0, %s28
    %s29 = sphi 0, %s26
    %s30 = sphi 0, %s29
    %s46 = sphi 0, %s30
    %s52 = sphi 0, %s54
    %s55 = sphi 0, %s52
    %s56 = sphi 0, %s55
    %s72 = sphi 0, %s56
    %s76 = sphi 0, %s76
    %s78 = sphi 0, %s76
    %s79 = sphi 0, %s78
    %s93 = sphi 0, %s79
    %s97 = sphi 0, %s97
    %s99 = sphi 0, %s97
    %s100 = sphi 0, %s99
    %s114 = sphi 0, %s100
    %s118 = sphi 0, %s118
    %s120 = sphi 0, %s118
    %s121 = sphi 0, %s120
    %s135 = sphi 0, %s121
    %s139 = sphi 0, %s139
    %s141 = sphi 0, %s139
    %s142 = sphi 0, %s141
    %s156 = sphi 0, %s142
    %s160 = sphi 0, %s160
    %s162 = sphi 0, %s160
    %s163 = sphi 0, %s162
    %s177 = sphi 0, %s163
    %s181 = sphi 0, %s181
    %s183 = sphi 0, %s181
    %s184 = sphi 0, %s183
    %s198 = sphi 0, %s184
    %s202 = sphi 0, %s202
    %s204 = sphi 0, %s202
    %s205 = sphi 0, %s204
    %s219 = sphi 0, %s205
    %s223 = sphi 0, %s223
    %s225 = sphi 0, %s223
    %s226 = sphi 0, %s225
    %s240 = sphi 0, %s226
    %s246 = sphi 0, %s248
    %s249 = sphi 0, %s246
    %s250 = sphi 0, %s249
    %s266 = sphi 0, %s250
  $region4: #{transformer_with_pe_forward.22} parent=0 // loop_header_branch
    %19 = sbr.rel (%p17) target = $region8
  $region5: #{transformer_with_pe_forward.22} parent=0 // loop_body
    %s21 = ssub.s32 %s16, 1
    %s22 = ssub.s32 %s16, 2
    %s23 = sadd.s32 %s16, 1
    %s24 = ssub.s32 %s16, %s23
    %p25 = scmp.eq.s32.totalorder %s24, 0
    %s27 = sadd.s32 %s26, 1
    %s28 = scalar_select %p25, %s26, %s27
    %p31 = pneg %p25
    %p32 = scmp.eq.s32.totalorder %s16, 1
    %p33 = por %p31, %p32
    %p34 = scmp.ne.s32.totalorder %s26, %s29
    %p35 = scmp.eq.s32.totalorder %s16, 0
    %p36 = por %p34, %p35
    %p37 = scmp.ne.s32.totalorder %s26, %s29
    %p38 = scmp.eq.s32.totalorder %s21, 1
    %p39 = por %p37, %p38
    %p40 = scmp.ne.s32.totalorder %s29, %s30
    %p41 = scmp.eq.s32.totalorder %s21, 0
    %p42 = por %p40, %p41
    %p43 = scmp.ne.s32.totalorder %s29, %s30
    %p44 = scmp.eq.s32.totalorder %s22, 1
    %p45 = por %p43, %p44
    %p47 = scmp.ne.s32.totalorder %s30, %s46
    %p48 = scmp.eq.s32.totalorder %s22, 0
    %p49 = por %p47, %p48
    %s50 = ssub.s32 %s16, %s23
    %p51 = scmp.eq.s32.totalorder %s50, 0
    %s53 = sadd.s32 %s52, 1
    %s54 = scalar_select %p51, %s52, %s53
    %p57 = pneg %p51
    %p58 = scmp.eq.s32.totalorder %s16, 1
    %p59 = por %p57, %p58
    %p60 = scmp.ne.s32.totalorder %s52, %s55
    %p61 = scmp.eq.s32.totalorder %s16, 0
    %p62 = por %p60, %p61
    %p63 = scmp.ne.s32.totalorder %s52, %s55
    %p64 = scmp.eq.s32.totalorder %s21, 1
    %p65 = por %p63, %p64
    %p66 = scmp.ne.s32.totalorder %s55, %s56
    %p67 = scmp.eq.s32.totalorder %s21, 0
    %p68 = por %p66, %p67
    %p69 = scmp.ne.s32.totalorder %s55, %s56
    %p70 = scmp.eq.s32.totalorder %s22, 1
    %p71 = por %p69, %p70
    %p73 = scmp.ne.s32.totalorder %s56, %s72
    %p74 = scmp.eq.s32.totalorder %s22, 0
    %p75 = por %p73, %p74
    %s77 = sadd.s32 %s76, 1
    %p80 = scmp.eq.s32.totalorder %s16, 1
    %p81 = scmp.ne.s32.totalorder %s76, %s78
    %p82 = scmp.eq.s32.totalorder %s16, 0
    %p83 = por %p81, %p82
    %p84 = scmp.ne.s32.totalorder %s76, %s78
    %p85 = scmp.eq.s32.totalorder %s21, 1
    %p86 = por %p84, %p85
    %p87 = scmp.ne.s32.totalorder %s78, %s79
    %p88 = scmp.eq.s32.totalorder %s21, 0
    %p89 = por %p87, %p88
    %p90 = scmp.ne.s32.totalorder %s78, %s79
    %p91 = scmp.eq.s32.totalorder %s22, 1
    %p92 = por %p90, %p91
    %p94 = scmp.ne.s32.totalorder %s79, %s93
    %p95 = scmp.eq.s32.totalorder %s22, 0
    %p96 = por %p94, %p95
    %s98 = sadd.s32 %s97, 1
    %p101 = scmp.eq.s32.totalorder %s16, 1
    %p102 = scmp.ne.s32.totalorder %s97, %s99
    %p103 = scmp.eq.s32.totalorder %s16, 0
    %p104 = por %p102, %p103
    %p105 = scmp.ne.s32.totalorder %s97, %s99
    %p106 = scmp.eq.s32.totalorder %s21, 1
    %p107 = por %p105, %p106
    %p108 = scmp.ne.s32.totalorder %s99, %s100
    %p109 = scmp.eq.s32.totalorder %s21, 0
    %p110 = por %p108, %p109
    %p111 = scmp.ne.s32.totalorder %s99, %s100
    %p112 = scmp.eq.s32.totalorder %s22, 1
    %p113 = por %p111, %p112
    %p115 = scmp.ne.s32.totalorder %s100, %s114
    %p116 = scmp.eq.s32.totalorder %s22, 0
    %p117 = por %p115, %p116
    %s119 = sadd.s32 %s118, 1
    %p122 = scmp.eq.s32.totalorder %s16, 1
    %p123 = scmp.ne.s32.totalorder %s118, %s120
    %p124 = scmp.eq.s32.totalorder %s16, 0
    %p125 = por %p123, %p124
    %p126 = scmp.ne.s32.totalorder %s118, %s120
    %p127 = scmp.eq.s32.totalorder %s21, 1
    %p128 = por %p126, %p127
    %p129 = scmp.ne.s32.totalorder %s120, %s121
    %p130 = scmp.eq.s32.totalorder %s21, 0
    %p131 = por %p129, %p130
    %p132 = scmp.ne.s32.totalorder %s120, %s121
    %p133 = scmp.eq.s32.totalorder %s22, 1
    %p134 = por %p132, %p133
    %p136 = scmp.ne.s32.totalorder %s121, %s135
    %p137 = scmp.eq.s32.totalorder %s22, 0
    %p138 = por %p136, %p137
    %s140 = sadd.s32 %s139, 1
    %p143 = scmp.eq.s32.totalorder %s16, 1
    %p144 = scmp.ne.s32.totalorder %s139, %s141
    %p145 = scmp.eq.s32.totalorder %s16, 0
    %p146 = por %p144, %p145
    %p147 = scmp.ne.s32.totalorder %s139, %s141
    %p148 = scmp.eq.s32.totalorder %s21, 1
    %p149 = por %p147, %p148
    %p150 = scmp.ne.s32.totalorder %s141, %s142
    %p151 = scmp.eq.s32.totalorder %s21, 0
    %p152 = por %p150, %p151
    %p153 = scmp.ne.s32.totalorder %s141, %s142
    %p154 = scmp.eq.s32.totalorder %s22, 1
    %p155 = por %p153, %p154
    %p157 = scmp.ne.s32.totalorder %s142, %s156
    %p158 = scmp.eq.s32.totalorder %s22, 0
    %p159 = por %p157, %p158
    %s161 = sadd.s32 %s160, 1
    %p164 = scmp.eq.s32.totalorder %s16, 1
    %p165 = scmp.ne.s32.totalorder %s160, %s162
    %p166 = scmp.eq.s32.totalorder %s16, 0
    %p167 = por %p165, %p166
    %p168 = scmp.ne.s32.totalorder %s160, %s162
    %p169 = scmp.eq.s32.totalorder %s21, 1
    %p170 = por %p168, %p169
    %p171 = scmp.ne.s32.totalorder %s162, %s163
    %p172 = scmp.eq.s32.totalorder %s21, 0
    %p173 = por %p171, %p172
    %p174 = scmp.ne.s32.totalorder %s162, %s163
    %p175 = scmp.eq.s32.totalorder %s22, 1
    %p176 = por %p174, %p175
    %p178 = scmp.ne.s32.totalorder %s163, %s177
    %p179 = scmp.eq.s32.totalorder %s22, 0
    %p180 = por %p178, %p179
    %s182 = sadd.s32 %s181, 1
    %p185 = scmp.eq.s32.totalorder %s16, 1
    %p186 = scmp.ne.s32.totalorder %s181, %s183
    %p187 = scmp.eq.s32.totalorder %s16, 0
    %p188 = por %p186, %p187
    %p189 = scmp.ne.s32.totalorder %s181, %s183
    %p190 = scmp.eq.s32.totalorder %s21, 1
    %p191 = por %p189, %p190
    %p192 = scmp.ne.s32.totalorder %s183, %s184
    %p193 = scmp.eq.s32.totalorder %s21, 0
    %p194 = por %p192, %p193
    %p195 = scmp.ne.s32.totalorder %s183, %s184
    %p196 = scmp.eq.s32.totalorder %s22, 1
    %p197 = por %p195, %p196
    %p199 = scmp.ne.s32.totalorder %s184, %s198
    %p200 = scmp.eq.s32.totalorder %s22, 0
    %p201 = por %p199, %p200
    %s203 = sadd.s32 %s202, 1
    %p206 = scmp.eq.s32.totalorder %s16, 1
    %p207 = scmp.ne.s32.totalorder %s202, %s204
    %p208 = scmp.eq.s32.totalorder %s16, 0
    %p209 = por %p207, %p208
    %p210 = scmp.ne.s32.totalorder %s202, %s204
    %p211 = scmp.eq.s32.totalorder %s21, 1
    %p212 = por %p210, %p211
    %p213 = scmp.ne.s32.totalorder %s204, %s205
    %p214 = scmp.eq.s32.totalorder %s21, 0
    %p215 = por %p213, %p214
    %p216 = scmp.ne.s32.totalorder %s204, %s205
    %p217 = scmp.eq.s32.totalorder %s22, 1
    %p218 = por %p216, %p217
    %p220 = scmp.ne.s32.totalorder %s205, %s219
    %p221 = scmp.eq.s32.totalorder %s22, 0
    %p222 = por %p220, %p221
    %s224 = sadd.s32 %s223, 1
    %p227 = scmp.eq.s32.totalorder %s16, 1
    %p228 = scmp.ne.s32.totalorder %s223, %s225
    %p229 = scmp.eq.s32.totalorder %s16, 0
    %p230 = por %p228, %p229
    %p231 = scmp.ne.s32.totalorder %s223, %s225
    %p232 = scmp.eq.s32.totalorder %s21, 1
    %p233 = por %p231, %p232
    %p234 = scmp.ne.s32.totalorder %s225, %s226
    %p235 = scmp.eq.s32.totalorder %s21, 0
    %p236 = por %p234, %p235
    %p237 = scmp.ne.s32.totalorder %s225, %s226
    %p238 = scmp.eq.s32.totalorder %s22, 1
    %p239 = por %p237, %p238
    %p241 = scmp.ne.s32.totalorder %s226, %s240
    %p242 = scmp.eq.s32.totalorder %s22, 0
    %p243 = por %p241, %p242
    %s244 = ssub.s32 %s16, %s23
    %p245 = scmp.eq.s32.totalorder %s244, 0
    %s247 = sadd.s32 %s246, 1
    %s248 = scalar_select %p245, %s246, %s247
    %p251 = pneg %p245
    %p252 = scmp.eq.s32.totalorder %s16, 1
    %p253 = por %p251, %p252
    %p254 = scmp.ne.s32.totalorder %s246, %s249
    %p255 = scmp.eq.s32.totalorder %s16, 0
    %p256 = por %p254, %p255
    %p257 = scmp.ne.s32.totalorder %s246, %s249
    %p258 = scmp.eq.s32.totalorder %s21, 1
    %p259 = por %p257, %p258
    %p260 = scmp.ne.s32.totalorder %s249, %s250
    %p261 = scmp.eq.s32.totalorder %s21, 0
    %p262 = por %p260, %p261
    %p263 = scmp.ne.s32.totalorder %s249, %s250
    %p264 = scmp.eq.s32.totalorder %s22, 1
    %p265 = por %p263, %p264
    %p267 = scmp.ne.s32.totalorder %s250, %s266
    %p268 = scmp.eq.s32.totalorder %s22, 0
    %p269 = por %p267, %p268
    %p270 = scmp.le.s32.totalorder 1, %s16
    %p271 = scmp.lt.s32.totalorder %s16, 3
    %p272 = pnand %p270, %p271
    %p273 = pneg %p272
    // Predicated region
    $region9: #{transformer_with_pe_forward.22} parent=5 // pred_check
      _
    $region10: #{transformer_with_pe_forward.22} parent=5 // pred_check_branch
      %275 = sbr.rel (%p272) target = $region12
    $region11: #{transformer_with_pe_forward.22} parent=5 // pred_region
      %s276 = ssub.s32 %s16, 1
      // Predicated region
      $region13: #{transformer_with_pe_forward.22} parent=11 // pred_check
        %p277 = pneg %p89
      $region14: #{transformer_with_pe_forward.22} parent=11 // pred_check_branch
        %279 = sbr.rel (%p277) target = $region16
      $region15: #{transformer_with_pe_forward.22} parent=11 // pred_region
        _
      $region16: #{transformer_with_pe_forward.22} parent=11 // pred_fallthru
        _
      // Predicated region
      $region17: #{transformer_with_pe_forward.22} parent=11 // pred_check
        %p280 = pneg %p110
      $region18: #{transformer_with_pe_forward.22} parent=11 // pred_check_branch
        %282 = sbr.rel (%p280) target = $region20
      $region19: #{transformer_with_pe_forward.22} parent=11 // pred_region
        _
      $region20: #{transformer_with_pe_forward.22} parent=11 // pred_fallthru
        _
      // Predicated region
      $region21: #{transformer_with_pe_forward.22} parent=11 // pred_check
        %p283 = pneg %p131
      $region22: #{transformer_with_pe_forward.22} parent=11 // pred_check_branch
        %285 = sbr.rel (%p283) target = $region24
      $region23: #{transformer_with_pe_forward.22} parent=11 // pred_region
        _
      $region24: #{transformer_with_pe_forward.22} parent=11 // pred_fallthru
        _
      // Predicated region
      $region25: #{transformer_with_pe_forward.22} parent=11 // pred_check
        %p286 = pneg %p152
      $region26: #{transformer_with_pe_forward.22} parent=11 // pred_check_branch
        %288 = sbr.rel (%p286) target = $region28
      $region27: #{transformer_with_pe_forward.22} parent=11 // pred_region
        _
      $region28: #{transformer_with_pe_forward.22} parent=11 // pred_fallthru
        _
      // Predicated region
      $region29: #{transformer_with_pe_forward.22} parent=11 // pred_check
        %p289 = pneg %p173
      $region30: #{transformer_with_pe_forward.22} parent=11 // pred_check_branch
        %291 = sbr.rel (%p289) target = $region32
      $region31: #{transformer_with_pe_forward.22} parent=11 // pred_region
        _
      $region32: #{transformer_with_pe_forward.22} parent=11 // pred_fallthru
        _
      // Predicated region
      $region33: #{transformer_with_pe_forward.22} parent=11 // pred_check
        %p292 = pneg %p194
      $region34: #{transformer_with_pe_forward.22} parent=11 // pred_check_branch
        %294 = sbr.rel (%p292) target = $region36
      $region35: #{transformer_with_pe_forward.22} parent=11 // pred_region
        _
      $region36: #{transformer_with_pe_forward.22} parent=11 // pred_fallthru
        _
      // Predicated region
      $region37: #{transformer_with_pe_forward.22} parent=11 // pred_check
        %p295 = pneg %p215
      $region38: #{transformer_with_pe_forward.22} parent=11 // pred_check_branch
        %297 = sbr.rel (%p295) target = $region40
      $region39: #{transformer_with_pe_forward.22} parent=11 // pred_region
        _
      $region40: #{transformer_with_pe_forward.22} parent=11 // pred_fallthru
        _
      // Predicated region
      $region41: #{transformer_with_pe_forward.22} parent=11 // pred_check
        %p298 = pneg %p236
      $region42: #{transformer_with_pe_forward.22} parent=11 // pred_check_branch
        %300 = sbr.rel (%p298) target = $region44
      $region43: #{transformer_with_pe_forward.22} parent=11 // pred_region
        _
      $region44: #{transformer_with_pe_forward.22} parent=11 // pred_fallthru
        _
    $region12: #{transformer_with_pe_forward.22} parent=5 // pred_fallthru
      _
    %p301 = scmp.lt.s32.totalorder %s16, 2
    // Predicated region
    $region45: #{transformer_with_pe_forward.22} parent=5 // pred_check
      %p302 = pneg %p301
    $region46: #{transformer_with_pe_forward.22} parent=5 // pred_check_branch
      %304 = sbr.rel (%p302) target = $region48
    $region47: #{transformer_with_pe_forward.22} parent=5 // pred_region
      // Predicated region
      $region49: #{transformer_with_pe_forward.22} parent=47 // pred_check
        %p305 = pneg %p36
      $region50: #{transformer_with_pe_forward.22} parent=47 // pred_check_branch
        %307 = sbr.rel (%p305) target = $region52
      $region51: #{transformer_with_pe_forward.22} parent=47 // pred_region
        %p308 = scmp.lt.s32.totalorder %s16, 1
        %s309 = scalar_select %p308, %s16, 1
        %s310 = smul.addr %s309, 8
        %s311 = scalar_lea.vmem %s0, %s310
      $region52: #{transformer_with_pe_forward.22} parent=47 // pred_fallthru
        _
      // Predicated region
      $region53: #{transformer_with_pe_forward.22} parent=47 // pred_check
        %p312 = pneg %p62
      $region54: #{transformer_with_pe_forward.22} parent=47 // pred_check_branch
        %314 = sbr.rel (%p312) target = $region56
      $region55: #{transformer_with_pe_forward.22} parent=47 // pred_region
        %p315 = scmp.lt.s32.totalorder %s16, 1
        %s316 = scalar_select %p315, %s16, 1
        %s317 = smul.addr %s316, 8
        %s318 = scalar_lea.vmem %s1, %s317
      $region56: #{transformer_with_pe_forward.22} parent=47 // pred_fallthru
        _
    $region48: #{transformer_with_pe_forward.22} parent=5 // pred_fallthru
      _
    %p319 = scmp.le.s32.totalorder 1, %s16
    %p320 = scmp.lt.s32.totalorder %s16, 3
    %p321 = pnand %p319, %p320
    %p322 = pneg %p321
    // Predicated region
    $region57: #{transformer_with_pe_forward.22} parent=5 // pred_check
      _
    $region58: #{transformer_with_pe_forward.22} parent=5 // pred_check_branch
      %324 = sbr.rel (%p321) target = $region60
    $region59: #{transformer_with_pe_forward.22} parent=5 // pred_region
      %s325 = ssub.s32 %s16, 1
      %p326 = scmp.lt.s32.totalorder %s21, 1
      %s327 = scalar_select %p326, %s21, 1
      %s328 = smul.addr %s327, 8
      %s329 = scalar_lea.vmem %s0, %s328
      %p330 = pneg %p42
      %p331 = pneg %p39
      %p332 = scmp.lt.s32.totalorder %s21, 1
      %s333 = scalar_select %p332, %s21, 1
      %s334 = smul.addr %s333, 8
      %s335 = scalar_lea.vmem %s1, %s334
      %p336 = pneg %p68
      %p337 = pneg %p65
      %p338 = pneg %p89
      %p339 = pneg %p86
      %p340 = pneg %p110
      %p341 = pneg %p107
      %p342 = pneg %p131
      %p343 = pneg %p128
      %p344 = pneg %p152
      %p345 = pneg %p149
      %p346 = pneg %p173
      %p347 = pneg %p170
      %p348 = pneg %p194
      %p349 = pneg %p191
      %p350 = pneg %p215
      %p351 = pneg %p212
      %p352 = pneg %p236
      %p353 = pneg %p233
      %p354 = pneg %p262
      %p355 = pneg %p259
      %p356 = scmp.lt.s32.totalorder %s21, 1
      %s357 = scalar_select %p356, %s21, 1
      %s358 = smul.addr %s357, 8
      %s359 = scalar_lea.vmem %s10, %s358
      %p360 = scmp.lt.s32.totalorder %s21, 1
      %s361 = scalar_select %p360, %s21, 1
      %s362 = smul.addr %s361, 8
      %s363 = scalar_lea.vmem %s0, %s362
      %p364 = scmp.lt.s32.totalorder %s21, 1
      %s365 = scalar_select %p364, %s21, 1
      %s366 = smul.addr %s365, 8
      %s367 = scalar_lea.vmem %s1, %s366
      %p368 = scmp.lt.s32.totalorder %s21, 1
      %s369 = scalar_select %p368, %s21, 1
      %s370 = smul.addr %s369, 8
      %s371 = scalar_lea.vmem %s10, %s370
      %v372 = vld [vmem:[%s363] sm:$0xff]
      %v373 = vld [vmem:[%s367] sm:$0xff]
      %v374 = vld [vmem:[%s2] sm:$0xff]
      %v375 = vld [vmem:[%s2 + $0x8] sm:$0xff]
      %v376 = vld [vmem:[%s2 + $0x10] sm:$0xff]
      %v377 = vld [vmem:[%s2 + $0x18] sm:$0xff]
      %v378 = vld [vmem:[%s3] sm:$0x1]
      %v380 = vperm.slane %v378, 0
      %vm382 = vcmask 261120
      %v384 = vsel %vm382, %v372, 0
      %386 = vmatpush.msra.mxu0 0.0
      %387 = vmatpush.msra.mxu0 0.0
      %388 = vmatpush.msra.mxu0 0.0
      %389 = vmatpush.msra.mxu0 0.0
      %390 = vmatpush.msra.mxu0 0.0
      %391 = vmatpush.msra.mxu0 0.0
      %392 = vmatpush.msra.mxu0 0.0
      %393 = vmatpush.msra.mxu0 0.0
      %394 = vmatpush.msra.mxu0 0.0
      %395 = vmatpush.msra.mxu0 0.0
      %396 = vmatpush.msra.mxu0 0.0
      %397 = vmatpush.msra.mxu0 0.0
      %398 = vmatpush.msra.mxu0 %v377
      %399 = vmatpush.msra.mxu0 %v376
      %400 = vmatpush.msra.mxu0 %v375
      %401 = vmatpush.msra.mxu0 %v374
      %402 = vmatmul.f32.gmra.mxu0 %v384
      %v403 = vpop.f32.mrf.mxu0
      %v404 = vadd.f32 %v380, %v403
      %405 = vdwg.mxu0
      %v406 = vld [vmem:[%s4] sm:$0xff]
      %v407 = vld [vmem:[%s4 + $0x8] sm:$0xff]
      %v408 = vld [vmem:[%s4 + $0x10] sm:$0xff]
      %v409 = vld [vmem:[%s4 + $0x18] sm:$0xff]
      %v410 = vld [vmem:[%s5] sm:$0x1]
      %v412 = vperm.slane %v410, 0
      %v415 = vsel %vm382, %v373, 0
      %417 = vmatpush.msra.mxu0 0.0
      %418 = vmatpush.msra.mxu0 0.0
      %419 = vmatpush.msra.mxu0 0.0
      %420 = vmatpush.msra.mxu0 0.0
      %421 = vmatpush.msra.mxu0 0.0
      %422 = vmatpush.msra.mxu0 0.0
      %423 = vmatpush.msra.mxu0 0.0
      %424 = vmatpush.msra.mxu0 0.0
      %425 = vmatpush.msra.mxu0 0.0
      %426 = vmatpush.msra.mxu0 0.0
      %427 = vmatpush.msra.mxu0 0.0
      %428 = vmatpush.msra.mxu0 0.0
      %429 = vmatpush.msra.mxu0 %v409
      %430 = vmatpush.msra.mxu0 %v408
      %431 = vmatpush.msra.mxu0 %v407
      %432 = vmatpush.msra.mxu0 %v406
      %433 = vmatmul.f32.gmra.mxu0 %v415
      %v434 = vpop.f32.mrf.mxu0
      %v435 = vadd.f32 %v412, %v434
      %436 = vdwg.mxu0
      %vm437 = vcmask 64512
      %v439 = vsel %vm437, %v404, 0
      %v442 = vsel %vm437, %v435, 0
      %444 = vmatpush.xpose.msra.mxu0 0.0
      %445 = vmatpush.xpose.msra.mxu0 0.0
      %446 = vmatpush.xpose.msra.mxu0 0.0
      %447 = vmatpush.xpose.msra.mxu0 0.0
      %448 = vmatpush.xpose.msra.mxu0 0.0
      %449 = vmatpush.xpose.msra.mxu0 0.0
      %450 = vmatpush.xpose.msra.mxu0 0.0
      %451 = vmatpush.xpose.msra.mxu0 0.0
      %452 = vmatpush.xpose.msra.mxu0 0.0
      %453 = vmatpush.xpose.msra.mxu0 0.0
      %454 = vmatpush.xpose.msra.mxu0 0.0
      %455 = vmatpush.xpose.msra.mxu0 0.0
      %456 = vmatpush.xpose.msra.mxu0 0.0
      %457 = vmatpush.xpose.msra.mxu0 0.0
      %458 = vmatpush.xpose.msra.mxu0 0.0
      %459 = vmatpush.xpose.msra.mxu0 %v442
      %460 = vmatmul.f32.gmra.mxu0 %v439
      %v461 = vpop.f32.mrf.mxu0
      %v462 = vadd.f32 0.0, %v461
      %463 = vdwg.mxu0
      %v464 = vmul.f32 %v462, 0.35355338
      %v465 = vsel %vm437, %v464, -inf
      %466 = vmax.xlane.f32.xlu0 %v465
      %v467 = vpop.xlane.xlu0 %466
      %v468 = vsub.f32 %v464, %v467
      %v469 = vmul.f32 %v468, 1.442695
      %v470 = vpow.pop %v469
      %v471 = vsel %vm437, %v470, 0.0
      %472 = vadd.xlane.f32.xlu0 %v471
      %v473 = vpop.xlane.xlu0 %472
      %v474 = vrcp.pop %v473
      %v475 = vmul.f32 %v470, %v474
      %476 = vrot.lane.b32.xlu0 %v435, 96
      %v477 = vpop.permute.xlu0 %476
      %v480 = vsel %vm437, %v475, 0
      %482 = vmatpush.msra.mxu0 0.0
      %483 = vmatpush.msra.mxu0 0.0
      %484 = vmatpush.msra.mxu0 0.0
      %485 = vmatpush.msra.mxu0 0.0
      %486 = vmatpush.msra.mxu0 0.0
      %487 = vmatpush.msra.mxu0 0.0
      %488 = vmatpush.msra.mxu0 0.0
      %489 = vmatpush.msra.mxu0 0.0
      %490 = vmatpush.msra.mxu0 0.0
      %491 = vmatpush.msra.mxu0 0.0
      %492 = vmatpush.msra.mxu0 0.0
      %493 = vmatpush.msra.mxu0 0.0
      %494 = vmatpush.msra.mxu0 0.0
      %495 = vmatpush.msra.mxu0 0.0
      %496 = vmatpush.msra.mxu0 0.0
      %497 = vmatpush.msra.mxu0 %v477
      %498 = vmatmul.f32.gmra.mxu0 %v480
      %v499 = vpop.f32.mrf.mxu0
      %v500 = vadd.f32 0.0, %v499
      %501 = vdwg.mxu0
      %502 = vrot.lane.b32.xlu0 %v404, 120
      %v503 = vpop.permute.xlu0 %502
      %504 = vrot.lane.b32.xlu0 %v435, 120
      %v505 = vpop.permute.xlu0 %504
      %v506 = vsel %vm437, %v503, 0
      %v508 = vsel %vm437, %v505, 0
      %510 = vmatpush.xpose.msra.mxu0 0.0
      %511 = vmatpush.xpose.msra.mxu0 0.0
      %512 = vmatpush.xpose.msra.mxu0 0.0
      %513 = vmatpush.xpose.msra.mxu0 0.0
      %514 = vmatpush.xpose.msra.mxu0 0.0
      %515 = vmatpush.xpose.msra.mxu0 0.0
      %516 = vmatpush.xpose.msra.mxu0 0.0
      %517 = vmatpush.xpose.msra.mxu0 0.0
      %518 = vmatpush.xpose.msra.mxu0 0.0
      %519 = vmatpush.xpose.msra.mxu0 0.0
      %520 = vmatpush.xpose.msra.mxu0 0.0
      %521 = vmatpush.xpose.msra.mxu0 0.0
      %522 = vmatpush.xpose.msra.mxu0 0.0
      %523 = vmatpush.xpose.msra.mxu0 0.0
      %524 = vmatpush.xpose.msra.mxu0 0.0
      %525 = vmatpush.xpose.msra.mxu0 %v508
      %526 = vmatmul.f32.gmra.mxu0 %v506
      %v527 = vpop.f32.mrf.mxu0
      %v528 = vadd.f32 0.0, %v527
      %529 = vdwg.mxu0
      %v530 = vmul.f32 %v528, 0.35355338
      %v531 = vsel %vm437, %v530, -inf
      %532 = vmax.xlane.f32.xlu0 %v531
      %v533 = vpop.xlane.xlu0 %532
      %v534 = vsub.f32 %v530, %v533
      %v535 = vmul.f32 %v534, 1.442695
      %v536 = vpow.pop %v535
      %v537 = vsel %vm437, %v536, 0.0
      %538 = vadd.xlane.f32.xlu0 %v537
      %v539 = vpop.xlane.xlu0 %538
      %v540 = vrcp.pop %v539
      %v541 = vmul.f32 %v536, %v540
      %542 = vrot.lane.b32.xlu0 %v435, 88
      %v543 = vpop.permute.xlu0 %542
      %v546 = vsel %vm437, %v541, 0
      %548 = vmatpush.msra.mxu0 0.0
      %549 = vmatpush.msra.mxu0 0.0
      %550 = vmatpush.msra.mxu0 0.0
      %551 = vmatpush.msra.mxu0 0.0
      %552 = vmatpush.msra.mxu0 0.0
      %553 = vmatpush.msra.mxu0 0.0
      %554 = vmatpush.msra.mxu0 0.0
      %555 = vmatpush.msra.mxu0 0.0
      %556 = vmatpush.msra.mxu0 0.0
      %557 = vmatpush.msra.mxu0 0.0
      %558 = vmatpush.msra.mxu0 0.0
      %559 = vmatpush.msra.mxu0 0.0
      %560 = vmatpush.msra.mxu0 0.0
      %561 = vmatpush.msra.mxu0 0.0
      %562 = vmatpush.msra.mxu0 0.0
      %563 = vmatpush.msra.mxu0 %v543
      %564 = vmatmul.f32.gmra.mxu0 %v546
      %v565 = vpop.f32.mrf.mxu0
      %v566 = vadd.f32 0.0, %v565
      %567 = vdwg.mxu0
      %568 = vrot.lane.b32.xlu0 %v404, 112
      %v569 = vpop.permute.xlu0 %568
      %570 = vrot.lane.b32.xlu0 %v435, 112
      %v571 = vpop.permute.xlu0 %570
      %v572 = vsel %vm437, %v569, 0
      %v574 = vsel %vm437, %v571, 0
      %576 = vmatpush.xpose.msra.mxu0 0.0
      %577 = vmatpush.xpose.msra.mxu0 0.0
      %578 = vmatpush.xpose.msra.mxu0 0.0
      %579 = vmatpush.xpose.msra.mxu0 0.0
      %580 = vmatpush.xpose.msra.mxu0 0.0
      %581 = vmatpush.xpose.msra.mxu0 0.0
      %582 = vmatpush.xpose.msra.mxu0 0.0
      %583 = vmatpush.xpose.msra.mxu0 0.0
      %584 = vmatpush.xpose.msra.mxu0 0.0
      %585 = vmatpush.xpose.msra.mxu0 0.0
      %586 = vmatpush.xpose.msra.mxu0 0.0
      %587 = vmatpush.xpose.msra.mxu0 0.0
      %588 = vmatpush.xpose.msra.mxu0 0.0
      %589 = vmatpush.xpose.msra.mxu0 0.0
      %590 = vmatpush.xpose.msra.mxu0 0.0
      %591 = vmatpush.xpose.msra.mxu0 %v574
      %592 = vmatmul.f32.gmra.mxu0 %v572
      %v593 = vpop.f32.mrf.mxu0
      %v594 = vadd.f32 0.0, %v593
      %595 = vdwg.mxu0
      %v596 = vmul.f32 %v594, 0.35355338
      %v597 = vsel %vm437, %v596, -inf
      %598 = vmax.xlane.f32.xlu0 %v597
      %v599 = vpop.xlane.xlu0 %598
      %v600 = vsub.f32 %v596, %v599
      %v601 = vmul.f32 %v600, 1.442695
      %v602 = vpow.pop %v601
      %v603 = vsel %vm437, %v602, 0.0
      %604 = vadd.xlane.f32.xlu0 %v603
      %v605 = vpop.xlane.xlu0 %604
      %v606 = vrcp.pop %v605
      %v607 = vmul.f32 %v602, %v606
      %608 = vrot.lane.b32.xlu0 %v435, 80
      %v609 = vpop.permute.xlu0 %608
      %v612 = vsel %vm437, %v607, 0
      %614 = vmatpush.msra.mxu0 0.0
      %615 = vmatpush.msra.mxu0 0.0
      %616 = vmatpush.msra.mxu0 0.0
      %617 = vmatpush.msra.mxu0 0.0
      %618 = vmatpush.msra.mxu0 0.0
      %619 = vmatpush.msra.mxu0 0.0
      %620 = vmatpush.msra.mxu0 0.0
      %621 = vmatpush.msra.mxu0 0.0
      %622 = vmatpush.msra.mxu0 0.0
      %623 = vmatpush.msra.mxu0 0.0
      %624 = vmatpush.msra.mxu0 0.0
      %625 = vmatpush.msra.mxu0 0.0
      %626 = vmatpush.msra.mxu0 0.0
      %627 = vmatpush.msra.mxu0 0.0
      %628 = vmatpush.msra.mxu0 0.0
      %629 = vmatpush.msra.mxu0 %v609
      %630 = vmatmul.f32.gmra.mxu0 %v612
      %v631 = vpop.f32.mrf.mxu0
      %v632 = vadd.f32 0.0, %v631
      %633 = vdwg.mxu0
      %634 = vrot.lane.b32.xlu0 %v404, 104
      %v635 = vpop.permute.xlu0 %634
      %636 = vrot.lane.b32.xlu0 %v435, 104
      %v637 = vpop.permute.xlu0 %636
      %v638 = vsel %vm437, %v635, 0
      %v640 = vsel %vm437, %v637, 0
      %642 = vmatpush.xpose.msra.mxu0 0.0
      %643 = vmatpush.xpose.msra.mxu0 0.0
      %644 = vmatpush.xpose.msra.mxu0 0.0
      %645 = vmatpush.xpose.msra.mxu0 0.0
      %646 = vmatpush.xpose.msra.mxu0 0.0
      %647 = vmatpush.xpose.msra.mxu0 0.0
      %648 = vmatpush.xpose.msra.mxu0 0.0
      %649 = vmatpush.xpose.msra.mxu0 0.0
      %650 = vmatpush.xpose.msra.mxu0 0.0
      %651 = vmatpush.xpose.msra.mxu0 0.0
      %652 = vmatpush.xpose.msra.mxu0 0.0
      %653 = vmatpush.xpose.msra.mxu0 0.0
      %654 = vmatpush.xpose.msra.mxu0 0.0
      %655 = vmatpush.xpose.msra.mxu0 0.0
      %656 = vmatpush.xpose.msra.mxu0 0.0
      %657 = vmatpush.xpose.msra.mxu0 %v640
      %658 = vmatmul.f32.gmra.mxu0 %v638
      %v659 = vpop.f32.mrf.mxu0
      %v660 = vadd.f32 0.0, %v659
      %661 = vdwg.mxu0
      %v662 = vmul.f32 %v660, 0.35355338
      %v663 = vsel %vm437, %v662, -inf
      %664 = vmax.xlane.f32.xlu0 %v663
      %v665 = vpop.xlane.xlu0 %664
      %v666 = vsub.f32 %v662, %v665
      %v667 = vmul.f32 %v666, 1.442695
      %v668 = vpow.pop %v667
      %v669 = vsel %vm437, %v668, 0.0
      %670 = vadd.xlane.f32.xlu0 %v669
      %v671 = vpop.xlane.xlu0 %670
      %v672 = vrcp.pop %v671
      %v673 = vmul.f32 %v668, %v672
      %674 = vrot.lane.b32.xlu0 %v435, 72
      %v675 = vpop.permute.xlu0 %674
      %v678 = vsel %vm437, %v673, 0
      %680 = vmatpush.msra.mxu0 0.0
      %681 = vmatpush.msra.mxu0 0.0
      %682 = vmatpush.msra.mxu0 0.0
      %683 = vmatpush.msra.mxu0 0.0
      %684 = vmatpush.msra.mxu0 0.0
      %685 = vmatpush.msra.mxu0 0.0
      %686 = vmatpush.msra.mxu0 0.0
      %687 = vmatpush.msra.mxu0 0.0
      %688 = vmatpush.msra.mxu0 0.0
      %689 = vmatpush.msra.mxu0 0.0
      %690 = vmatpush.msra.mxu0 0.0
      %691 = vmatpush.msra.mxu0 0.0
      %692 = vmatpush.msra.mxu0 0.0
      %693 = vmatpush.msra.mxu0 0.0
      %694 = vmatpush.msra.mxu0 0.0
      %695 = vmatpush.msra.mxu0 %v675
      %696 = vmatmul.f32.gmra.mxu0 %v678
      %v697 = vpop.f32.mrf.mxu0
      %v698 = vadd.f32 0.0, %v697
      %699 = vdwg.mxu0
      %701 = vrot.lane.b32.xlu0 %v566, 8
      %v702 = vpop.permute.xlu0 %701
      %705 = vrot.lane.b32.xlu0 %v632, 16
      %v706 = vpop.permute.xlu0 %705
      %709 = vrot.lane.b32.xlu0 %v698, 24
      %v710 = vpop.permute.xlu0 %709
      %v712 = vsel %vm437, %v500, %v702
      %vm713 = vcmask 130048
      %v714 = vsel %vm713, %v712, %v706
      %vm715 = vcmask 195584
      %v716 = vsel %vm715, %v714, %v710
      %v717 = vld [vmem:[%s6] sm:$0xff]
      %v718 = vld [vmem:[%s6 + $0x8] sm:$0xff]
      %v719 = vld [vmem:[%s6 + $0x10] sm:$0xff]
      %v720 = vld [vmem:[%s6 + $0x18] sm:$0xff]
      %v721 = vld [vmem:[%s7] sm:$0x1]
      %v722 = vld [vmem:[%s8] sm:$0x1]
      %v723 = vld [vmem:[%s9] sm:$0x1]
      %v725 = vperm.slane %v721, 0
      %v728 = vsel %vm382, %v716, 0
      %730 = vmatpush.msra.mxu0 0.0
      %731 = vmatpush.msra.mxu0 0.0
      %732 = vmatpush.msra.mxu0 0.0
      %733 = vmatpush.msra.mxu0 0.0
      %734 = vmatpush.msra.mxu0 0.0
      %735 = vmatpush.msra.mxu0 0.0
      %736 = vmatpush.msra.mxu0 0.0
      %737 = vmatpush.msra.mxu0 0.0
      %738 = vmatpush.msra.mxu0 0.0
      %739 = vmatpush.msra.mxu0 0.0
      %740 = vmatpush.msra.mxu0 0.0
      %741 = vmatpush.msra.mxu0 0.0
      %742 = vmatpush.msra.mxu0 %v720
      %743 = vmatpush.msra.mxu0 %v719
      %744 = vmatpush.msra.mxu0 %v718
      %745 = vmatpush.msra.mxu0 %v717
      %746 = vmatmul.f32.gmra.mxu0 %v728
      %v747 = vpop.f32.mrf.mxu0
      %v748 = vadd.f32 %v725, %v747
      %749 = vdwg.mxu0
      %v750 = vadd.f32 %v748, %v372
      %v751 = vsel %vm382, %v750, 0.0
      %752 = vadd.xlane.f32.xlu0 %v751
      %v753 = vpop.xlane.xlu0 %752
      %v754 = vrcp.pop 32.0
      %v755 = vmul.f32 32.0, %v754
      %v756 = vsub.f32 1.0, %v755
      %v757 = vmul.f32 %v754, %v756
      %v758 = vadd.f32 %v754, %v757
      %vm759 = vweird.f32 %v754
      %v760 = vsel %vm759, %v754, %v758
      %v761 = vmul.f32 %v753, %v760
      %v762 = vsub.f32 %v750, %v761
      %v763 = vmul.f32 %v762, %v762
      %v764 = vsel %vm382, %v763, 0.0
      %765 = vadd.xlane.f32.xlu0 %v764
      %v766 = vpop.xlane.xlu0 %765
      %v767 = vmul.f32 %v766, %v760
      %v768 = vadd.f32 %v767, 1e-05
      %v769 = vrsqrt.pop %v768
      %v770 = vmul.f32 %v769, %v768
      %v771 = vmul.f32 %v770, %v769
      %v772 = vmul.f32 0.5, %v771
      %v773 = vsub.f32 1.5, %v772
      %v774 = vmul.f32 %v769, %v773
      %vm775 = vweird.f32 %v768
      %vm776 = vweird.f32 %v769
      %vm777 = vmor %vm775, %vm776
      %v778 = vsel %vm777, %v769, %v774
      %v779 = vmul.f32 %v762, %v778
      %v781 = vperm.slane %v722, 0
      %v783 = vmul.f32 %v779, %v781
      %v785 = vperm.slane %v723, 0
      %v787 = vadd.f32 %v783, %v785
      %788 = vst.msk [vmem:[%s371] sm:$0xff] %vm382, %v787
      %p789 = scmp.lt.s32.totalorder %s21, 1
      %s790 = scalar_select %p789, %s21, 1
      %s791 = smul.addr %s790, 8
      %s792 = scalar_lea.vmem %s10, %s791
      // Predicated region
      $region61: #{transformer_with_pe_forward.22} parent=59 // pred_check
        %p793 = pneg %p259
      $region62: #{transformer_with_pe_forward.22} parent=59 // pred_check_branch
        %795 = sbr.rel (%p793) target = $region64
      $region63: #{transformer_with_pe_forward.22} parent=59 // pred_region
        _
      $region64: #{transformer_with_pe_forward.22} parent=59 // pred_fallthru
        _
    $region60: #{transformer_with_pe_forward.22} parent=5 // pred_fallthru
      _
    %p796 = scmp.le.s32.totalorder 2, %s16
    // Predicated region
    $region65: #{transformer_with_pe_forward.22} parent=5 // pred_check
      %p797 = pneg %p796
    $region66: #{transformer_with_pe_forward.22} parent=5 // pred_check_branch
      %799 = sbr.rel (%p797) target = $region68
    $region67: #{transformer_with_pe_forward.22} parent=5 // pred_region
      %s800 = ssub.s32 %s16, 2
      // Predicated region
      $region69: #{transformer_with_pe_forward.22} parent=67 // pred_check
        %p801 = pneg %p265
      $region70: #{transformer_with_pe_forward.22} parent=67 // pred_check_branch
        %803 = sbr.rel (%p801) target = $region72
      $region71: #{transformer_with_pe_forward.22} parent=67 // pred_region
        %p804 = scmp.lt.s32.totalorder %s22, 1
        %s805 = scalar_select %p804, %s22, 1
        %s806 = smul.addr %s805, 8
        %s807 = scalar_lea.vmem %s10, %s806
      $region72: #{transformer_with_pe_forward.22} parent=67 // pred_fallthru
        _
    $region68: #{transformer_with_pe_forward.22} parent=5 // pred_fallthru
      _
  $region6: #{transformer_with_pe_forward.22} parent=0 // loop_footer
    %s20 = sadd.s32 1, %s16
  $region7: #{transformer_with_pe_forward.22} parent=0 // loop_footer_branch
    %15 = sbr.rel target = $region3
  $region8: #{transformer_with_pe_forward.22} parent=0 // loop_exit
    _

// kernel: transformer_with_pe_forward.27
$region0: #{transformer_with_pe_forward.27}
  #allocation0 [shape = 'u32[]', space=smem, size = 0x4, offset = 0x4, fixed_abs, tag = 'smem constant byte address 0x4 - core index']
  #allocation1 [shape = 'u32[72,128]{1,0:T(1,128)}', space=vmem, size = 0x9000, scoped, tag = 'internal scratch']
  %s0 = inlined_call_operand.vmem [shape: f32[16,32], index: 0, kind: input, shape index: {}]
  %s1 = inlined_call_operand.vmem [shape: f32[1,32], index: 1, kind: input, shape index: {}]
  %s2 = inlined_call_operand.vmem [shape: f32[1,32], index: 2, kind: input, shape index: {}]
  %s3 = inlined_call_operand.vmem [shape: f32[32,4], index: 3, kind: input, shape index: {}]
  %s4 = inlined_call_operand.vmem [shape: f32[1,4], index: 4, kind: input, shape index: {}]
  %s5 = inlined_call_operand.vmem [shape: f32[16,4], index: 5, kind: output, shape index: {}]
  %s6 = sld [smem:[#allocation0]]
  $region30: #{transformer_with_pe_forward.27} parent=0
    _
  %s8 = ssub.s32 1, %s6
  %s9 = scalar_select 0, %s8, %s6
  // Predicated region
  $region2: #{transformer_with_pe_forward.27} parent=0 // pred_check
    _
  $region3: #{transformer_with_pe_forward.27} parent=0 // pred_check_branch
    %11 = sbr.rel (0) target = $region5
  $region4: #{transformer_with_pe_forward.27} parent=0 // pred_region
    _
  $region5: #{transformer_with_pe_forward.27} parent=0 // pred_fallthru
    _
  // Predicated region
  $region6: #{transformer_with_pe_forward.27} parent=0 // pred_check
    _
  $region7: #{transformer_with_pe_forward.27} parent=0 // pred_check_branch
    %13 = sbr.rel (0) target = $region9
  $region8: #{transformer_with_pe_forward.27} parent=0 // pred_region
    _
  $region9: #{transformer_with_pe_forward.27} parent=0 // pred_fallthru
    _
  // Predicated region
  $region10: #{transformer_with_pe_forward.27} parent=0 // pred_check
    _
  $region11: #{transformer_with_pe_forward.27} parent=0 // pred_check_branch
    %15 = sbr.rel (0) target = $region13
  $region12: #{transformer_with_pe_forward.27} parent=0 // pred_region
    _
  $region13: #{transformer_with_pe_forward.27} parent=0 // pred_fallthru
    _
  // Predicated region
  $region14: #{transformer_with_pe_forward.27} parent=0 // pred_check
    _
  $region15: #{transformer_with_pe_forward.27} parent=0 // pred_check_branch
    %17 = sbr.rel (0) target = $region17
  $region16: #{transformer_with_pe_forward.27} parent=0 // pred_region
    _
  $region17: #{transformer_with_pe_forward.27} parent=0 // pred_fallthru
    _
  // Predicated region
  $region18: #{transformer_with_pe_forward.27} parent=0 // pred_check
    _
  $region19: #{transformer_with_pe_forward.27} parent=0 // pred_check_branch
    %19 = sbr.rel (0) target = $region21
  $region20: #{transformer_with_pe_forward.27} parent=0 // pred_region
    _
  $region21: #{transformer_with_pe_forward.27} parent=0 // pred_fallthru
    _
  %v20 = vld [vmem:[%s0] sm:$0xff]
  %v21 = vld [vmem:[%s0 + $0x8] sm:$0xff]
  %vm22 = vcmask 261120
  %v23 = vsel %vm22, %v20, 0.0
  %24 = vadd.xlane.f32.xlu0 %v23
  %v25 = vpop.xlane.xlu0 %24
  %v26 = vsel %vm22, %v21, 0.0
  %27 = vadd.xlane.f32.xlu0 %v26
  %v28 = vpop.xlane.xlu0 %27
  %v29 = vrcp.pop 32.0
  %v30 = vmul.f32 32.0, %v29
  %v31 = vsub.f32 1.0, %v30
  %v32 = vmul.f32 %v29, %v31
  %v33 = vadd.f32 %v29, %v32
  %vm34 = vweird.f32 %v29
  %v35 = vsel %vm34, %v29, %v33
  %v36 = vmul.f32 %v25, %v35
  %v37 = vmul.f32 %v28, %v35
  %v38 = vsub.f32 %v20, %v36
  %v39 = vsub.f32 %v21, %v37
  %v40 = vmul.f32 %v38, %v38
  %v41 = vmul.f32 %v39, %v39
  %v42 = vsel %vm22, %v40, 0.0
  %43 = vadd.xlane.f32.xlu0 %v42
  %v44 = vpop.xlane.xlu0 %43
  %v45 = vsel %vm22, %v41, 0.0
  %46 = vadd.xlane.f32.xlu0 %v45
  %v47 = vpop.xlane.xlu0 %46
  %v48 = vmul.f32 %v44, %v35
  %v49 = vmul.f32 %v47, %v35
  %v50 = vadd.f32 %v48, 1e-05
  %v51 = vadd.f32 %v49, 1e-05
  %v52 = vrsqrt.pop %v50
  %v53 = vmul.f32 %v52, %v50
  %v54 = vmul.f32 %v53, %v52
  %v55 = vmul.f32 0.5, %v54
  %v56 = vsub.f32 1.5, %v55
  %v57 = vmul.f32 %v52, %v56
  %vm58 = vweird.f32 %v50
  %vm59 = vweird.f32 %v52
  %vm60 = vmor %vm58, %vm59
  %v61 = vsel %vm60, %v52, %v57
  %v62 = vrsqrt.pop %v51
  %v63 = vmul.f32 %v62, %v51
  %v64 = vmul.f32 %v63, %v62
  %v65 = vmul.f32 0.5, %v64
  %v66 = vsub.f32 1.5, %v65
  %v67 = vmul.f32 %v62, %v66
  %vm68 = vweird.f32 %v51
  %vm69 = vweird.f32 %v62
  %vm70 = vmor %vm68, %vm69
  %v71 = vsel %vm70, %v62, %v67
  %v72 = vmul.f32 %v38, %v61
  %v73 = vmul.f32 %v39, %v71
  %v74 = vld [vmem:[%s1] sm:$0x1]
  %v76 = vperm.slane %v74, 0
  %v78 = vmul.f32 %v72, %v76
  %v79 = vmul.f32 %v73, %v76
  %v80 = vld [vmem:[%s2] sm:$0x1]
  %v82 = vperm.slane %v80, 0
  %v84 = vadd.f32 %v78, %v82
  %v85 = vadd.f32 %v79, %v82
  %v86 = vld [vmem:[%s3] sm:$0xff]
  %v87 = vld [vmem:[%s3 + $0x8] sm:$0xff]
  %v88 = vld [vmem:[%s3 + $0x10] sm:$0xff]
  %v89 = vld [vmem:[%s3 + $0x18] sm:$0xff]
  %v90 = vld [vmem:[%s4] sm:$0x1]
  %v92 = vperm.slane %v90, 0
  %v95 = vsel %vm22, %v84, 0
  %v98 = vsel %vm22, %v85, 0
  %100 = vmatpush.msra.mxu0 0.0
  %101 = vmatpush.msra.mxu0 0.0
  %102 = vmatpush.msra.mxu0 0.0
  %103 = vmatpush.msra.mxu0 0.0
  %104 = vmatpush.msra.mxu0 0.0
  %105 = vmatpush.msra.mxu0 0.0
  %106 = vmatpush.msra.mxu0 0.0
  %107 = vmatpush.msra.mxu0 0.0
  %108 = vmatpush.msra.mxu0 0.0
  %109 = vmatpush.msra.mxu0 0.0
  %110 = vmatpush.msra.mxu0 0.0
  %111 = vmatpush.msra.mxu0 0.0
  %112 = vmatpush.msra.mxu0 %v89
  %113 = vmatpush.msra.mxu0 %v88
  %114 = vmatpush.msra.mxu0 %v87
  %115 = vmatpush.msra.mxu0 %v86
  %116 = vmatmul.f32.gmra.mxu0 %v95
  %v117 = vpop.f32.mrf.mxu0
  %v118 = vadd.f32 %v92, %v117
  %119 = vmatmul.f32.gmra.mxu0 %v98
  %v120 = vpop.f32.mrf.mxu0
  %v121 = vadd.f32 %v92, %v120
  %122 = vdwg.mxu0
  %vm123 = vcmask 31744
  %124 = vst.msk [vmem:[%s5] sm:$0xff] %vm123, %v118
  %125 = vst.msk [vmem:[%s5 + $0x8] sm:$0xff] %vm123, %v121
  // Predicated region
  $region22: #{transformer_with_pe_forward.27} parent=0 // pred_check
    _
  $region23: #{transformer_with_pe_forward.27} parent=0 // pred_check_branch
    %127 = sbr.rel (0) target = $region25
  $region24: #{transformer_with_pe_forward.27} parent=0 // pred_region
    _
  $region25: #{transformer_with_pe_forward.27} parent=0 // pred_fallthru
    _
  // Predicated region
  $region26: #{transformer_with_pe_forward.27} parent=0 // pred_check
    _
  $region27: #{transformer_with_pe_forward.27} parent=0 // pred_check_branch
    %129 = sbr.rel (0) target = $region29
  $region28: #{transformer_with_pe_forward.27} parent=0 // pred_region
    _
  $region29: #{transformer_with_pe_forward.27} parent=0 // pred_fallthru
    _

</llo_original>
